<compile_context>
chip_gen: v7x
topology: tpu7x:2x2x1
jax: 0.10.0
libtpu: 0.0.40
codegen_flags: <defaults>
</compile_context>

<pallas_src>
import math
from enum import Enum
from functools import partial

import jax
import jax.numpy as jnp
from jax import lax
from jax.experimental import pallas as pl
from jax.experimental.pallas import tpu as pltpu

PADDING_TOKEN_ID = -100  # matches HF CrossEntropyLoss ignore_index semantics


class TokenType(Enum):
    TEXT = 0
    OTHER = 1


# ---- tiny GPT-2 config (deterministic synthetic weights, not a checkpoint) ----
VOCAB = 128
D_MODEL = 128           # lane-dense (multiple of 128)
N_HEAD = 2
N_LAYER = 2
MAX_T = 32
D_FF = 4 * D_MODEL      # 512, lane-dense
HEAD_DIM = D_MODEL // N_HEAD


# ------------------------------ in-kernel helpers ------------------------------

def _layernorm(x, g, b, eps=1e-5):
    mu = jnp.mean(x, axis=-1, keepdims=True)
    var = jnp.mean(jnp.square(x - mu), axis=-1, keepdims=True)
    return (x - mu) * lax.rsqrt(var + eps) * g + b


def _gelu_new(y):
    # GPT-2 "gelu_new" (tanh approximation)
    return 0.5 * y * (1.0 + jnp.tanh(0.7978845608028654 * (y + 0.044715 * y * y * y)))


# ------------------------------ fused Pallas kernel ------------------------------

def _gpt_fused_kernel(x_ref, tgt_ref,
                      ln1g_ref, ln1b_ref, wqkv_ref, bqkv_ref, wo_ref, bo_ref,
                      ln2g_ref, ln2b_ref, wfc_ref, bfc_ref, wpr_ref, bpr_ref,
                      lnfg_ref, lnfb_ref, wte_ref,
                      probs_ref, nll_ref, valid_ref,
                      *, n_layer, n_head, head_dim, scale):
    """All layers + LM head for one batch block of shape (nb, T, D)."""
    nb, t, d = x_ref.shape
    x = x_ref[...].reshape(nb * t, d).astype(jnp.float32)        # (nb*t, d)

    # additive causal mask, built once per block and reused by all layers / heads
    row = lax.broadcasted_iota(jnp.int32, (t, t), 0)
    col = lax.broadcasted_iota(jnp.int32, (t, t), 1)
    neg_mask = jnp.where(col <= row, 0.0, -1e30).astype(jnp.float32)    # (t, t)

    for l in range(n_layer):     # static unroll: weights stay resident in VMEM
        # ---- LN1 + fused QKV projection (one lane-dense (d, 3d) MXU push) ----
        xn = _layernorm(x, ln1g_ref[l], ln1b_ref[l])
        qkv = jnp.dot(xn.astype(jnp.bfloat16), wqkv_ref[l],
                      preferred_element_type=jnp.float32) + bqkv_ref[l]   # (nb*t, 3d)

        # ---- per-sequence, per-head causal attention (f32 softmax) ----
        ctx_heads = []
        for h in range(n_head):
            c = h * head_dim
            q = qkv[:, c:c + head_dim].reshape(nb, t, head_dim)
            k = qkv[:, d + c:d + c + head_dim].reshape(nb, t, head_dim)
            v = qkv[:, 2 * d + c:2 * d + c + head_dim].reshape(nb, t, head_dim)
            s = jnp.einsum("bqd,bkd->bqk",
                           q.astype(jnp.bfloat16), k.astype(jnp.bfloat16),
                           preferred_element_type=jnp.float32) * scale
            s = s + neg_mask[None, :, :]
            m = jnp.max(s, axis=-1, keepdims=True)
            p = jnp.exp(s - m)
            p = p * pl.reciprocal(jnp.sum(p, axis=-1, keepdims=True), approx=True)
            ctx = jnp.einsum("bqk,bkd->bqd",
                             p.astype(jnp.bfloat16), v.astype(jnp.bfloat16),
                             preferred_element_type=jnp.float32)
            ctx_heads.append(ctx.reshape(nb * t, head_dim))
        ctx = jnp.concatenate(ctx_heads, axis=-1)                         # (nb*t, d)

        # ---- output projection + residual 1 ----
        x = x + jnp.dot(ctx.astype(jnp.bfloat16), wo_ref[l],
                        preferred_element_type=jnp.float32) + bo_ref[l]

        # ---- LN2 + MLP (GELU) + residual 2 ----
        xn = _layernorm(x, ln2g_ref[l], ln2b_ref[l])
        hmid = jnp.dot(xn.astype(jnp.bfloat16), wfc_ref[l],
                       preferred_element_type=jnp.float32) + bfc_ref[l]
        hmid = _gelu_new(hmid)
        x = x + jnp.dot(hmid.astype(jnp.bfloat16), wpr_ref[l],
                        preferred_element_type=jnp.float32) + bpr_ref[l]

    # ---- final LN + tied LM head + softmax probs + shifted CE terms ----
    # TODO(synk): for realistic vocab sizes, tile the head over V with an online
    # max/LSE accumulation and make the (M, V) probs output optional.
    xn = _layernorm(x, lnfg_ref[...], lnfb_ref[...])
    logits = lax.dot_general(xn.astype(jnp.bfloat16),
                             wte_ref[...].astype(jnp.bfloat16),
                             (((1,), (1,)), ((), ())),
                             preferred_element_type=jnp.float32)          # (nb*t, V)
    v_dim = logits.shape[-1]
    m = jnp.max(logits, axis=-1, keepdims=True)
    e = jnp.exp(logits - m)
    denom = jnp.sum(e, axis=-1, keepdims=True)
    probs_ref[...] = (e / denom).reshape(nb, t, v_dim).astype(probs_ref.dtype)

    lse = jnp.log(denom) + m                                              # (nb*t, 1)
    tgt = tgt_ref[...]                                                    # (nb*t, 1) int32
    cols = lax.broadcasted_iota(jnp.int32, logits.shape, 1)
    tgt_logit = jnp.sum(logits * (cols == tgt).astype(jnp.float32),
                        axis=-1, keepdims=True)
    valid = (tgt != PADDING_TOKEN_ID).astype(jnp.float32)
    nll_ref[...] = (lse - tgt_logit) * valid
    valid_ref[...] = valid


# ------------------------------ kernel wrapper ------------------------------

def _cost_estimate(B, T):
    D, DF, V, L, H = D_MODEL, D_FF, VOCAB, N_LAYER, N_HEAD
    per_tok = L * (2 * D * 3 * D          # fused qkv projection
                   + 4 * T * D            # scores + context matmuls
                   + 2 * D * D            # output projection
                   + 4 * D * DF)          # MLP
    flops = B * T * (per_tok + 2 * D * V)
    transc = B * T * (L * (H * T + DF) + V)
    w_bytes = (L * (D * 3 * D + D * D + 2 * D * DF) * 2     # bf16 matmul weights
               + V * D * 4 + L * (3 * D + 5 * D + DF) * 4)  # f32 wte + biases/LN (approx)
    act_bytes = B * T * (2 * D * 4 + V * 4 + 2 * 4)
    return pl.CostEstimate(flops=int(flops), transcendentals=int(transc),
                           bytes_accessed=int(w_bytes + act_bytes))


def pallas_gpt_fused(params, x_embed, targets, *, batch_blocks=1):
    """One pallas_call for the whole model (all layers + head + loss terms)."""
    B, T, D = x_embed.shape
    assert B % batch_blocks == 0
    nb = B // batch_blocks

    weights = (params["ln1_g"], params["ln1_b"], params["wqkv"], params["bqkv"],
               params["wo"], params["bo"], params["ln2_g"], params["ln2_b"],
               params["wfc"], params["bfc"], params["wpr"], params["bpr"],
               params["lnf_g"], params["lnf_b"], params["wte"])
    # Whole-array resident weights (constant block index across the batch grid).
    # TODO(synk): on v7x with large weights, set pipeline_mode=pl.Buffered(1) on these
    # constant-index specs to avoid double-buffering them.
    w_specs = [pl.BlockSpec(w.shape, lambda g, _nd=w.ndim: (0,) * _nd) for w in weights]

    kernel = partial(_gpt_fused_kernel, n_layer=N_LAYER, n_head=N_HEAD,
                     head_dim=HEAD_DIM, scale=1.0 / math.sqrt(HEAD_DIM))

    probs, nll, valid = pl.pallas_call(
        kernel,
        out_shape=(jax.ShapeDtypeStruct((B, T, VOCAB), jnp.float32),
                   jax.ShapeDtypeStruct((B * T, 1), jnp.float32),
                   jax.ShapeDtypeStruct((B * T, 1), jnp.float32)),
        grid=(batch_blocks,),
        in_specs=[pl.BlockSpec((nb, T, D), lambda g: (g, 0, 0)),
                  pl.BlockSpec((nb * T, 1), lambda g: (g, 0))] + w_specs,
        out_specs=(pl.BlockSpec((nb, T, VOCAB), lambda g: (g, 0, 0)),
                   pl.BlockSpec((nb * T, 1), lambda g: (g, 0)),
                   pl.BlockSpec((nb * T, 1), lambda g: (g, 0))),
        compiler_params=pltpu.CompilerParams(dimension_semantics=("parallel",)),
        cost_estimate=_cost_estimate(B, T),
    )(x_embed, targets, *weights)

    # tiny (B*T,) reductions in plain JAX: exact global masked mean regardless of blocking
    loss = jnp.sum(nll) / jnp.maximum(jnp.sum(valid), 1.0)
    return probs, loss


# ------------------------------ model (glue) ------------------------------

def init_params(key):
    def norm(k, shape, dtype=jnp.float32):
        return (0.02 * jax.random.normal(k, shape)).astype(dtype)

    k_wte, k_wpe, k_qkv, k_wo, k_wfc, k_wpr = jax.random.split(key, 6)
    return {
        "wte": norm(k_wte, (VOCAB, D_MODEL)),                       # f32: gather + tied head
        "wpe": norm(k_wpe, (MAX_T, D_MODEL)),
        "lnf_g": jnp.ones((1, D_MODEL), jnp.float32),
        "lnf_b": jnp.zeros((1, D_MODEL), jnp.float32),
        # stacked per-layer weights (leading dim = N_LAYER); MXU operands in bf16
        "ln1_g": jnp.ones((N_LAYER, 1, D_MODEL), jnp.float32),
        "ln1_b": jnp.zeros((N_LAYER, 1, D_MODEL), jnp.float32),
        "wqkv": norm(k_qkv, (N_LAYER, D_MODEL, 3 * D_MODEL), jnp.bfloat16),
        "bqkv": jnp.zeros((N_LAYER, 1, 3 * D_MODEL), jnp.float32),
        "wo": norm(k_wo, (N_LAYER, D_MODEL, D_MODEL), jnp.bfloat16),
        "bo": jnp.zeros((N_LAYER, 1, D_MODEL), jnp.float32),
        "ln2_g": jnp.ones((N_LAYER, 1, D_MODEL), jnp.float32),
        "ln2_b": jnp.zeros((N_LAYER, 1, D_MODEL), jnp.float32),
        "wfc": norm(k_wfc, (N_LAYER, D_MODEL, D_FF), jnp.bfloat16),
        "bfc": jnp.zeros((N_LAYER, 1, D_FF), jnp.float32),
        "wpr": norm(k_wpr, (N_LAYER, D_FF, D_MODEL), jnp.bfloat16),
        "bpr": jnp.zeros((N_LAYER, 1, D_MODEL), jnp.float32),
    }


def gpt2_forward_with_head(params, input_ids, targets, *, batch_blocks=1):
    B, T = input_ids.shape
    # embedding gather stays in plain JAX (glue); everything downstream is one kernel
    x = (params["wte"][input_ids] + params["wpe"][:T][None, :, :]).astype(jnp.float32)
    probs, loss = pallas_gpt_fused(params, x, targets, batch_blocks=batch_blocks)
    return probs, loss


def gpt_lm_baseline_forward(params, token_ids, gen_labels=None, *, batch_blocks=1):
    """Mirrors GPTLMBaseline.forward (eval path; no decoding / past_key_values)."""
    labels = gen_labels if gen_labels is not None else token_ids
    input_ids = jnp.where(token_ids == PADDING_TOKEN_ID, 0, token_ids)
    B, T = input_ids.shape

    # HF GPT2LMHeadModel loss == CE(logits[:, :-1], labels[:, 1:], ignore_index=-100).
    # Precompute shifted next-token targets (last position -> ignore_index); the fused
    # kernel masks them, so T == 1 and all-PAD labels naturally give loss 0.
    if T == 1:
        targets = jnp.full((B * T, 1), PADDING_TOKEN_ID, jnp.int32)
    else:
        targets = jnp.concatenate(
            [labels[:, 1:], jnp.full((B, 1), PADDING_TOKEN_ID, labels.dtype)],
            axis=1).reshape(B * T, 1).astype(jnp.int32)

    probs_text, loss = gpt2_forward_with_head(params, input_ids, targets,
                                              batch_blocks=batch_blocks)

    probs = {tt: jnp.zeros((B, T, 1), jnp.float32) for tt in TokenType}
    probs[TokenType.TEXT] = probs_text

    # output_attentions=False -> None; use_cache=False -> None
    # TODO(synk): decoding / past_key_values path not implemented (eval-only forward).
    return loss, probs, None, None


if __name__ == "__main__":
    key = jax.random.PRNGKey(0)
    pkey, tkey = jax.random.split(key)
    params = init_params(pkey)

    B, T = 2, 8
    token_ids = jax.random.randint(tkey, (B, T), 1, VOCAB, dtype=jnp.int32)
    # pad the tail of the second sequence
    token_ids = token_ids.at[1, -2:].set(PADDING_TOKEN_ID)

    # batch_blocks=1: whole batch per grid step (best for 1-TC v5e/v6e and for this
    # launch-overhead-bound toy size).  On v7x, batch_blocks=2 uses both TensorCores.
    loss, probs, attentions, past_key_values = gpt_lm_baseline_forward(params, token_ids)

    loss = jax.block_until_ready(loss)
    text_probs = jax.block_until_ready(probs[TokenType.TEXT])

    assert text_probs.shape == (B, T, VOCAB)
    assert bool(jnp.isfinite(loss))
    # output softmax uses exact division, rows sum to 1 in f32
    assert bool(jnp.allclose(jnp.sum(text_probs, axis=-1), 1.0, atol=1e-4))

    print("KERNEL_OK")
</pallas_src>

<mosaic_0001>
module attributes {stable_mosaic.version = 11 : i64} {
  func.func @_gpt_fused_kernel(%arg0: i32, %arg1: memref<2x8x128xf32, #tpu.memory_space<vmem>>, %arg2: memref<16x1xi32, #tpu.memory_space<vmem>>, %arg3: memref<2x1x128xf32, #tpu.memory_space<vmem>>, %arg4: memref<2x1x128xf32, #tpu.memory_space<vmem>>, %arg5: memref<2x128x384xbf16, #tpu.memory_space<vmem>>, %arg6: memref<2x1x384xf32, #tpu.memory_space<vmem>>, %arg7: memref<2x128x128xbf16, #tpu.memory_space<vmem>>, %arg8: memref<2x1x128xf32, #tpu.memory_space<vmem>>, %arg9: memref<2x1x128xf32, #tpu.memory_space<vmem>>, %arg10: memref<2x1x128xf32, #tpu.memory_space<vmem>>, %arg11: memref<2x128x512xbf16, #tpu.memory_space<vmem>>, %arg12: memref<2x1x512xf32, #tpu.memory_space<vmem>>, %arg13: memref<2x512x128xbf16, #tpu.memory_space<vmem>>, %arg14: memref<2x1x128xf32, #tpu.memory_space<vmem>>, %arg15: memref<1x128xf32, #tpu.memory_space<vmem>>, %arg16: memref<1x128xf32, #tpu.memory_space<vmem>>, %arg17: memref<128x128xf32, #tpu.memory_space<vmem>>, %arg18: memref<2x8x128xf32, #tpu.memory_space<vmem>>, %arg19: memref<16x1xf32, #tpu.memory_space<vmem>>, %arg20: memref<16x1xf32, #tpu.memory_space<vmem>>) attributes {dimension_semantics = [#tpu.dimension_semantics<parallel>], iteration_bounds = array<i64: 1>, scalar_prefetch = 0 : i64, scratch_operands = 0 : i64, tpu.core_type = #tpu.core_type<tc>, window_params = [{transform_indices = @transform_0, window_bounds = array<i64: 2, 8, 128>}, {transform_indices = @transform_1, window_bounds = array<i64: 16, 1>}, {pipeline_mode = #tpu.pipeline_mode<synchronous>, transform_indices = @transform_2, window_bounds = array<i64: 2, 1, 128>}, {pipeline_mode = #tpu.pipeline_mode<synchronous>, transform_indices = @transform_3, window_bounds = array<i64: 2, 1, 128>}, {pipeline_mode = #tpu.pipeline_mode<synchronous>, transform_indices = @transform_4, window_bounds = array<i64: 2, 128, 384>}, {pipeline_mode = #tpu.pipeline_mode<synchronous>, transform_indices = @transform_5, window_bounds = array<i64: 2, 1, 384>}, {pipeline_mode = #tpu.pipeline_mode<synchronous>, transform_indices = @transform_6, window_bounds = array<i64: 2, 128, 128>}, {pipeline_mode = #tpu.pipeline_mode<synchronous>, transform_indices = @transform_7, window_bounds = array<i64: 2, 1, 128>}, {pipeline_mode = #tpu.pipeline_mode<synchronous>, transform_indices = @transform_8, window_bounds = array<i64: 2, 1, 128>}, {pipeline_mode = #tpu.pipeline_mode<synchronous>, transform_indices = @transform_9, window_bounds = array<i64: 2, 1, 128>}, {pipeline_mode = #tpu.pipeline_mode<synchronous>, transform_indices = @transform_10, window_bounds = array<i64: 2, 128, 512>}, {pipeline_mode = #tpu.pipeline_mode<synchronous>, transform_indices = @transform_11, window_bounds = array<i64: 2, 1, 512>}, {pipeline_mode = #tpu.pipeline_mode<synchronous>, transform_indices = @transform_12, window_bounds = array<i64: 2, 512, 128>}, {pipeline_mode = #tpu.pipeline_mode<synchronous>, transform_indices = @transform_13, window_bounds = array<i64: 2, 1, 128>}, {pipeline_mode = #tpu.pipeline_mode<synchronous>, transform_indices = @transform_14, window_bounds = array<i64: 1, 128>}, {pipeline_mode = #tpu.pipeline_mode<synchronous>, transform_indices = @transform_15, window_bounds = array<i64: 1, 128>}, {pipeline_mode = #tpu.pipeline_mode<synchronous>, transform_indices = @transform_16, window_bounds = array<i64: 128, 128>}, {transform_indices = @transform_17, window_bounds = array<i64: 2, 8, 128>}, {transform_indices = @transform_18, window_bounds = array<i64: 16, 1>}, {transform_indices = @transform_19, window_bounds = array<i64: 16, 1>}]} {
    %c0 = arith.constant 0 : index
    %c0_0 = arith.constant 0 : index
    %c0_1 = arith.constant 0 : index
    %0 = vector.load %arg1[%c0, %c0_0, %c0_1] : memref<2x8x128xf32, #tpu.memory_space<vmem>>, vector<2x8x128xf32>
    %1 = vector.shape_cast %0 : vector<2x8x128xf32> to vector<16x128xf32>
    %2 = tpu.iota {dimensions = array<i32: 0>} : vector<8x8xi32>
    %3 = tpu.iota {dimensions = array<i32: 1>} : vector<8x8xi32>
    %4 = arith.cmpi sle, %3, %2 : vector<8x8xi32>
    %cst = arith.constant 0.000000e+00 : f32
    %cst_2 = arith.constant -1.000000e+30 : f32
    %5 = vector.broadcast %cst : f32 to vector<8x8xf32>
    %6 = vector.broadcast %cst_2 : f32 to vector<8x8xf32>
    %7 = arith.select %4, %5, %6 : vector<8x8xi1>, vector<8x8xf32>
    %c0_3 = arith.constant 0 : index
    %c0_4 = arith.constant 0 : index
    %c0_5 = arith.constant 0 : index
    %8 = vector.load %arg3[%c0_3, %c0_4, %c0_5] : memref<2x1x128xf32, #tpu.memory_space<vmem>>, vector<1x1x128xf32>
    %9 = vector.shape_cast %8 : vector<1x1x128xf32> to vector<1x128xf32>
    %c0_6 = arith.constant 0 : index
    %c0_7 = arith.constant 0 : index
    %c0_8 = arith.constant 0 : index
    %10 = vector.load %arg4[%c0_6, %c0_7, %c0_8] : memref<2x1x128xf32, #tpu.memory_space<vmem>>, vector<1x1x128xf32>
    %11 = vector.shape_cast %10 : vector<1x1x128xf32> to vector<1x128xf32>
    %cst_9 = arith.constant dense<0.000000e+00> : vector<16xf32>
    %12 = vector.multi_reduction <add>, %1, %cst_9 [1] : vector<16x128xf32> to vector<16xf32>
    %13 = vector.shape_cast %12 : vector<16xf32> to vector<16x1xf32>
    %cst_10 = arith.constant 1.280000e+02 : f32
    %14 = vector.broadcast %cst_10 : f32 to vector<16x1xf32>
    %15 = arith.divf %13, %14 : vector<16x1xf32>
    %16 = vector.broadcast %15 : vector<16x1xf32> to vector<16x128xf32>
    %17 = arith.subf %1, %16 : vector<16x128xf32>
    %18 = arith.mulf %17, %17 : vector<16x128xf32>
    %cst_11 = arith.constant dense<0.000000e+00> : vector<16xf32>
    %19 = vector.multi_reduction <add>, %18, %cst_11 [1] : vector<16x128xf32> to vector<16xf32>
    %20 = vector.shape_cast %19 : vector<16xf32> to vector<16x1xf32>
    %cst_12 = arith.constant 1.280000e+02 : f32
    %21 = vector.broadcast %cst_12 : f32 to vector<16x1xf32>
    %22 = arith.divf %20, %21 : vector<16x1xf32>
    %23 = vector.broadcast %15 : vector<16x1xf32> to vector<16x128xf32>
    %24 = arith.subf %1, %23 : vector<16x128xf32>
    %cst_13 = arith.constant 9.99999974E-6 : f32
    %25 = vector.broadcast %cst_13 : f32 to vector<16x1xf32>
    %26 = arith.addf %22, %25 : vector<16x1xf32>
    %27 = math.rsqrt %26 : vector<16x1xf32>
    %28 = vector.broadcast %27 : vector<16x1xf32> to vector<16x128xf32>
    %29 = arith.mulf %24, %28 : vector<16x128xf32>
    %30 = vector.broadcast %9 : vector<1x128xf32> to vector<16x128xf32>
    %31 = arith.mulf %29, %30 : vector<16x128xf32>
    %32 = vector.broadcast %11 : vector<1x128xf32> to vector<16x128xf32>
    %33 = arith.addf %31, %32 : vector<16x128xf32>
    %34 = arith.truncf %33 : vector<16x128xf32> to vector<16x128xbf16>
    %c0_14 = arith.constant 0 : index
    %c0_15 = arith.constant 0 : index
    %c0_16 = arith.constant 0 : index
    %35 = vector.load %arg5[%c0_14, %c0_15, %c0_16] : memref<2x128x384xbf16, #tpu.memory_space<vmem>>, vector<1x128x384xbf16>
    %36 = vector.shape_cast %35 : vector<1x128x384xbf16> to vector<128x384xbf16>
    %cst_17 = arith.constant dense<0.000000e+00> : vector<16x384xf32>
    %37 = tpu.matmul %34, %36, %cst_17 {dimension_numbers = #tpu.dot_dimension_numbers<[1], [0], [0], [1], [0, 0, 1, 1], [], []>} : vector<16x128xbf16>, vector<128x384xbf16>, vector<16x384xf32> -> vector<16x384xf32>
    %c0_18 = arith.constant 0 : index
    %c0_19 = arith.constant 0 : index
    %c0_20 = arith.constant 0 : index
    %38 = vector.load %arg6[%c0_18, %c0_19, %c0_20] : memref<2x1x384xf32, #tpu.memory_space<vmem>>, vector<1x1x384xf32>
    %39 = vector.shape_cast %38 : vector<1x1x384xf32> to vector<1x384xf32>
    %40 = vector.broadcast %39 : vector<1x384xf32> to vector<16x384xf32>
    %41 = arith.addf %37, %40 : vector<16x384xf32>
    %42 = vector.extract_strided_slice %41 {offsets = [0, 0], sizes = [16, 64], strides = [1, 1]} : vector<16x384xf32> to vector<16x64xf32>
    %43 = vector.shape_cast %42 : vector<16x64xf32> to vector<2x8x64xf32>
    %44 = vector.extract_strided_slice %41 {offsets = [0, 128], sizes = [16, 64], strides = [1, 1]} : vector<16x384xf32> to vector<16x64xf32>
    %45 = vector.shape_cast %44 : vector<16x64xf32> to vector<2x8x64xf32>
    %46 = vector.extract_strided_slice %41 {offsets = [0, 256], sizes = [16, 64], strides = [1, 1]} : vector<16x384xf32> to vector<16x64xf32>
    %47 = vector.shape_cast %46 : vector<16x64xf32> to vector<2x8x64xf32>
    %48 = arith.truncf %43 : vector<2x8x64xf32> to vector<2x8x64xbf16>
    %49 = arith.truncf %45 : vector<2x8x64xf32> to vector<2x8x64xbf16>
    "tpu.trace_start"() <{level = 10 : i32, message = "bqd,bkd->bqk"}> : () -> ()
    %cst_21 = arith.constant dense<0.000000e+00> : vector<2x8x8xf32>
    %50 = tpu.matmul %48, %49, %cst_21 {dimension_numbers = #tpu.dot_dimension_numbers<[2], [2], [1], [1], [0, 0, 0, 1, 1, 1], [0], [0]>} : vector<2x8x64xbf16>, vector<2x8x64xbf16>, vector<2x8x8xf32> -> vector<2x8x8xf32>
    "tpu.trace_stop"() : () -> ()
    %cst_22 = arith.constant 1.250000e-01 : f32
    %51 = vector.broadcast %cst_22 : f32 to vector<2x8x8xf32>
    %52 = arith.mulf %50, %51 : vector<2x8x8xf32>
    %53 = vector.shape_cast %7 : vector<8x8xf32> to vector<1x8x8xf32>
    %54 = vector.broadcast %53 : vector<1x8x8xf32> to vector<2x8x8xf32>
    %55 = arith.addf %52, %54 : vector<2x8x8xf32>
    %cst_23 = arith.constant dense<0xFF800000> : vector<2x8xf32>
    %56 = vector.multi_reduction <maximumf>, %55, %cst_23 [2] : vector<2x8x8xf32> to vector<2x8xf32>
    %57 = vector.shape_cast %56 : vector<2x8xf32> to vector<2x8x1xf32>
    %58 = vector.broadcast %57 : vector<2x8x1xf32> to vector<2x8x8xf32>
    %59 = arith.subf %55, %58 : vector<2x8x8xf32>
    %60 = math.exp %59 : vector<2x8x8xf32>
    %cst_24 = arith.constant dense<0.000000e+00> : vector<2x8xf32>
    %61 = vector.multi_reduction <add>, %60, %cst_24 [2] : vector<2x8x8xf32> to vector<2x8xf32>
    %62 = vector.shape_cast %61 : vector<2x8xf32> to vector<2x8x1xf32>
    %63 = tpu.reciprocal %62 {approx = true} : vector<2x8x1xf32> -> vector<2x8x1xf32>
    %64 = vector.broadcast %63 : vector<2x8x1xf32> to vector<2x8x8xf32>
    %65 = arith.mulf %60, %64 : vector<2x8x8xf32>
    %66 = arith.truncf %65 : vector<2x8x8xf32> to vector<2x8x8xbf16>
    %67 = arith.truncf %47 : vector<2x8x64xf32> to vector<2x8x64xbf16>
    "tpu.trace_start"() <{level = 10 : i32, message = "bqk,bkd->bqd"}> : () -> ()
    %cst_25 = arith.constant dense<0.000000e+00> : vector<2x8x64xf32>
    %68 = tpu.matmul %66, %67, %cst_25 {dimension_numbers = #tpu.dot_dimension_numbers<[2], [1], [1], [2], [0, 0, 0, 1, 1, 2], [0], [0]>} : vector<2x8x8xbf16>, vector<2x8x64xbf16>, vector<2x8x64xf32> -> vector<2x8x64xf32>
    "tpu.trace_stop"() : () -> ()
    %69 = vector.shape_cast %68 : vector<2x8x64xf32> to vector<16x64xf32>
    %70 = vector.extract_strided_slice %41 {offsets = [0, 64], sizes = [16, 64], strides = [1, 1]} : vector<16x384xf32> to vector<16x64xf32>
    %71 = vector.shape_cast %70 : vector<16x64xf32> to vector<2x8x64xf32>
    %72 = vector.extract_strided_slice %41 {offsets = [0, 192], sizes = [16, 64], strides = [1, 1]} : vector<16x384xf32> to vector<16x64xf32>
    %73 = vector.shape_cast %72 : vector<16x64xf32> to vector<2x8x64xf32>
    %74 = vector.extract_strided_slice %41 {offsets = [0, 320], sizes = [16, 64], strides = [1, 1]} : vector<16x384xf32> to vector<16x64xf32>
    %75 = vector.shape_cast %74 : vector<16x64xf32> to vector<2x8x64xf32>
    %76 = arith.truncf %71 : vector<2x8x64xf32> to vector<2x8x64xbf16>
    %77 = arith.truncf %73 : vector<2x8x64xf32> to vector<2x8x64xbf16>
    "tpu.trace_start"() <{level = 10 : i32, message = "bqd,bkd->bqk"}> : () -> ()
    %cst_26 = arith.constant dense<0.000000e+00> : vector<2x8x8xf32>
    %78 = tpu.matmul %76, %77, %cst_26 {dimension_numbers = #tpu.dot_dimension_numbers<[2], [2], [1], [1], [0, 0, 0, 1, 1, 1], [0], [0]>} : vector<2x8x64xbf16>, vector<2x8x64xbf16>, vector<2x8x8xf32> -> vector<2x8x8xf32>
    "tpu.trace_stop"() : () -> ()
    %cst_27 = arith.constant 1.250000e-01 : f32
    %79 = vector.broadcast %cst_27 : f32 to vector<2x8x8xf32>
    %80 = arith.mulf %78, %79 : vector<2x8x8xf32>
    %81 = vector.shape_cast %7 : vector<8x8xf32> to vector<1x8x8xf32>
    %82 = vector.broadcast %81 : vector<1x8x8xf32> to vector<2x8x8xf32>
    %83 = arith.addf %80, %82 : vector<2x8x8xf32>
    %cst_28 = arith.constant dense<0xFF800000> : vector<2x8xf32>
    %84 = vector.multi_reduction <maximumf>, %83, %cst_28 [2] : vector<2x8x8xf32> to vector<2x8xf32>
    %85 = vector.shape_cast %84 : vector<2x8xf32> to vector<2x8x1xf32>
    %86 = vector.broadcast %85 : vector<2x8x1xf32> to vector<2x8x8xf32>
    %87 = arith.subf %83, %86 : vector<2x8x8xf32>
    %88 = math.exp %87 : vector<2x8x8xf32>
    %cst_29 = arith.constant dense<0.000000e+00> : vector<2x8xf32>
    %89 = vector.multi_reduction <add>, %88, %cst_29 [2] : vector<2x8x8xf32> to vector<2x8xf32>
    %90 = vector.shape_cast %89 : vector<2x8xf32> to vector<2x8x1xf32>
    %91 = tpu.reciprocal %90 {approx = true} : vector<2x8x1xf32> -> vector<2x8x1xf32>
    %92 = vector.broadcast %91 : vector<2x8x1xf32> to vector<2x8x8xf32>
    %93 = arith.mulf %88, %92 : vector<2x8x8xf32>
    %94 = arith.truncf %93 : vector<2x8x8xf32> to vector<2x8x8xbf16>
    %95 = arith.truncf %75 : vector<2x8x64xf32> to vector<2x8x64xbf16>
    "tpu.trace_start"() <{level = 10 : i32, message = "bqk,bkd->bqd"}> : () -> ()
    %cst_30 = arith.constant dense<0.000000e+00> : vector<2x8x64xf32>
    %96 = tpu.matmul %94, %95, %cst_30 {dimension_numbers = #tpu.dot_dimension_numbers<[2], [1], [1], [2], [0, 0, 0, 1, 1, 2], [0], [0]>} : vector<2x8x8xbf16>, vector<2x8x64xbf16>, vector<2x8x64xf32> -> vector<2x8x64xf32>
    "tpu.trace_stop"() : () -> ()
    %97 = vector.shape_cast %96 : vector<2x8x64xf32> to vector<16x64xf32>
    %98 = tpu.concatenate %69, %97 in 1 : vector<16x64xf32>, vector<16x64xf32> -> vector<16x128xf32>
    %99 = arith.truncf %98 : vector<16x128xf32> to vector<16x128xbf16>
    %c0_31 = arith.constant 0 : index
    %c0_32 = arith.constant 0 : index
    %c0_33 = arith.constant 0 : index
    %100 = vector.load %arg7[%c0_31, %c0_32, %c0_33] : memref<2x128x128xbf16, #tpu.memory_space<vmem>>, vector<1x128x128xbf16>
    %101 = vector.shape_cast %100 : vector<1x128x128xbf16> to vector<128x128xbf16>
    %cst_34 = arith.constant dense<0.000000e+00> : vector<16x128xf32>
    %102 = tpu.matmul %99, %101, %cst_34 {dimension_numbers = #tpu.dot_dimension_numbers<[1], [0], [0], [1], [0, 0, 1, 1], [], []>} : vector<16x128xbf16>, vector<128x128xbf16>, vector<16x128xf32> -> vector<16x128xf32>
    %103 = arith.addf %1, %102 : vector<16x128xf32>
    %c0_35 = arith.constant 0 : index
    %c0_36 = arith.constant 0 : index
    %c0_37 = arith.constant 0 : index
    %104 = vector.load %arg8[%c0_35, %c0_36, %c0_37] : memref<2x1x128xf32, #tpu.memory_space<vmem>>, vector<1x1x128xf32>
    %105 = vector.shape_cast %104 : vector<1x1x128xf32> to vector<1x128xf32>
    %106 = vector.broadcast %105 : vector<1x128xf32> to vector<16x128xf32>
    %107 = arith.addf %103, %106 : vector<16x128xf32>
    %c0_38 = arith.constant 0 : index
    %c0_39 = arith.constant 0 : index
    %c0_40 = arith.constant 0 : index
    %108 = vector.load %arg9[%c0_38, %c0_39, %c0_40] : memref<2x1x128xf32, #tpu.memory_space<vmem>>, vector<1x1x128xf32>
    %109 = vector.shape_cast %108 : vector<1x1x128xf32> to vector<1x128xf32>
    %c0_41 = arith.constant 0 : index
    %c0_42 = arith.constant 0 : index
    %c0_43 = arith.constant 0 : index
    %110 = vector.load %arg10[%c0_41, %c0_42, %c0_43] : memref<2x1x128xf32, #tpu.memory_space<vmem>>, vector<1x1x128xf32>
    %111 = vector.shape_cast %110 : vector<1x1x128xf32> to vector<1x128xf32>
    %cst_44 = arith.constant dense<0.000000e+00> : vector<16xf32>
    %112 = vector.multi_reduction <add>, %107, %cst_44 [1] : vector<16x128xf32> to vector<16xf32>
    %113 = vector.shape_cast %112 : vector<16xf32> to vector<16x1xf32>
    %cst_45 = arith.constant 1.280000e+02 : f32
    %114 = vector.broadcast %cst_45 : f32 to vector<16x1xf32>
    %115 = arith.divf %113, %114 : vector<16x1xf32>
    %116 = vector.broadcast %115 : vector<16x1xf32> to vector<16x128xf32>
    %117 = arith.subf %107, %116 : vector<16x128xf32>
    %118 = arith.mulf %117, %117 : vector<16x128xf32>
    %cst_46 = arith.constant dense<0.000000e+00> : vector<16xf32>
    %119 = vector.multi_reduction <add>, %118, %cst_46 [1] : vector<16x128xf32> to vector<16xf32>
    %120 = vector.shape_cast %119 : vector<16xf32> to vector<16x1xf32>
    %cst_47 = arith.constant 1.280000e+02 : f32
    %121 = vector.broadcast %cst_47 : f32 to vector<16x1xf32>
    %122 = arith.divf %120, %121 : vector<16x1xf32>
    %123 = vector.broadcast %115 : vector<16x1xf32> to vector<16x128xf32>
    %124 = arith.subf %107, %123 : vector<16x128xf32>
    %cst_48 = arith.constant 9.99999974E-6 : f32
    %125 = vector.broadcast %cst_48 : f32 to vector<16x1xf32>
    %126 = arith.addf %122, %125 : vector<16x1xf32>
    %127 = math.rsqrt %126 : vector<16x1xf32>
    %128 = vector.broadcast %127 : vector<16x1xf32> to vector<16x128xf32>
    %129 = arith.mulf %124, %128 : vector<16x128xf32>
    %130 = vector.broadcast %109 : vector<1x128xf32> to vector<16x128xf32>
    %131 = arith.mulf %129, %130 : vector<16x128xf32>
    %132 = vector.broadcast %111 : vector<1x128xf32> to vector<16x128xf32>
    %133 = arith.addf %131, %132 : vector<16x128xf32>
    %134 = arith.truncf %133 : vector<16x128xf32> to vector<16x128xbf16>
    %c0_49 = arith.constant 0 : index
    %c0_50 = arith.constant 0 : index
    %c0_51 = arith.constant 0 : index
    %135 = vector.load %arg11[%c0_49, %c0_50, %c0_51] : memref<2x128x512xbf16, #tpu.memory_space<vmem>>, vector<1x128x512xbf16>
    %136 = vector.shape_cast %135 : vector<1x128x512xbf16> to vector<128x512xbf16>
    %cst_52 = arith.constant dense<0.000000e+00> : vector<16x512xf32>
    %137 = tpu.matmul %134, %136, %cst_52 {dimension_numbers = #tpu.dot_dimension_numbers<[1], [0], [0], [1], [0, 0, 1, 1], [], []>} : vector<16x128xbf16>, vector<128x512xbf16>, vector<16x512xf32> -> vector<16x512xf32>
    %c0_53 = arith.constant 0 : index
    %c0_54 = arith.constant 0 : index
    %c0_55 = arith.constant 0 : index
    %138 = vector.load %arg12[%c0_53, %c0_54, %c0_55] : memref<2x1x512xf32, #tpu.memory_space<vmem>>, vector<1x1x512xf32>
    %139 = vector.shape_cast %138 : vector<1x1x512xf32> to vector<1x512xf32>
    %140 = vector.broadcast %139 : vector<1x512xf32> to vector<16x512xf32>
    %141 = arith.addf %137, %140 : vector<16x512xf32>
    %cst_56 = arith.constant 5.000000e-01 : f32
    %142 = vector.broadcast %cst_56 : f32 to vector<16x512xf32>
    %143 = arith.mulf %142, %141 : vector<16x512xf32>
    %cst_57 = arith.constant 4.471500e-02 : f32
    %144 = vector.broadcast %cst_57 : f32 to vector<16x512xf32>
    %145 = arith.mulf %144, %141 : vector<16x512xf32>
    %146 = arith.mulf %145, %141 : vector<16x512xf32>
    %147 = arith.mulf %146, %141 : vector<16x512xf32>
    %148 = arith.addf %141, %147 : vector<16x512xf32>
    %cst_58 = arith.constant 0.797884583 : f32
    %149 = vector.broadcast %cst_58 : f32 to vector<16x512xf32>
    %150 = arith.mulf %149, %148 : vector<16x512xf32>
    %151 = math.tanh %150 : vector<16x512xf32>
    %cst_59 = arith.constant 1.000000e+00 : f32
    %152 = vector.broadcast %cst_59 : f32 to vector<16x512xf32>
    %153 = arith.addf %152, %151 : vector<16x512xf32>
    %154 = arith.mulf %143, %153 : vector<16x512xf32>
    %155 = arith.truncf %154 : vector<16x512xf32> to vector<16x512xbf16>
    %c0_60 = arith.constant 0 : index
    %c0_61 = arith.constant 0 : index
    %c0_62 = arith.constant 0 : index
    %156 = vector.load %arg13[%c0_60, %c0_61, %c0_62] : memref<2x512x128xbf16, #tpu.memory_space<vmem>>, vector<1x512x128xbf16>
    %157 = vector.shape_cast %156 : vector<1x512x128xbf16> to vector<512x128xbf16>
    %cst_63 = arith.constant dense<0.000000e+00> : vector<16x128xf32>
    %158 = tpu.matmul %155, %157, %cst_63 {dimension_numbers = #tpu.dot_dimension_numbers<[1], [0], [0], [1], [0, 0, 1, 1], [], []>} : vector<16x512xbf16>, vector<512x128xbf16>, vector<16x128xf32> -> vector<16x128xf32>
    %159 = arith.addf %107, %158 : vector<16x128xf32>
    %c0_64 = arith.constant 0 : index
    %c0_65 = arith.constant 0 : index
    %c0_66 = arith.constant 0 : index
    %160 = vector.load %arg14[%c0_64, %c0_65, %c0_66] : memref<2x1x128xf32, #tpu.memory_space<vmem>>, vector<1x1x128xf32>
    %161 = vector.shape_cast %160 : vector<1x1x128xf32> to vector<1x128xf32>
    %162 = vector.broadcast %161 : vector<1x128xf32> to vector<16x128xf32>
    %163 = arith.addf %159, %162 : vector<16x128xf32>
    %c1 = arith.constant 1 : index
    %c0_67 = arith.constant 0 : index
    %c0_68 = arith.constant 0 : index
    %164 = vector.load %arg3[%c1, %c0_67, %c0_68] : memref<2x1x128xf32, #tpu.memory_space<vmem>>, vector<1x1x128xf32>
    %165 = vector.shape_cast %164 : vector<1x1x128xf32> to vector<1x128xf32>
    %c1_69 = arith.constant 1 : index
    %c0_70 = arith.constant 0 : index
    %c0_71 = arith.constant 0 : index
    %166 = vector.load %arg4[%c1_69, %c0_70, %c0_71] : memref<2x1x128xf32, #tpu.memory_space<vmem>>, vector<1x1x128xf32>
    %167 = vector.shape_cast %166 : vector<1x1x128xf32> to vector<1x128xf32>
    %cst_72 = arith.constant dense<0.000000e+00> : vector<16xf32>
    %168 = vector.multi_reduction <add>, %163, %cst_72 [1] : vector<16x128xf32> to vector<16xf32>
    %169 = vector.shape_cast %168 : vector<16xf32> to vector<16x1xf32>
    %cst_73 = arith.constant 1.280000e+02 : f32
    %170 = vector.broadcast %cst_73 : f32 to vector<16x1xf32>
    %171 = arith.divf %169, %170 : vector<16x1xf32>
    %172 = vector.broadcast %171 : vector<16x1xf32> to vector<16x128xf32>
    %173 = arith.subf %163, %172 : vector<16x128xf32>
    %174 = arith.mulf %173, %173 : vector<16x128xf32>
    %cst_74 = arith.constant dense<0.000000e+00> : vector<16xf32>
    %175 = vector.multi_reduction <add>, %174, %cst_74 [1] : vector<16x128xf32> to vector<16xf32>
    %176 = vector.shape_cast %175 : vector<16xf32> to vector<16x1xf32>
    %cst_75 = arith.constant 1.280000e+02 : f32
    %177 = vector.broadcast %cst_75 : f32 to vector<16x1xf32>
    %178 = arith.divf %176, %177 : vector<16x1xf32>
    %179 = vector.broadcast %171 : vector<16x1xf32> to vector<16x128xf32>
    %180 = arith.subf %163, %179 : vector<16x128xf32>
    %cst_76 = arith.constant 9.99999974E-6 : f32
    %181 = vector.broadcast %cst_76 : f32 to vector<16x1xf32>
    %182 = arith.addf %178, %181 : vector<16x1xf32>
    %183 = math.rsqrt %182 : vector<16x1xf32>
    %184 = vector.broadcast %183 : vector<16x1xf32> to vector<16x128xf32>
    %185 = arith.mulf %180, %184 : vector<16x128xf32>
    %186 = vector.broadcast %165 : vector<1x128xf32> to vector<16x128xf32>
    %187 = arith.mulf %185, %186 : vector<16x128xf32>
    %188 = vector.broadcast %167 : vector<1x128xf32> to vector<16x128xf32>
    %189 = arith.addf %187, %188 : vector<16x128xf32>
    %190 = arith.truncf %189 : vector<16x128xf32> to vector<16x128xbf16>
    %c1_77 = arith.constant 1 : index
    %c0_78 = arith.constant 0 : index
    %c0_79 = arith.constant 0 : index
    %191 = vector.load %arg5[%c1_77, %c0_78, %c0_79] : memref<2x128x384xbf16, #tpu.memory_space<vmem>>, vector<1x128x384xbf16>
    %192 = vector.shape_cast %191 : vector<1x128x384xbf16> to vector<128x384xbf16>
    %cst_80 = arith.constant dense<0.000000e+00> : vector<16x384xf32>
    %193 = tpu.matmul %190, %192, %cst_80 {dimension_numbers = #tpu.dot_dimension_numbers<[1], [0], [0], [1], [0, 0, 1, 1], [], []>} : vector<16x128xbf16>, vector<128x384xbf16>, vector<16x384xf32> -> vector<16x384xf32>
    %c1_81 = arith.constant 1 : index
    %c0_82 = arith.constant 0 : index
    %c0_83 = arith.constant 0 : index
    %194 = vector.load %arg6[%c1_81, %c0_82, %c0_83] : memref<2x1x384xf32, #tpu.memory_space<vmem>>, vector<1x1x384xf32>
    %195 = vector.shape_cast %194 : vector<1x1x384xf32> to vector<1x384xf32>
    %196 = vector.broadcast %195 : vector<1x384xf32> to vector<16x384xf32>
    %197 = arith.addf %193, %196 : vector<16x384xf32>
    %198 = vector.extract_strided_slice %197 {offsets = [0, 0], sizes = [16, 64], strides = [1, 1]} : vector<16x384xf32> to vector<16x64xf32>
    %199 = vector.shape_cast %198 : vector<16x64xf32> to vector<2x8x64xf32>
    %200 = vector.extract_strided_slice %197 {offsets = [0, 128], sizes = [16, 64], strides = [1, 1]} : vector<16x384xf32> to vector<16x64xf32>
    %201 = vector.shape_cast %200 : vector<16x64xf32> to vector<2x8x64xf32>
    %202 = vector.extract_strided_slice %197 {offsets = [0, 256], sizes = [16, 64], strides = [1, 1]} : vector<16x384xf32> to vector<16x64xf32>
    %203 = vector.shape_cast %202 : vector<16x64xf32> to vector<2x8x64xf32>
    %204 = arith.truncf %199 : vector<2x8x64xf32> to vector<2x8x64xbf16>
    %205 = arith.truncf %201 : vector<2x8x64xf32> to vector<2x8x64xbf16>
    "tpu.trace_start"() <{level = 10 : i32, message = "bqd,bkd->bqk"}> : () -> ()
    %cst_84 = arith.constant dense<0.000000e+00> : vector<2x8x8xf32>
    %206 = tpu.matmul %204, %205, %cst_84 {dimension_numbers = #tpu.dot_dimension_numbers<[2], [2], [1], [1], [0, 0, 0, 1, 1, 1], [0], [0]>} : vector<2x8x64xbf16>, vector<2x8x64xbf16>, vector<2x8x8xf32> -> vector<2x8x8xf32>
    "tpu.trace_stop"() : () -> ()
    %cst_85 = arith.constant 1.250000e-01 : f32
    %207 = vector.broadcast %cst_85 : f32 to vector<2x8x8xf32>
    %208 = arith.mulf %206, %207 : vector<2x8x8xf32>
    %209 = vector.shape_cast %7 : vector<8x8xf32> to vector<1x8x8xf32>
    %210 = vector.broadcast %209 : vector<1x8x8xf32> to vector<2x8x8xf32>
    %211 = arith.addf %208, %210 : vector<2x8x8xf32>
    %cst_86 = arith.constant dense<0xFF800000> : vector<2x8xf32>
    %212 = vector.multi_reduction <maximumf>, %211, %cst_86 [2] : vector<2x8x8xf32> to vector<2x8xf32>
    %213 = vector.shape_cast %212 : vector<2x8xf32> to vector<2x8x1xf32>
    %214 = vector.broadcast %213 : vector<2x8x1xf32> to vector<2x8x8xf32>
    %215 = arith.subf %211, %214 : vector<2x8x8xf32>
    %216 = math.exp %215 : vector<2x8x8xf32>
    %cst_87 = arith.constant dense<0.000000e+00> : vector<2x8xf32>
    %217 = vector.multi_reduction <add>, %216, %cst_87 [2] : vector<2x8x8xf32> to vector<2x8xf32>
    %218 = vector.shape_cast %217 : vector<2x8xf32> to vector<2x8x1xf32>
    %219 = tpu.reciprocal %218 {approx = true} : vector<2x8x1xf32> -> vector<2x8x1xf32>
    %220 = vector.broadcast %219 : vector<2x8x1xf32> to vector<2x8x8xf32>
    %221 = arith.mulf %216, %220 : vector<2x8x8xf32>
    %222 = arith.truncf %221 : vector<2x8x8xf32> to vector<2x8x8xbf16>
    %223 = arith.truncf %203 : vector<2x8x64xf32> to vector<2x8x64xbf16>
    "tpu.trace_start"() <{level = 10 : i32, message = "bqk,bkd->bqd"}> : () -> ()
    %cst_88 = arith.constant dense<0.000000e+00> : vector<2x8x64xf32>
    %224 = tpu.matmul %222, %223, %cst_88 {dimension_numbers = #tpu.dot_dimension_numbers<[2], [1], [1], [2], [0, 0, 0, 1, 1, 2], [0], [0]>} : vector<2x8x8xbf16>, vector<2x8x64xbf16>, vector<2x8x64xf32> -> vector<2x8x64xf32>
    "tpu.trace_stop"() : () -> ()
    %225 = vector.shape_cast %224 : vector<2x8x64xf32> to vector<16x64xf32>
    %226 = vector.extract_strided_slice %197 {offsets = [0, 64], sizes = [16, 64], strides = [1, 1]} : vector<16x384xf32> to vector<16x64xf32>
    %227 = vector.shape_cast %226 : vector<16x64xf32> to vector<2x8x64xf32>
    %228 = vector.extract_strided_slice %197 {offsets = [0, 192], sizes = [16, 64], strides = [1, 1]} : vector<16x384xf32> to vector<16x64xf32>
    %229 = vector.shape_cast %228 : vector<16x64xf32> to vector<2x8x64xf32>
    %230 = vector.extract_strided_slice %197 {offsets = [0, 320], sizes = [16, 64], strides = [1, 1]} : vector<16x384xf32> to vector<16x64xf32>
    %231 = vector.shape_cast %230 : vector<16x64xf32> to vector<2x8x64xf32>
    %232 = arith.truncf %227 : vector<2x8x64xf32> to vector<2x8x64xbf16>
    %233 = arith.truncf %229 : vector<2x8x64xf32> to vector<2x8x64xbf16>
    "tpu.trace_start"() <{level = 10 : i32, message = "bqd,bkd->bqk"}> : () -> ()
    %cst_89 = arith.constant dense<0.000000e+00> : vector<2x8x8xf32>
    %234 = tpu.matmul %232, %233, %cst_89 {dimension_numbers = #tpu.dot_dimension_numbers<[2], [2], [1], [1], [0, 0, 0, 1, 1, 1], [0], [0]>} : vector<2x8x64xbf16>, vector<2x8x64xbf16>, vector<2x8x8xf32> -> vector<2x8x8xf32>
    "tpu.trace_stop"() : () -> ()
    %cst_90 = arith.constant 1.250000e-01 : f32
    %235 = vector.broadcast %cst_90 : f32 to vector<2x8x8xf32>
    %236 = arith.mulf %234, %235 : vector<2x8x8xf32>
    %237 = vector.shape_cast %7 : vector<8x8xf32> to vector<1x8x8xf32>
    %238 = vector.broadcast %237 : vector<1x8x8xf32> to vector<2x8x8xf32>
    %239 = arith.addf %236, %238 : vector<2x8x8xf32>
    %cst_91 = arith.constant dense<0xFF800000> : vector<2x8xf32>
    %240 = vector.multi_reduction <maximumf>, %239, %cst_91 [2] : vector<2x8x8xf32> to vector<2x8xf32>
    %241 = vector.shape_cast %240 : vector<2x8xf32> to vector<2x8x1xf32>
    %242 = vector.broadcast %241 : vector<2x8x1xf32> to vector<2x8x8xf32>
    %243 = arith.subf %239, %242 : vector<2x8x8xf32>
    %244 = math.exp %243 : vector<2x8x8xf32>
    %cst_92 = arith.constant dense<0.000000e+00> : vector<2x8xf32>
    %245 = vector.multi_reduction <add>, %244, %cst_92 [2] : vector<2x8x8xf32> to vector<2x8xf32>
    %246 = vector.shape_cast %245 : vector<2x8xf32> to vector<2x8x1xf32>
    %247 = tpu.reciprocal %246 {approx = true} : vector<2x8x1xf32> -> vector<2x8x1xf32>
    %248 = vector.broadcast %247 : vector<2x8x1xf32> to vector<2x8x8xf32>
    %249 = arith.mulf %244, %248 : vector<2x8x8xf32>
    %250 = arith.truncf %249 : vector<2x8x8xf32> to vector<2x8x8xbf16>
    %251 = arith.truncf %231 : vector<2x8x64xf32> to vector<2x8x64xbf16>
    "tpu.trace_start"() <{level = 10 : i32, message = "bqk,bkd->bqd"}> : () -> ()
    %cst_93 = arith.constant dense<0.000000e+00> : vector<2x8x64xf32>
    %252 = tpu.matmul %250, %251, %cst_93 {dimension_numbers = #tpu.dot_dimension_numbers<[2], [1], [1], [2], [0, 0, 0, 1, 1, 2], [0], [0]>} : vector<2x8x8xbf16>, vector<2x8x64xbf16>, vector<2x8x64xf32> -> vector<2x8x64xf32>
    "tpu.trace_stop"() : () -> ()
    %253 = vector.shape_cast %252 : vector<2x8x64xf32> to vector<16x64xf32>
    %254 = tpu.concatenate %225, %253 in 1 : vector<16x64xf32>, vector<16x64xf32> -> vector<16x128xf32>
    %255 = arith.truncf %254 : vector<16x128xf32> to vector<16x128xbf16>
    %c1_94 = arith.constant 1 : index
    %c0_95 = arith.constant 0 : index
    %c0_96 = arith.constant 0 : index
    %256 = vector.load %arg7[%c1_94, %c0_95, %c0_96] : memref<2x128x128xbf16, #tpu.memory_space<vmem>>, vector<1x128x128xbf16>
    %257 = vector.shape_cast %256 : vector<1x128x128xbf16> to vector<128x128xbf16>
    %cst_97 = arith.constant dense<0.000000e+00> : vector<16x128xf32>
    %258 = tpu.matmul %255, %257, %cst_97 {dimension_numbers = #tpu.dot_dimension_numbers<[1], [0], [0], [1], [0, 0, 1, 1], [], []>} : vector<16x128xbf16>, vector<128x128xbf16>, vector<16x128xf32> -> vector<16x128xf32>
    %259 = arith.addf %163, %258 : vector<16x128xf32>
    %c1_98 = arith.constant 1 : index
    %c0_99 = arith.constant 0 : index
    %c0_100 = arith.constant 0 : index
    %260 = vector.load %arg8[%c1_98, %c0_99, %c0_100] : memref<2x1x128xf32, #tpu.memory_space<vmem>>, vector<1x1x128xf32>
    %261 = vector.shape_cast %260 : vector<1x1x128xf32> to vector<1x128xf32>
    %262 = vector.broadcast %261 : vector<1x128xf32> to vector<16x128xf32>
    %263 = arith.addf %259, %262 : vector<16x128xf32>
    %c1_101 = arith.constant 1 : index
    %c0_102 = arith.constant 0 : index
    %c0_103 = arith.constant 0 : index
    %264 = vector.load %arg9[%c1_101, %c0_102, %c0_103] : memref<2x1x128xf32, #tpu.memory_space<vmem>>, vector<1x1x128xf32>
    %265 = vector.shape_cast %264 : vector<1x1x128xf32> to vector<1x128xf32>
    %c1_104 = arith.constant 1 : index
    %c0_105 = arith.constant 0 : index
    %c0_106 = arith.constant 0 : index
    %266 = vector.load %arg10[%c1_104, %c0_105, %c0_106] : memref<2x1x128xf32, #tpu.memory_space<vmem>>, vector<1x1x128xf32>
    %267 = vector.shape_cast %266 : vector<1x1x128xf32> to vector<1x128xf32>
    %cst_107 = arith.constant dense<0.000000e+00> : vector<16xf32>
    %268 = vector.multi_reduction <add>, %263, %cst_107 [1] : vector<16x128xf32> to vector<16xf32>
    %269 = vector.shape_cast %268 : vector<16xf32> to vector<16x1xf32>
    %cst_108 = arith.constant 1.280000e+02 : f32
    %270 = vector.broadcast %cst_108 : f32 to vector<16x1xf32>
    %271 = arith.divf %269, %270 : vector<16x1xf32>
    %272 = vector.broadcast %271 : vector<16x1xf32> to vector<16x128xf32>
    %273 = arith.subf %263, %272 : vector<16x128xf32>
    %274 = arith.mulf %273, %273 : vector<16x128xf32>
    %cst_109 = arith.constant dense<0.000000e+00> : vector<16xf32>
    %275 = vector.multi_reduction <add>, %274, %cst_109 [1] : vector<16x128xf32> to vector<16xf32>
    %276 = vector.shape_cast %275 : vector<16xf32> to vector<16x1xf32>
    %cst_110 = arith.constant 1.280000e+02 : f32
    %277 = vector.broadcast %cst_110 : f32 to vector<16x1xf32>
    %278 = arith.divf %276, %277 : vector<16x1xf32>
    %279 = vector.broadcast %271 : vector<16x1xf32> to vector<16x128xf32>
    %280 = arith.subf %263, %279 : vector<16x128xf32>
    %cst_111 = arith.constant 9.99999974E-6 : f32
    %281 = vector.broadcast %cst_111 : f32 to vector<16x1xf32>
    %282 = arith.addf %278, %281 : vector<16x1xf32>
    %283 = math.rsqrt %282 : vector<16x1xf32>
    %284 = vector.broadcast %283 : vector<16x1xf32> to vector<16x128xf32>
    %285 = arith.mulf %280, %284 : vector<16x128xf32>
    %286 = vector.broadcast %265 : vector<1x128xf32> to vector<16x128xf32>
    %287 = arith.mulf %285, %286 : vector<16x128xf32>
    %288 = vector.broadcast %267 : vector<1x128xf32> to vector<16x128xf32>
    %289 = arith.addf %287, %288 : vector<16x128xf32>
    %290 = arith.truncf %289 : vector<16x128xf32> to vector<16x128xbf16>
    %c1_112 = arith.constant 1 : index
    %c0_113 = arith.constant 0 : index
    %c0_114 = arith.constant 0 : index
    %291 = vector.load %arg11[%c1_112, %c0_113, %c0_114] : memref<2x128x512xbf16, #tpu.memory_space<vmem>>, vector<1x128x512xbf16>
    %292 = vector.shape_cast %291 : vector<1x128x512xbf16> to vector<128x512xbf16>
    %cst_115 = arith.constant dense<0.000000e+00> : vector<16x512xf32>
    %293 = tpu.matmul %290, %292, %cst_115 {dimension_numbers = #tpu.dot_dimension_numbers<[1], [0], [0], [1], [0, 0, 1, 1], [], []>} : vector<16x128xbf16>, vector<128x512xbf16>, vector<16x512xf32> -> vector<16x512xf32>
    %c1_116 = arith.constant 1 : index
    %c0_117 = arith.constant 0 : index
    %c0_118 = arith.constant 0 : index
    %294 = vector.load %arg12[%c1_116, %c0_117, %c0_118] : memref<2x1x512xf32, #tpu.memory_space<vmem>>, vector<1x1x512xf32>
    %295 = vector.shape_cast %294 : vector<1x1x512xf32> to vector<1x512xf32>
    %296 = vector.broadcast %295 : vector<1x512xf32> to vector<16x512xf32>
    %297 = arith.addf %293, %296 : vector<16x512xf32>
    %cst_119 = arith.constant 5.000000e-01 : f32
    %298 = vector.broadcast %cst_119 : f32 to vector<16x512xf32>
    %299 = arith.mulf %298, %297 : vector<16x512xf32>
    %cst_120 = arith.constant 4.471500e-02 : f32
    %300 = vector.broadcast %cst_120 : f32 to vector<16x512xf32>
    %301 = arith.mulf %300, %297 : vector<16x512xf32>
    %302 = arith.mulf %301, %297 : vector<16x512xf32>
    %303 = arith.mulf %302, %297 : vector<16x512xf32>
    %304 = arith.addf %297, %303 : vector<16x512xf32>
    %cst_121 = arith.constant 0.797884583 : f32
    %305 = vector.broadcast %cst_121 : f32 to vector<16x512xf32>
    %306 = arith.mulf %305, %304 : vector<16x512xf32>
    %307 = math.tanh %306 : vector<16x512xf32>
    %cst_122 = arith.constant 1.000000e+00 : f32
    %308 = vector.broadcast %cst_122 : f32 to vector<16x512xf32>
    %309 = arith.addf %308, %307 : vector<16x512xf32>
    %310 = arith.mulf %299, %309 : vector<16x512xf32>
    %311 = arith.truncf %310 : vector<16x512xf32> to vector<16x512xbf16>
    %c1_123 = arith.constant 1 : index
    %c0_124 = arith.constant 0 : index
    %c0_125 = arith.constant 0 : index
    %312 = vector.load %arg13[%c1_123, %c0_124, %c0_125] : memref<2x512x128xbf16, #tpu.memory_space<vmem>>, vector<1x512x128xbf16>
    %313 = vector.shape_cast %312 : vector<1x512x128xbf16> to vector<512x128xbf16>
    %cst_126 = arith.constant dense<0.000000e+00> : vector<16x128xf32>
    %314 = tpu.matmul %311, %313, %cst_126 {dimension_numbers = #tpu.dot_dimension_numbers<[1], [0], [0], [1], [0, 0, 1, 1], [], []>} : vector<16x512xbf16>, vector<512x128xbf16>, vector<16x128xf32> -> vector<16x128xf32>
    %315 = arith.addf %263, %314 : vector<16x128xf32>
    %c1_127 = arith.constant 1 : index
    %c0_128 = arith.constant 0 : index
    %c0_129 = arith.constant 0 : index
    %316 = vector.load %arg14[%c1_127, %c0_128, %c0_129] : memref<2x1x128xf32, #tpu.memory_space<vmem>>, vector<1x1x128xf32>
    %317 = vector.shape_cast %316 : vector<1x1x128xf32> to vector<1x128xf32>
    %318 = vector.broadcast %317 : vector<1x128xf32> to vector<16x128xf32>
    %319 = arith.addf %315, %318 : vector<16x128xf32>
    %c0_130 = arith.constant 0 : index
    %c0_131 = arith.constant 0 : index
    %320 = vector.load %arg15[%c0_130, %c0_131] : memref<1x128xf32, #tpu.memory_space<vmem>>, vector<1x128xf32>
    %c0_132 = arith.constant 0 : index
    %c0_133 = arith.constant 0 : index
    %321 = vector.load %arg16[%c0_132, %c0_133] : memref<1x128xf32, #tpu.memory_space<vmem>>, vector<1x128xf32>
    %cst_134 = arith.constant dense<0.000000e+00> : vector<16xf32>
    %322 = vector.multi_reduction <add>, %319, %cst_134 [1] : vector<16x128xf32> to vector<16xf32>
    %323 = vector.shape_cast %322 : vector<16xf32> to vector<16x1xf32>
    %cst_135 = arith.constant 1.280000e+02 : f32
    %324 = vector.broadcast %cst_135 : f32 to vector<16x1xf32>
    %325 = arith.divf %323, %324 : vector<16x1xf32>
    %326 = vector.broadcast %325 : vector<16x1xf32> to vector<16x128xf32>
    %327 = arith.subf %319, %326 : vector<16x128xf32>
    %328 = arith.mulf %327, %327 : vector<16x128xf32>
    %cst_136 = arith.constant dense<0.000000e+00> : vector<16xf32>
    %329 = vector.multi_reduction <add>, %328, %cst_136 [1] : vector<16x128xf32> to vector<16xf32>
    %330 = vector.shape_cast %329 : vector<16xf32> to vector<16x1xf32>
    %cst_137 = arith.constant 1.280000e+02 : f32
    %331 = vector.broadcast %cst_137 : f32 to vector<16x1xf32>
    %332 = arith.divf %330, %331 : vector<16x1xf32>
    %333 = vector.broadcast %325 : vector<16x1xf32> to vector<16x128xf32>
    %334 = arith.subf %319, %333 : vector<16x128xf32>
    %cst_138 = arith.constant 9.99999974E-6 : f32
    %335 = vector.broadcast %cst_138 : f32 to vector<16x1xf32>
    %336 = arith.addf %332, %335 : vector<16x1xf32>
    %337 = math.rsqrt %336 : vector<16x1xf32>
    %338 = vector.broadcast %337 : vector<16x1xf32> to vector<16x128xf32>
    %339 = arith.mulf %334, %338 : vector<16x128xf32>
    %340 = vector.broadcast %320 : vector<1x128xf32> to vector<16x128xf32>
    %341 = arith.mulf %339, %340 : vector<16x128xf32>
    %342 = vector.broadcast %321 : vector<1x128xf32> to vector<16x128xf32>
    %343 = arith.addf %341, %342 : vector<16x128xf32>
    %344 = arith.truncf %343 : vector<16x128xf32> to vector<16x128xbf16>
    %c0_139 = arith.constant 0 : index
    %c0_140 = arith.constant 0 : index
    %345 = vector.load %arg17[%c0_139, %c0_140] : memref<128x128xf32, #tpu.memory_space<vmem>>, vector<128x128xf32>
    %346 = arith.truncf %345 : vector<128x128xf32> to vector<128x128xbf16>
    %cst_141 = arith.constant dense<0.000000e+00> : vector<16x128xf32>
    %347 = tpu.matmul %344, %346, %cst_141 {dimension_numbers = #tpu.dot_dimension_numbers<[1], [1], [0], [0], [0, 0, 1, 0], [], []>} : vector<16x128xbf16>, vector<128x128xbf16>, vector<16x128xf32> -> vector<16x128xf32>
    %cst_142 = arith.constant dense<0xFF800000> : vector<16xf32>
    %348 = vector.multi_reduction <maximumf>, %347, %cst_142 [1] : vector<16x128xf32> to vector<16xf32>
    %349 = vector.shape_cast %348 : vector<16xf32> to vector<16x1xf32>
    %350 = vector.broadcast %349 : vector<16x1xf32> to vector<16x128xf32>
    %351 = arith.subf %347, %350 : vector<16x128xf32>
    %352 = math.exp %351 : vector<16x128xf32>
    %cst_143 = arith.constant dense<0.000000e+00> : vector<16xf32>
    %353 = vector.multi_reduction <add>, %352, %cst_143 [1] : vector<16x128xf32> to vector<16xf32>
    %354 = vector.shape_cast %353 : vector<16xf32> to vector<16x1xf32>
    %355 = vector.broadcast %354 : vector<16x1xf32> to vector<16x128xf32>
    %356 = arith.divf %352, %355 : vector<16x128xf32>
    %357 = vector.shape_cast %356 : vector<16x128xf32> to vector<2x8x128xf32>
    %c0_144 = arith.constant 0 : index
    %c0_145 = arith.constant 0 : index
    %c0_146 = arith.constant 0 : index
    %358 = vector.load %arg18[%c0_144, %c0_145, %c0_146] : memref<2x8x128xf32, #tpu.memory_space<vmem>>, vector<2x8x128xf32>
    tpu.vector_store %arg18[%c0_144, %c0_145, %c0_146], %357 {strides = array<i32>} : memref<2x8x128xf32, #tpu.memory_space<vmem>>, vector<2x8x128xf32>,
    %359 = math.log %354 : vector<16x1xf32>
    %360 = arith.addf %359, %349 : vector<16x1xf32>
    %c0_147 = arith.constant 0 : index
    %c0_148 = arith.constant 0 : index
    %361 = vector.load %arg2[%c0_147, %c0_148] : memref<16x1xi32, #tpu.memory_space<vmem>>, vector<16x1xi32>
    %362 = tpu.iota {dimensions = array<i32: 1>} : vector<16x128xi32>
    %363 = vector.broadcast %361 : vector<16x1xi32> to vector<16x128xi32>
    %364 = arith.cmpi eq, %362, %363 : vector<16x128xi32>
    %365 = arith.extui %364 : vector<16x128xi1> to vector<16x128xi32>
    %366 = arith.sitofp %365 : vector<16x128xi32> to vector<16x128xf32>
    %367 = arith.mulf %347, %366 : vector<16x128xf32>
    %cst_149 = arith.constant dense<0.000000e+00> : vector<16xf32>
    %368 = vector.multi_reduction <add>, %367, %cst_149 [1] : vector<16x128xf32> to vector<16xf32>
    %369 = vector.shape_cast %368 : vector<16xf32> to vector<16x1xf32>
    %c-100_i32 = arith.constant -100 : i32
    %370 = vector.broadcast %c-100_i32 : i32 to vector<16x1xi32>
    %371 = arith.cmpi ne, %361, %370 : vector<16x1xi32>
    %372 = arith.extui %371 : vector<16x1xi1> to vector<16x1xi32>
    %373 = arith.sitofp %372 : vector<16x1xi32> to vector<16x1xf32>
    %374 = arith.subf %360, %369 : vector<16x1xf32>
    %375 = arith.mulf %374, %373 : vector<16x1xf32>
    %c0_150 = arith.constant 0 : index
    %c0_151 = arith.constant 0 : index
    %376 = vector.load %arg19[%c0_150, %c0_151] : memref<16x1xf32, #tpu.memory_space<vmem>>, vector<16x1xf32>
    tpu.vector_store %arg19[%c0_150, %c0_151], %375 {strides = array<i32>} : memref<16x1xf32, #tpu.memory_space<vmem>>, vector<16x1xf32>,
    %c0_152 = arith.constant 0 : index
    %c0_153 = arith.constant 0 : index
    %377 = vector.load %arg20[%c0_152, %c0_153] : memref<16x1xf32, #tpu.memory_space<vmem>>, vector<16x1xf32>
    tpu.vector_store %arg20[%c0_152, %c0_153], %373 {strides = array<i32>} : memref<16x1xf32, #tpu.memory_space<vmem>>, vector<16x1xf32>,
    return
  }
  func.func @transform_0(%arg0: i32) -> (i32, i32, i32) {
    %c0_i32 = arith.constant 0 : i32
    %c0_i32_0 = arith.constant 0 : i32
    %c0_i32_1 = arith.constant 0 : i32
    return %arg0, %c0_i32, %c0_i32_0 : i32, i32, i32
  }
  func.func @transform_1(%arg0: i32) -> (i32, i32) {
    %c0_i32 = arith.constant 0 : i32
    %c0_i32_0 = arith.constant 0 : i32
    return %arg0, %c0_i32 : i32, i32
  }
  func.func @transform_2(%arg0: i32) -> (i32, i32, i32) {
    %c0_i32 = arith.constant 0 : i32
    %c0_i32_0 = arith.constant 0 : i32
    %c0_i32_1 = arith.constant 0 : i32
    %c0_i32_2 = arith.constant 0 : i32
    return %c0_i32, %c0_i32_0, %c0_i32_1 : i32, i32, i32
  }
  func.func @transform_3(%arg0: i32) -> (i32, i32, i32) {
    %c0_i32 = arith.constant 0 : i32
    %c0_i32_0 = arith.constant 0 : i32
    %c0_i32_1 = arith.constant 0 : i32
    %c0_i32_2 = arith.constant 0 : i32
    return %c0_i32, %c0_i32_0, %c0_i32_1 : i32, i32, i32
  }
  func.func @transform_4(%arg0: i32) -> (i32, i32, i32) {
    %c0_i32 = arith.constant 0 : i32
    %c0_i32_0 = arith.constant 0 : i32
    %c0_i32_1 = arith.constant 0 : i32
    %c0_i32_2 = arith.constant 0 : i32
    return %c0_i32, %c0_i32_0, %c0_i32_1 : i32, i32, i32
  }
  func.func @transform_5(%arg0: i32) -> (i32, i32, i32) {
    %c0_i32 = arith.constant 0 : i32
    %c0_i32_0 = arith.constant 0 : i32
    %c0_i32_1 = arith.constant 0 : i32
    %c0_i32_2 = arith.constant 0 : i32
    return %c0_i32, %c0_i32_0, %c0_i32_1 : i32, i32, i32
  }
  func.func @transform_6(%arg0: i32) -> (i32, i32, i32) {
    %c0_i32 = arith.constant 0 : i32
    %c0_i32_0 = arith.constant 0 : i32
    %c0_i32_1 = arith.constant 0 : i32
    %c0_i32_2 = arith.constant 0 : i32
    return %c0_i32, %c0_i32_0, %c0_i32_1 : i32, i32, i32
  }
  func.func @transform_7(%arg0: i32) -> (i32, i32, i32) {
    %c0_i32 = arith.constant 0 : i32
    %c0_i32_0 = arith.constant 0 : i32
    %c0_i32_1 = arith.constant 0 : i32
    %c0_i32_2 = arith.constant 0 : i32
    return %c0_i32, %c0_i32_0, %c0_i32_1 : i32, i32, i32
  }
  func.func @transform_8(%arg0: i32) -> (i32, i32, i32) {
    %c0_i32 = arith.constant 0 : i32
    %c0_i32_0 = arith.constant 0 : i32
    %c0_i32_1 = arith.constant 0 : i32
    %c0_i32_2 = arith.constant 0 : i32
    return %c0_i32, %c0_i32_0, %c0_i32_1 : i32, i32, i32
  }
  func.func @transform_9(%arg0: i32) -> (i32, i32, i32) {
    %c0_i32 = arith.constant 0 : i32
    %c0_i32_0 = arith.constant 0 : i32
    %c0_i32_1 = arith.constant 0 : i32
    %c0_i32_2 = arith.constant 0 : i32
    return %c0_i32, %c0_i32_0, %c0_i32_1 : i32, i32, i32
  }
  func.func @transform_10(%arg0: i32) -> (i32, i32, i32) {
    %c0_i32 = arith.constant 0 : i32
    %c0_i32_0 = arith.constant 0 : i32
    %c0_i32_1 = arith.constant 0 : i32
    %c0_i32_2 = arith.constant 0 : i32
    return %c0_i32, %c0_i32_0, %c0_i32_1 : i32, i32, i32
  }
  func.func @transform_11(%arg0: i32) -> (i32, i32, i32) {
    %c0_i32 = arith.constant 0 : i32
    %c0_i32_0 = arith.constant 0 : i32
    %c0_i32_1 = arith.constant 0 : i32
    %c0_i32_2 = arith.constant 0 : i32
    return %c0_i32, %c0_i32_0, %c0_i32_1 : i32, i32, i32
  }
  func.func @transform_12(%arg0: i32) -> (i32, i32, i32) {
    %c0_i32 = arith.constant 0 : i32
    %c0_i32_0 = arith.constant 0 : i32
    %c0_i32_1 = arith.constant 0 : i32
    %c0_i32_2 = arith.constant 0 : i32
    return %c0_i32, %c0_i32_0, %c0_i32_1 : i32, i32, i32
  }
  func.func @transform_13(%arg0: i32) -> (i32, i32, i32) {
    %c0_i32 = arith.constant 0 : i32
    %c0_i32_0 = arith.constant 0 : i32
    %c0_i32_1 = arith.constant 0 : i32
    %c0_i32_2 = arith.constant 0 : i32
    return %c0_i32, %c0_i32_0, %c0_i32_1 : i32, i32, i32
  }
  func.func @transform_14(%arg0: i32) -> (i32, i32) {
    %c0_i32 = arith.constant 0 : i32
    %c0_i32_0 = arith.constant 0 : i32
    %c0_i32_1 = arith.constant 0 : i32
    return %c0_i32, %c0_i32_0 : i32, i32
  }
  func.func @transform_15(%arg0: i32) -> (i32, i32) {
    %c0_i32 = arith.constant 0 : i32
    %c0_i32_0 = arith.constant 0 : i32
    %c0_i32_1 = arith.constant 0 : i32
    return %c0_i32, %c0_i32_0 : i32, i32
  }
  func.func @transform_16(%arg0: i32) -> (i32, i32) {
    %c0_i32 = arith.constant 0 : i32
    %c0_i32_0 = arith.constant 0 : i32
    %c0_i32_1 = arith.constant 0 : i32
    return %c0_i32, %c0_i32_0 : i32, i32
  }
  func.func @transform_17(%arg0: i32) -> (i32, i32, i32) {
    %c0_i32 = arith.constant 0 : i32
    %c0_i32_0 = arith.constant 0 : i32
    %c0_i32_1 = arith.constant 0 : i32
    return %arg0, %c0_i32, %c0_i32_0 : i32, i32, i32
  }
  func.func @transform_18(%arg0: i32) -> (i32, i32) {
    %c0_i32 = arith.constant 0 : i32
    %c0_i32_0 = arith.constant 0 : i32
    return %arg0, %c0_i32 : i32, i32
  }
  func.func @transform_19(%arg0: i32) -> (i32, i32) {
    %c0_i32 = arith.constant 0 : i32
    %c0_i32_0 = arith.constant 0 : i32
    return %arg0, %c0_i32 : i32, i32
  }
}

</mosaic_0001>

<llo_original>
// kernel: tpu_custom_call.1
$region0: #{tpu_custom_call.1}
  #allocation0 [shape = 'u32[]', space=smem, size = 0x4, offset = 0x4, fixed_abs, tag = 'smem constant byte address 0x4 - core index']
  #allocation1 [shape = 'u32[144,128]{1,0:T(1,128)}', space=vmem, size = 0x12000, scoped, tag = 'internal scratch']
  %s0 = inlined_call_operand.vmem [shape: f32[2,8,128], index: 0, kind: input, shape index: {}]
  %s1 = inlined_call_operand.vmem [shape: s32[16,1], index: 1, kind: input, shape index: {}]
  %s2 = inlined_call_operand.hbm [shape: f32[2,1,128], index: 2, kind: input, shape index: {}]
  %s3 = inlined_call_operand.vmem [shape: f32[2,1,128], index: 3, kind: input, shape index: {}]
  %s4 = inlined_call_operand.hbm [shape: bf16[2,128,384], index: 4, kind: input, shape index: {}]
  %s5 = inlined_call_operand.vmem [shape: f32[2,1,384], index: 5, kind: input, shape index: {}]
  %s6 = inlined_call_operand.hbm [shape: bf16[2,128,128], index: 6, kind: input, shape index: {}]
  %s7 = inlined_call_operand.vmem [shape: f32[2,1,128], index: 7, kind: input, shape index: {}]
  %s8 = inlined_call_operand.vmem [shape: f32[2,1,128], index: 8, kind: input, shape index: {}]
  %s9 = inlined_call_operand.vmem [shape: f32[2,1,128], index: 9, kind: input, shape index: {}]
  %s10 = inlined_call_operand.hbm [shape: bf16[2,128,512], index: 10, kind: input, shape index: {}]
  %s11 = inlined_call_operand.vmem [shape: f32[2,1,512], index: 11, kind: input, shape index: {}]
  %s12 = inlined_call_operand.hbm [shape: bf16[2,512,128], index: 12, kind: input, shape index: {}]
  %s13 = inlined_call_operand.vmem [shape: f32[2,1,128], index: 13, kind: input, shape index: {}]
  %s14 = inlined_call_operand.vmem [shape: f32[1,128], index: 14, kind: input, shape index: {}]
  %s15 = inlined_call_operand.vmem [shape: f32[1,128], index: 15, kind: input, shape index: {}]
  %s16 = inlined_call_operand.hbm [shape: f32[128,128], index: 16, kind: input, shape index: {}]
  %s17 = inlined_call_operand.hbm [shape: f32[2,8,128], index: 17, kind: output, shape index: {0}]
  %s18 = inlined_call_operand.vmem [shape: f32[16,1], index: 18, kind: output, shape index: {1}]
  %s19 = inlined_call_operand.vmem [shape: f32[16,1], index: 19, kind: output, shape index: {2}]
  %20 = xla_tuple %s17, %s18, %s19
  %s21 = sld [smem:[#allocation0]]
  $region118: #{tpu_custom_call.1} parent=0
    _
  %s23 = ssub.s32 1, %s21
  %s24 = scalar_select 0, %s23, %s21
  $region1: #{tpu_custom_call.1} parent=0
    #allocation2 [shape = 'u8[1024]{0}', space=vmem, size = 0x400, scoped, tag = 'input window, operand 2, single buffered']
    #allocation3 [shape = 's32[1]{0}', space=sflag, size = 0x4, scoped, tag = 'scoped memory for tpu_custom_call.1']
    #allocation4 [shape = 's32[1]{0}', space=sflag, size = 0x4, scoped, tag = 'scoped memory for tpu_custom_call.1']
    #allocation5 [shape = 'u8[196608]{0}', space=vmem, size = 0x30000, scoped, tag = 'input window, operand 4, single buffered']
    #allocation6 [shape = 's32[1]{0}', space=sflag, size = 0x4, scoped, tag = 'scoped memory for tpu_custom_call.1']
    #allocation7 [shape = 'u8[65536]{0}', space=vmem, size = 0x10000, scoped, tag = 'input window, operand 6, single buffered']
    #allocation8 [shape = 'u8[262144]{0}', space=vmem, size = 0x40000, scoped, tag = 'input window, operand 10, single buffered']
    #allocation9 [shape = 's32[1]{0}', space=sflag, size = 0x4, scoped, tag = 'scoped memory for tpu_custom_call.1']
    #allocation10 [shape = 'u8[262144]{0}', space=vmem, size = 0x40000, scoped, tag = 'input window, operand 12, single buffered']
    #allocation11 [shape = 'u8[65536]{0}', space=vmem, size = 0x10000, scoped, tag = 'input window, operand 16, single buffered']
    #allocation12 [shape = 's32[1]{0}', space=sflag, size = 0x4, scoped, tag = 'scoped memory for tpu_custom_call.1']
    #allocation13 [shape = 'u8[8192]{0}', space=vmem, size = 0x2000, scoped, tag = 'output window, operand 0, single buffered']
    %25 = vsyncpa [#allocation3], 0
    %26 = vsyncpa [#allocation6], 0
    %27 = vsyncpa [#allocation9], 0
    %28 = vsyncpa [#allocation12], 0
    %29 = vsyncpa [#allocation4], 0
    // Predicated region
    $region2: #{tpu_custom_call.1} parent=1 // pred_check
      _
    $region3: #{tpu_custom_call.1} parent=1 // pred_check_branch
      %31 = sbr.rel (0) target = $region5
    $region4: #{tpu_custom_call.1} parent=1 // pred_region
      _
    $region5: #{tpu_custom_call.1} parent=1 // pred_fallthru
      _
    // Predicated region
    $region6: #{tpu_custom_call.1} parent=1 // pred_check
      _
    $region7: #{tpu_custom_call.1} parent=1 // pred_check_branch
      %33 = sbr.rel (0) target = $region9
    $region8: #{tpu_custom_call.1} parent=1 // pred_region
      _
    $region9: #{tpu_custom_call.1} parent=1 // pred_fallthru
      _
    // Predicated region
    $region10: #{tpu_custom_call.1} parent=1 // pred_check
      _
    $region11: #{tpu_custom_call.1} parent=1 // pred_check_branch
      %35 = sbr.rel (0) target = $region13
    $region12: #{tpu_custom_call.1} parent=1 // pred_region
      %s37 = ssub.s32 32, 32
      %38 = vsyncadd [#allocation3], %s37
      %s39 = sshll.u32 [#allocation2], 4
      %s40 = int_to_ptr.vmem [resolvable:$true] %s39
      %45 = dma.hbm_to_vmem [thread:$0]  %s2, 32, %s40, [#allocation3], 16, 16, 1
    $region13: #{tpu_custom_call.1} parent=1 // pred_fallthru
      _
    // Predicated region
    $region14: #{tpu_custom_call.1} parent=1 // pred_check
      _
    $region15: #{tpu_custom_call.1} parent=1 // pred_check_branch
      %47 = sbr.rel (0) target = $region17
    $region16: #{tpu_custom_call.1} parent=1 // pred_region
      _
    $region17: #{tpu_custom_call.1} parent=1 // pred_fallthru
      _
    // Predicated region
    $region18: #{tpu_custom_call.1} parent=1 // pred_check
      _
    $region19: #{tpu_custom_call.1} parent=1 // pred_check_branch
      %49 = sbr.rel (0) target = $region21
    $region20: #{tpu_custom_call.1} parent=1 // pred_region
      %s51 = ssub.s32 6144, 6144
      %52 = vsyncadd [#allocation6], %s51
      %s53 = sshll.u32 [#allocation5], 4
      %s54 = int_to_ptr.vmem [resolvable:$true] %s53
      %59 = dma.hbm_to_vmem [thread:$0]  %s4, 6144, %s54, [#allocation6], 192, 192, 12
    $region21: #{tpu_custom_call.1} parent=1 // pred_fallthru
      _
    // Predicated region
    $region22: #{tpu_custom_call.1} parent=1 // pred_check
      _
    $region23: #{tpu_custom_call.1} parent=1 // pred_check_branch
      %61 = sbr.rel (0) target = $region25
    $region24: #{tpu_custom_call.1} parent=1 // pred_region
      _
    $region25: #{tpu_custom_call.1} parent=1 // pred_fallthru
      _
    // Predicated region
    $region26: #{tpu_custom_call.1} parent=1 // pred_check
      _
    $region27: #{tpu_custom_call.1} parent=1 // pred_check_branch
      %63 = sbr.rel (0) target = $region29
    $region28: #{tpu_custom_call.1} parent=1 // pred_region
      %s65 = ssub.s32 2048, 2048
      %66 = vsyncadd [#allocation6], %s65
      %s67 = sshll.u32 [#allocation7], 4
      %s68 = int_to_ptr.vmem [resolvable:$true] %s67
      %73 = dma.hbm_to_vmem [thread:$0]  %s6, 2048, %s68, [#allocation6], 64, 64, 4
    $region29: #{tpu_custom_call.1} parent=1 // pred_fallthru
      _
    // Predicated region
    $region30: #{tpu_custom_call.1} parent=1 // pred_check
      _
    $region31: #{tpu_custom_call.1} parent=1 // pred_check_branch
      %75 = sbr.rel (0) target = $region33
    $region32: #{tpu_custom_call.1} parent=1 // pred_region
      _
    $region33: #{tpu_custom_call.1} parent=1 // pred_fallthru
      _
    // Predicated region
    $region34: #{tpu_custom_call.1} parent=1 // pred_check
      _
    $region35: #{tpu_custom_call.1} parent=1 // pred_check_branch
      %77 = sbr.rel (0) target = $region37
    $region36: #{tpu_custom_call.1} parent=1 // pred_region
      _
    $region37: #{tpu_custom_call.1} parent=1 // pred_fallthru
      _
    // Predicated region
    $region38: #{tpu_custom_call.1} parent=1 // pred_check
      _
    $region39: #{tpu_custom_call.1} parent=1 // pred_check_branch
      %79 = sbr.rel (0) target = $region41
    $region40: #{tpu_custom_call.1} parent=1 // pred_region
      _
    $region41: #{tpu_custom_call.1} parent=1 // pred_fallthru
      _
    // Predicated region
    $region42: #{tpu_custom_call.1} parent=1 // pred_check
      _
    $region43: #{tpu_custom_call.1} parent=1 // pred_check_branch
      %81 = sbr.rel (0) target = $region45
    $region44: #{tpu_custom_call.1} parent=1 // pred_region
      %s83 = ssub.s32 8192, 8192
      %84 = vsyncadd [#allocation9], %s83
      %s85 = sshll.u32 [#allocation8], 4
      %s86 = int_to_ptr.vmem [resolvable:$true] %s85
      %91 = dma.hbm_to_vmem [thread:$0]  %s10, 8192, %s86, [#allocation9], 256, 256, 16
    $region45: #{tpu_custom_call.1} parent=1 // pred_fallthru
      _
    // Predicated region
    $region46: #{tpu_custom_call.1} parent=1 // pred_check
      _
    $region47: #{tpu_custom_call.1} parent=1 // pred_check_branch
      %93 = sbr.rel (0) target = $region49
    $region48: #{tpu_custom_call.1} parent=1 // pred_region
      _
    $region49: #{tpu_custom_call.1} parent=1 // pred_fallthru
      _
    // Predicated region
    $region50: #{tpu_custom_call.1} parent=1 // pred_check
      _
    $region51: #{tpu_custom_call.1} parent=1 // pred_check_branch
      %95 = sbr.rel (0) target = $region53
    $region52: #{tpu_custom_call.1} parent=1 // pred_region
      %s97 = ssub.s32 8192, 8192
      %98 = vsyncadd [#allocation9], %s97
      %s99 = sshll.u32 [#allocation10], 4
      %s100 = int_to_ptr.vmem [resolvable:$true] %s99
      %105 = dma.hbm_to_vmem [thread:$0]  %s12, 8192, %s100, [#allocation9], 64, 64, 4
    $region53: #{tpu_custom_call.1} parent=1 // pred_fallthru
      _
    // Predicated region
    $region54: #{tpu_custom_call.1} parent=1 // pred_check
      _
    $region55: #{tpu_custom_call.1} parent=1 // pred_check_branch
      %107 = sbr.rel (0) target = $region57
    $region56: #{tpu_custom_call.1} parent=1 // pred_region
      _
    $region57: #{tpu_custom_call.1} parent=1 // pred_fallthru
      _
    // Predicated region
    $region58: #{tpu_custom_call.1} parent=1 // pred_check
      _
    $region59: #{tpu_custom_call.1} parent=1 // pred_check_branch
      %109 = sbr.rel (0) target = $region61
    $region60: #{tpu_custom_call.1} parent=1 // pred_region
      _
    $region61: #{tpu_custom_call.1} parent=1 // pred_fallthru
      _
    // Predicated region
    $region62: #{tpu_custom_call.1} parent=1 // pred_check
      _
    $region63: #{tpu_custom_call.1} parent=1 // pred_check_branch
      %111 = sbr.rel (0) target = $region65
    $region64: #{tpu_custom_call.1} parent=1 // pred_region
      _
    $region65: #{tpu_custom_call.1} parent=1 // pred_fallthru
      _
    // Predicated region
    $region66: #{tpu_custom_call.1} parent=1 // pred_check
      _
    $region67: #{tpu_custom_call.1} parent=1 // pred_check_branch
      %113 = sbr.rel (0) target = $region69
    $region68: #{tpu_custom_call.1} parent=1 // pred_region
      %s115 = ssub.s32 2048, 2048
      %116 = vsyncadd [#allocation12], %s115
      %s117 = sshll.u32 [#allocation11], 4
      %s118 = int_to_ptr.vmem [resolvable:$true] %s117
      %123 = dma.hbm_to_vmem [thread:$0]  %s16, 2048, %s118, [#allocation12], 128, 128, 8
    $region69: #{tpu_custom_call.1} parent=1 // pred_fallthru
      _
    // Predicated region
    $region70: #{tpu_custom_call.1} parent=1 // pred_check
      _
    $region71: #{tpu_custom_call.1} parent=1 // pred_check_branch
      %125 = sbr.rel (0) target = $region73
    $region72: #{tpu_custom_call.1} parent=1 // pred_region
      %126 = dma.done [#allocation3], 32
    $region73: #{tpu_custom_call.1} parent=1 // pred_fallthru
      _
    // Predicated region
    $region74: #{tpu_custom_call.1} parent=1 // pred_check
      _
    $region75: #{tpu_custom_call.1} parent=1 // pred_check_branch
      %128 = sbr.rel (0) target = $region77
    $region76: #{tpu_custom_call.1} parent=1 // pred_region
      %129 = dma.done [#allocation6], 6144
    $region77: #{tpu_custom_call.1} parent=1 // pred_fallthru
      _
    // Predicated region
    $region78: #{tpu_custom_call.1} parent=1 // pred_check
      _
    $region79: #{tpu_custom_call.1} parent=1 // pred_check_branch
      %131 = sbr.rel (0) target = $region81
    $region80: #{tpu_custom_call.1} parent=1 // pred_region
      %132 = dma.done [#allocation6], 2048
    $region81: #{tpu_custom_call.1} parent=1 // pred_fallthru
      _
    // Predicated region
    $region82: #{tpu_custom_call.1} parent=1 // pred_check
      _
    $region83: #{tpu_custom_call.1} parent=1 // pred_check_branch
      %134 = sbr.rel (0) target = $region85
    $region84: #{tpu_custom_call.1} parent=1 // pred_region
      %135 = dma.done [#allocation9], 8192
    $region85: #{tpu_custom_call.1} parent=1 // pred_fallthru
      _
    // Predicated region
    $region86: #{tpu_custom_call.1} parent=1 // pred_check
      _
    $region87: #{tpu_custom_call.1} parent=1 // pred_check_branch
      %137 = sbr.rel (0) target = $region89
    $region88: #{tpu_custom_call.1} parent=1 // pred_region
      %138 = dma.done [#allocation9], 8192
    $region89: #{tpu_custom_call.1} parent=1 // pred_fallthru
      _
    // Predicated region
    $region90: #{tpu_custom_call.1} parent=1 // pred_check
      _
    $region91: #{tpu_custom_call.1} parent=1 // pred_check_branch
      %140 = sbr.rel (0) target = $region93
    $region92: #{tpu_custom_call.1} parent=1 // pred_region
      %141 = dma.done [#allocation12], 2048
    $region93: #{tpu_custom_call.1} parent=1 // pred_fallthru
      _
    %v143 = vld [vmem:[%s0] sm:$0xff]
    %v144 = vld [vmem:[%s0 + $0x8] sm:$0xff]
    %v145 = vlaneseq
    %v146 = vshrl.u32 %v145, 7
    %v147 = vlaneseq
    %v148 = vand.u32 %v147, 127
    %vm149 = vcmp.le.s32.totalorder %v148, %v146
    %v150 = vsel %vm149, 0.0, -1e+30
    %v151 = vld [vmem:[#allocation2] sm:$0x1]
    %v152 = vld [vmem:[%s3] sm:$0x1]
    %153 = vadd.xlane.f32.xlu0 %v143
    %v154 = vpop.xlane.xlu0 %153
    %155 = vadd.xlane.f32.xlu0 %v144
    %v156 = vpop.xlane.xlu0 %155
    %v157 = vrcp.pop 128.0
    %v158 = vmul.f32 %v154, %v157
    %v159 = vmul.f32 %v156, %v157
    %v160 = vsub.f32 %v143, %v158
    %v161 = vsub.f32 %v144, %v159
    %v162 = vmul.f32 %v160, %v160
    %v163 = vmul.f32 %v161, %v161
    %164 = vadd.xlane.f32.xlu0 %v162
    %v165 = vpop.xlane.xlu0 %164
    %166 = vadd.xlane.f32.xlu0 %v163
    %v167 = vpop.xlane.xlu0 %166
    %v168 = vmul.f32 %v165, %v157
    %v169 = vmul.f32 %v167, %v157
    %v170 = vadd.f32 %v168, 1e-05
    %v171 = vadd.f32 %v169, 1e-05
    %v172 = vrsqrt.pop %v170
    %v173 = vrsqrt.pop %v171
    %v174 = vmul.f32 %v160, %v172
    %v175 = vmul.f32 %v161, %v173
    %v177 = vlaneseq
    %v178 = vshrl.u32 %v177, 7
    %v179 = vsub.s32 0, %v178
    %v180 = vrot.slane %v151, %v179
    %v182 = vmul.f32 %v174, %v180
    %v183 = vmul.f32 %v175, %v180
    %v185 = vlaneseq
    %v186 = vshrl.u32 %v185, 7
    %v187 = vsub.s32 0, %v186
    %v188 = vrot.slane %v152, %v187
    %v190 = vadd.f32 %v182, %v188
    %v191 = vadd.f32 %v183, %v188
    %v192 = vpack.c.bf16 %v191, %v190
    %v193 = vld [vmem:[#allocation5] sm:$0xff]
    %v194 = vld [vmem:[#allocation5 + $0x8] sm:$0xf]
    %v195 = vld [vmem:[#allocation5 + $0xc] sm:$0xff]
    %v196 = vld [vmem:[#allocation5 + $0x14] sm:$0xf]
    %v197 = vld [vmem:[#allocation5 + $0x18] sm:$0xff]
    %v198 = vld [vmem:[#allocation5 + $0x20] sm:$0xf]
    %v199 = vld [vmem:[#allocation5 + $0x24] sm:$0xff]
    %v200 = vld [vmem:[#allocation5 + $0x2c] sm:$0xf]
    %v201 = vld [vmem:[#allocation5 + $0x30] sm:$0xff]
    %v202 = vld [vmem:[#allocation5 + $0x38] sm:$0xf]
    %v203 = vld [vmem:[#allocation5 + $0x3c] sm:$0xff]
    %v204 = vld [vmem:[#allocation5 + $0x44] sm:$0xf]
    %v205 = vld [vmem:[#allocation5 + $0x48] sm:$0xff]
    %v206 = vld [vmem:[#allocation5 + $0x50] sm:$0xf]
    %v207 = vld [vmem:[#allocation5 + $0x54] sm:$0xff]
    %v208 = vld [vmem:[#allocation5 + $0x5c] sm:$0xf]
    %v209 = vld [vmem:[#allocation5 + $0x60] sm:$0xff]
    %v210 = vld [vmem:[#allocation5 + $0x68] sm:$0xf]
    %v211 = vld [vmem:[#allocation5 + $0x6c] sm:$0xff]
    %v212 = vld [vmem:[#allocation5 + $0x74] sm:$0xf]
    %v213 = vld [vmem:[#allocation5 + $0x78] sm:$0xff]
    %v214 = vld [vmem:[#allocation5 + $0x80] sm:$0xf]
    %v215 = vld [vmem:[#allocation5 + $0x84] sm:$0xff]
    %v216 = vld [vmem:[#allocation5 + $0x8c] sm:$0xf]
    %v217 = vld [vmem:[#allocation5 + $0x90] sm:$0xff]
    %v218 = vld [vmem:[#allocation5 + $0x98] sm:$0xf]
    %v219 = vld [vmem:[#allocation5 + $0x9c] sm:$0xff]
    %v220 = vld [vmem:[#allocation5 + $0xa4] sm:$0xf]
    %v221 = vld [vmem:[#allocation5 + $0xa8] sm:$0xff]
    %v222 = vld [vmem:[#allocation5 + $0xb0] sm:$0xf]
    %v223 = vld [vmem:[#allocation5 + $0xb4] sm:$0xff]
    %v224 = vld [vmem:[#allocation5 + $0xbc] sm:$0xf]
    %v225 = vld [vmem:[%s5] sm:$0x7]
    %v227 = vlaneseq
    %v228 = vshrl.u32 %v227, 7
    %v229 = vsub.s32 0, %v228
    %v230 = vrot.slane %v225, %v229
    %v231 = vlaneseq
    %v232 = vshrl.u32 %v231, 7
    %v233 = vsub.s32 1, %v232
    %v234 = vrot.slane %v225, %v233
    %v235 = vlaneseq
    %v236 = vshrl.u32 %v235, 7
    %v237 = vsub.s32 2, %v236
    %v238 = vrot.slane %v225, %v237
    %v274 = vunpack.c.l.b16 %v193
    %v275 = vunpack.c.h.b16 %v193
    %v276 = vunpack.c.l.b16 %v194
    %v277 = vunpack.c.l.b16 %v195
    %v278 = vunpack.c.h.b16 %v195
    %v279 = vunpack.c.l.b16 %v196
    %v280 = vunpack.c.l.b16 %v197
    %v281 = vunpack.c.h.b16 %v197
    %v282 = vunpack.c.l.b16 %v198
    %v283 = vunpack.c.l.b16 %v199
    %v284 = vunpack.c.h.b16 %v199
    %v285 = vunpack.c.l.b16 %v200
    %v286 = vunpack.c.l.b16 %v201
    %v287 = vunpack.c.h.b16 %v201
    %v288 = vunpack.c.l.b16 %v202
    %v289 = vunpack.c.l.b16 %v203
    %v290 = vunpack.c.h.b16 %v203
    %v291 = vunpack.c.l.b16 %v204
    %v292 = vunpack.c.l.b16 %v205
    %v293 = vunpack.c.h.b16 %v205
    %v294 = vunpack.c.l.b16 %v206
    %v295 = vunpack.c.l.b16 %v207
    %v296 = vunpack.c.h.b16 %v207
    %v297 = vunpack.c.l.b16 %v208
    %v298 = vunpack.c.l.b16 %v209
    %v299 = vunpack.c.h.b16 %v209
    %v300 = vunpack.c.l.b16 %v210
    %v301 = vunpack.c.l.b16 %v211
    %v302 = vunpack.c.h.b16 %v211
    %v303 = vunpack.c.l.b16 %v212
    %v304 = vunpack.c.l.b16 %v213
    %v305 = vunpack.c.h.b16 %v213
    %v306 = vunpack.c.l.b16 %v214
    %v307 = vunpack.c.l.b16 %v215
    %v308 = vunpack.c.h.b16 %v215
    %v309 = vunpack.c.l.b16 %v216
    %v310 = vunpack.c.l.b16 %v217
    %v311 = vunpack.c.h.b16 %v217
    %v312 = vunpack.c.l.b16 %v218
    %v313 = vunpack.c.l.b16 %v219
    %v314 = vunpack.c.h.b16 %v219
    %v315 = vunpack.c.l.b16 %v220
    %v316 = vunpack.c.l.b16 %v221
    %v317 = vunpack.c.h.b16 %v221
    %v318 = vunpack.c.l.b16 %v222
    %v319 = vunpack.c.l.b16 %v223
    %v320 = vunpack.c.h.b16 %v223
    %v321 = vunpack.c.l.b16 %v224
    %v322 = vpack.c.b16 %v277, %v274
    %v323 = vpack.c.b16 %v278, %v275
    %v324 = vpack.c.b16 %v279, %v276
    %v325 = vpack.c.b16 %v283, %v280
    %v326 = vpack.c.b16 %v284, %v281
    %v327 = vpack.c.b16 %v285, %v282
    %v328 = vpack.c.b16 %v289, %v286
    %v329 = vpack.c.b16 %v290, %v287
    %v330 = vpack.c.b16 %v291, %v288
    %v331 = vpack.c.b16 %v295, %v292
    %v332 = vpack.c.b16 %v296, %v293
    %v333 = vpack.c.b16 %v297, %v294
    %v334 = vpack.c.b16 %v301, %v298
    %v335 = vpack.c.b16 %v302, %v299
    %v336 = vpack.c.b16 %v303, %v300
    %v337 = vpack.c.b16 %v307, %v304
    %v338 = vpack.c.b16 %v308, %v305
    %v339 = vpack.c.b16 %v309, %v306
    %v340 = vpack.c.b16 %v313, %v310
    %v341 = vpack.c.b16 %v314, %v311
    %v342 = vpack.c.b16 %v315, %v312
    %v343 = vpack.c.b16 %v319, %v316
    %v344 = vpack.c.b16 %v320, %v317
    %v345 = vpack.c.b16 %v321, %v318
    %370 = vmatprep.subr.bf16.mxu0 %v323
    %371 = vmatpush1.bf16.msra.mxu0 %v322
    %372 = vmatprep.subr.bf16.mxu0 %v326
    %373 = vmatpush1.bf16.msra.mxu0 %v325
    %374 = vmatprep.subr.bf16.mxu0 %v329
    %375 = vmatpush1.bf16.msra.mxu0 %v328
    %376 = vmatprep.subr.bf16.mxu0 %v332
    %377 = vmatpush1.bf16.msra.mxu0 %v331
    %378 = vmatprep.subr.bf16.mxu0 %v335
    %379 = vmatpush1.bf16.msra.mxu0 %v334
    %380 = vmatprep.subr.bf16.mxu0 %v338
    %381 = vmatpush1.bf16.msra.mxu0 %v337
    %382 = vmatprep.subr.bf16.mxu0 %v341
    %383 = vmatpush1.bf16.msra.mxu0 %v340
    %384 = vmatprep.subr.bf16.mxu0 %v344
    %385 = vmatpush1.bf16.msra.mxu0 %v343
    %386 = vmatprep.subr.bf16.mxu0 0
    %387 = vmatpush1.bf16.msra.mxu0 0
    %388 = vmatprep.subr.bf16.mxu0 0
    %389 = vmatpush1.bf16.msra.mxu0 0
    %390 = vmatprep.subr.bf16.mxu0 0
    %391 = vmatpush1.bf16.msra.mxu0 0
    %392 = vmatprep.subr.bf16.mxu0 0
    %393 = vmatpush1.bf16.msra.mxu0 0
    %394 = vmatprep.subr.bf16.mxu0 0
    %395 = vmatpush1.bf16.msra.mxu0 0
    %396 = vmatprep.subr.bf16.mxu0 0
    %397 = vmatpush1.bf16.msra.mxu0 0
    %398 = vmatprep.subr.bf16.mxu0 0
    %399 = vmatpush1.bf16.msra.mxu0 0
    %400 = vmatprep.subr.bf16.mxu0 0
    %401 = vmatpush1.bf16.msra.mxu0 0
    %402 = vmatprep.mubr.bf16.mxu0 0
    %403 = vmatmul.mubr.bf16.gmra.mrb[0].mxu0 %v192
    %v404 = vpop.f32.mrb[0].mxu0
    %v405 = vadd.f32 %v230, %v404
    %v406 = vpop.f32.mrb[0].mxu0
    %v407 = vadd.f32 %v234, %v406
    %v408 = vpop.f32.mrb[0].mxu0
    %v409 = vadd.f32 %v230, %v408
    %v410 = vpop.f32.mrb[0].mxu0
    %v411 = vadd.f32 %v234, %v410
    %412 = vdwg.mxu0
    %413 = vmatprep.subr.bf16.mxu0 0
    %414 = vmatpush1.bf16.msra.mxu0 %v324
    %415 = vmatprep.subr.bf16.mxu0 0
    %416 = vmatpush1.bf16.msra.mxu0 %v327
    %417 = vmatprep.subr.bf16.mxu0 0
    %418 = vmatpush1.bf16.msra.mxu0 %v330
    %419 = vmatprep.subr.bf16.mxu0 0
    %420 = vmatpush1.bf16.msra.mxu0 %v333
    %421 = vmatprep.subr.bf16.mxu0 0
    %422 = vmatpush1.bf16.msra.mxu0 %v336
    %423 = vmatprep.subr.bf16.mxu0 0
    %424 = vmatpush1.bf16.msra.mxu0 %v339
    %425 = vmatprep.subr.bf16.mxu0 0
    %426 = vmatpush1.bf16.msra.mxu0 %v342
    %427 = vmatprep.subr.bf16.mxu0 0
    %428 = vmatpush1.bf16.msra.mxu0 %v345
    %429 = vmatprep.subr.bf16.mxu0 0
    %430 = vmatpush1.bf16.msra.mxu0 0
    %431 = vmatprep.subr.bf16.mxu0 0
    %432 = vmatpush1.bf16.msra.mxu0 0
    %433 = vmatprep.subr.bf16.mxu0 0
    %434 = vmatpush1.bf16.msra.mxu0 0
    %435 = vmatprep.subr.bf16.mxu0 0
    %436 = vmatpush1.bf16.msra.mxu0 0
    %437 = vmatprep.subr.bf16.mxu0 0
    %438 = vmatpush1.bf16.msra.mxu0 0
    %439 = vmatprep.subr.bf16.mxu0 0
    %440 = vmatpush1.bf16.msra.mxu0 0
    %441 = vmatprep.subr.bf16.mxu0 0
    %442 = vmatpush1.bf16.msra.mxu0 0
    %443 = vmatprep.subr.bf16.mxu0 0
    %444 = vmatpush1.bf16.msra.mxu0 0
    %445 = vmatprep.mubr.bf16.mxu0 0
    %446 = vmatmul.mubr.bf16.gmra.mrb[0].mxu0 %v192
    %v447 = vpop.f32.mrb[0].mxu0
    %v448 = vadd.f32 %v238, %v447
    %v449 = vpop.f32.mrb[0].mxu0
    %v450 = vpop.f32.mrb[0].mxu0
    %v451 = vadd.f32 %v238, %v450
    %v452 = vpop.f32.mrb[0].mxu0
    %453 = vdwg.mxu0
    %v454 = vpack.c.bf16 %v405, %v405
    %v455 = vpack.c.bf16 %v409, %v409
    %v456 = vpack.c.bf16 %v407, %v407
    %v457 = vpack.c.bf16 %v411, %v411
    %vm458 = vcmask 523264
    %v460 = vsel %vm458, %v454, 0
    %v463 = vsel %vm458, %v456, 0
    %465 = vmatprep.subr.bf16.mxu0 0
    %466 = vmatpush1.bf16.xpose.msra.mxu0 %v463
    %467 = vmatprep.subr.bf16.mxu0 0
    %468 = vmatpush1.bf16.xpose.msra.mxu0 0
    %469 = vmatprep.subr.bf16.mxu0 0
    %470 = vmatpush1.bf16.xpose.msra.mxu0 0
    %471 = vmatprep.subr.bf16.mxu0 0
    %472 = vmatpush1.bf16.xpose.msra.mxu0 0
    %473 = vmatprep.subr.bf16.mxu0 0
    %474 = vmatpush1.bf16.xpose.msra.mxu0 0
    %475 = vmatprep.subr.bf16.mxu0 0
    %476 = vmatpush1.bf16.xpose.msra.mxu0 0
    %477 = vmatprep.subr.bf16.mxu0 0
    %478 = vmatpush1.bf16.xpose.msra.mxu0 0
    %479 = vmatprep.subr.bf16.mxu0 0
    %480 = vmatpush1.bf16.xpose.msra.mxu0 0
    %481 = vmatprep.subr.bf16.mxu0 0
    %482 = vmatpush1.bf16.xpose.msra.mxu0 0
    %483 = vmatprep.subr.bf16.mxu0 0
    %484 = vmatpush1.bf16.xpose.msra.mxu0 0
    %485 = vmatprep.subr.bf16.mxu0 0
    %486 = vmatpush1.bf16.xpose.msra.mxu0 0
    %487 = vmatprep.subr.bf16.mxu0 0
    %488 = vmatpush1.bf16.xpose.msra.mxu0 0
    %489 = vmatprep.subr.bf16.mxu0 0
    %490 = vmatpush1.bf16.xpose.msra.mxu0 0
    %491 = vmatprep.subr.bf16.mxu0 0
    %492 = vmatpush1.bf16.xpose.msra.mxu0 0
    %493 = vmatprep.subr.bf16.mxu0 0
    %494 = vmatpush1.bf16.xpose.msra.mxu0 0
    %495 = vmatprep.subr.bf16.mxu0 0
    %496 = vmatpush1.bf16.xpose.msra.mxu0 0
    %497 = vmatprep.mubr.bf16.mxu0 0
    %498 = vmatmul.mubr.bf16.gmra.mrb[0].mxu0 %v460
    %v499 = vpop.f32.mrb[0].mxu0
    %v500 = vadd.f32 0.0, %v499
    %v501 = vpop.f32.mrb[0].mxu0
    %v502 = vpop.f32.mrb[0].mxu0
    %v503 = vpop.f32.mrb[0].mxu0
    %504 = vdwg.mxu0
    %v506 = vsel %vm458, %v455, 0
    %v509 = vsel %vm458, %v457, 0
    %511 = vmatprep.subr.bf16.mxu0 0
    %512 = vmatpush1.bf16.xpose.msra.mxu0 %v509
    %513 = vmatprep.subr.bf16.mxu0 0
    %514 = vmatpush1.bf16.xpose.msra.mxu0 0
    %515 = vmatprep.subr.bf16.mxu0 0
    %516 = vmatpush1.bf16.xpose.msra.mxu0 0
    %517 = vmatprep.subr.bf16.mxu0 0
    %518 = vmatpush1.bf16.xpose.msra.mxu0 0
    %519 = vmatprep.subr.bf16.mxu0 0
    %520 = vmatpush1.bf16.xpose.msra.mxu0 0
    %521 = vmatprep.subr.bf16.mxu0 0
    %522 = vmatpush1.bf16.xpose.msra.mxu0 0
    %523 = vmatprep.subr.bf16.mxu0 0
    %524 = vmatpush1.bf16.xpose.msra.mxu0 0
    %525 = vmatprep.subr.bf16.mxu0 0
    %526 = vmatpush1.bf16.xpose.msra.mxu0 0
    %527 = vmatprep.subr.bf16.mxu0 0
    %528 = vmatpush1.bf16.xpose.msra.mxu0 0
    %529 = vmatprep.subr.bf16.mxu0 0
    %530 = vmatpush1.bf16.xpose.msra.mxu0 0
    %531 = vmatprep.subr.bf16.mxu0 0
    %532 = vmatpush1.bf16.xpose.msra.mxu0 0
    %533 = vmatprep.subr.bf16.mxu0 0
    %534 = vmatpush1.bf16.xpose.msra.mxu0 0
    %535 = vmatprep.subr.bf16.mxu0 0
    %536 = vmatpush1.bf16.xpose.msra.mxu0 0
    %537 = vmatprep.subr.bf16.mxu0 0
    %538 = vmatpush1.bf16.xpose.msra.mxu0 0
    %539 = vmatprep.subr.bf16.mxu0 0
    %540 = vmatpush1.bf16.xpose.msra.mxu0 0
    %541 = vmatprep.subr.bf16.mxu0 0
    %542 = vmatpush1.bf16.xpose.msra.mxu0 0
    %543 = vmatprep.mubr.bf16.mxu0 0
    %544 = vmatmul.mubr.bf16.gmra.mrb[0].mxu0 %v506
    %v545 = vpop.f32.mrb[0].mxu0
    %v546 = vadd.f32 0.0, %v545
    %v547 = vpop.f32.mrb[0].mxu0
    %v548 = vpop.f32.mrb[0].mxu0
    %v549 = vpop.f32.mrb[0].mxu0
    %550 = vdwg.mxu0
    %v551 = vmul.f32 %v500, 0.125
    %v552 = vmul.f32 %v546, 0.125
    %v553 = vadd.f32 %v551, %v150
    %v554 = vadd.f32 %v552, %v150
    %vm555 = vcmask 64512
    %v556 = vsel %vm555, %v553, -inf
    %557 = vmax.xlane.f32.xlu0 %v556
    %v558 = vpop.xlane.xlu0 %557
    %v559 = vsel %vm555, %v554, -inf
    %560 = vmax.xlane.f32.xlu0 %v559
    %v561 = vpop.xlane.xlu0 %560
    %v562 = vsub.f32 %v553, %v558
    %v563 = vsub.f32 %v554, %v561
    %v564 = vmul.f32 %v562, 1.442695
    %v565 = vpow.pop %v564
    %v566 = vmul.f32 %v563, 1.442695
    %v567 = vpow.pop %v566
    %v568 = vsel %vm555, %v565, 0.0
    %569 = vadd.xlane.f32.xlu0 %v568
    %v570 = vpop.xlane.xlu0 %569
    %v571 = vsel %vm555, %v567, 0.0
    %572 = vadd.xlane.f32.xlu0 %v571
    %v573 = vpop.xlane.xlu0 %572
    %v574 = vrcp.pop %v570
    %v575 = vrcp.pop %v573
    %v576 = vmul.f32 %v565, %v574
    %v577 = vmul.f32 %v567, %v575
    %v578 = vpack.c.bf16 %v576, %v576
    %v579 = vpack.c.bf16 %v577, %v577
    %v580 = vpack.c.bf16 %v448, %v448
    %v581 = vpack.c.bf16 %v451, %v451
    %v583 = vsel %vm555, %v578, 0
    %vm585 = vcmask 1043456
    %v587 = vsel %vm585, %v580, 0
    %589 = vmatprep.subr.bf16.mxu0 0
    %590 = vmatpush1.bf16.msra.mxu0 %v587
    %591 = vmatprep.subr.bf16.mxu0 0
    %592 = vmatpush1.bf16.msra.mxu0 0
    %593 = vmatprep.subr.bf16.mxu0 0
    %594 = vmatpush1.bf16.msra.mxu0 0
    %595 = vmatprep.subr.bf16.mxu0 0
    %596 = vmatpush1.bf16.msra.mxu0 0
    %597 = vmatprep.subr.bf16.mxu0 0
    %598 = vmatpush1.bf16.msra.mxu0 0
    %599 = vmatprep.subr.bf16.mxu0 0
    %600 = vmatpush1.bf16.msra.mxu0 0
    %601 = vmatprep.subr.bf16.mxu0 0
    %602 = vmatpush1.bf16.msra.mxu0 0
    %603 = vmatprep.subr.bf16.mxu0 0
    %604 = vmatpush1.bf16.msra.mxu0 0
    %605 = vmatprep.subr.bf16.mxu0 0
    %606 = vmatpush1.bf16.msra.mxu0 0
    %607 = vmatprep.subr.bf16.mxu0 0
    %608 = vmatpush1.bf16.msra.mxu0 0
    %609 = vmatprep.subr.bf16.mxu0 0
    %610 = vmatpush1.bf16.msra.mxu0 0
    %611 = vmatprep.subr.bf16.mxu0 0
    %612 = vmatpush1.bf16.msra.mxu0 0
    %613 = vmatprep.subr.bf16.mxu0 0
    %614 = vmatpush1.bf16.msra.mxu0 0
    %615 = vmatprep.subr.bf16.mxu0 0
    %616 = vmatpush1.bf16.msra.mxu0 0
    %617 = vmatprep.subr.bf16.mxu0 0
    %618 = vmatpush1.bf16.msra.mxu0 0
    %619 = vmatprep.subr.bf16.mxu0 0
    %620 = vmatpush1.bf16.msra.mxu0 0
    %621 = vmatprep.mubr.bf16.mxu0 0
    %622 = vmatmul.mubr.bf16.gmra.mrb[0].mxu0 %v583
    %v623 = vpop.f32.mrb[0].mxu0
    %v624 = vadd.f32 0.0, %v623
    %v625 = vpop.f32.mrb[0].mxu0
    %v626 = vpop.f32.mrb[0].mxu0
    %v627 = vpop.f32.mrb[0].mxu0
    %628 = vdwg.mxu0
    %v630 = vsel %vm555, %v579, 0
    %v633 = vsel %vm585, %v581, 0
    %635 = vmatprep.subr.bf16.mxu0 0
    %636 = vmatpush1.bf16.msra.mxu0 %v633
    %637 = vmatprep.subr.bf16.mxu0 0
    %638 = vmatpush1.bf16.msra.mxu0 0
    %639 = vmatprep.subr.bf16.mxu0 0
    %640 = vmatpush1.bf16.msra.mxu0 0
    %641 = vmatprep.subr.bf16.mxu0 0
    %642 = vmatpush1.bf16.msra.mxu0 0
    %643 = vmatprep.subr.bf16.mxu0 0
    %644 = vmatpush1.bf16.msra.mxu0 0
    %645 = vmatprep.subr.bf16.mxu0 0
    %646 = vmatpush1.bf16.msra.mxu0 0
    %647 = vmatprep.subr.bf16.mxu0 0
    %648 = vmatpush1.bf16.msra.mxu0 0
    %649 = vmatprep.subr.bf16.mxu0 0
    %650 = vmatpush1.bf16.msra.mxu0 0
    %651 = vmatprep.subr.bf16.mxu0 0
    %652 = vmatpush1.bf16.msra.mxu0 0
    %653 = vmatprep.subr.bf16.mxu0 0
    %654 = vmatpush1.bf16.msra.mxu0 0
    %655 = vmatprep.subr.bf16.mxu0 0
    %656 = vmatpush1.bf16.msra.mxu0 0
    %657 = vmatprep.subr.bf16.mxu0 0
    %658 = vmatpush1.bf16.msra.mxu0 0
    %659 = vmatprep.subr.bf16.mxu0 0
    %660 = vmatpush1.bf16.msra.mxu0 0
    %661 = vmatprep.subr.bf16.mxu0 0
    %662 = vmatpush1.bf16.msra.mxu0 0
    %663 = vmatprep.subr.bf16.mxu0 0
    %664 = vmatpush1.bf16.msra.mxu0 0
    %665 = vmatprep.subr.bf16.mxu0 0
    %666 = vmatpush1.bf16.msra.mxu0 0
    %667 = vmatprep.mubr.bf16.mxu0 0
    %668 = vmatmul.mubr.bf16.gmra.mrb[0].mxu0 %v630
    %v669 = vpop.f32.mrb[0].mxu0
    %v670 = vadd.f32 0.0, %v669
    %v671 = vpop.f32.mrb[0].mxu0
    %v672 = vpop.f32.mrb[0].mxu0
    %v673 = vpop.f32.mrb[0].mxu0
    %674 = vdwg.mxu0
    %676 = vrot.lane.b32.xlu0 %v454, 64
    %v677 = vpop.permute.xlu0 %676
    %679 = vrot.lane.b32.xlu0 %v456, 64
    %v680 = vpop.permute.xlu0 %679
    %v682 = vsel %vm458, %v677, 0
    %v685 = vsel %vm458, %v680, 0
    %687 = vmatprep.subr.bf16.mxu0 0
    %688 = vmatpush1.bf16.xpose.msra.mxu0 %v685
    %689 = vmatprep.subr.bf16.mxu0 0
    %690 = vmatpush1.bf16.xpose.msra.mxu0 0
    %691 = vmatprep.subr.bf16.mxu0 0
    %692 = vmatpush1.bf16.xpose.msra.mxu0 0
    %693 = vmatprep.subr.bf16.mxu0 0
    %694 = vmatpush1.bf16.xpose.msra.mxu0 0
    %695 = vmatprep.subr.bf16.mxu0 0
    %696 = vmatpush1.bf16.xpose.msra.mxu0 0
    %697 = vmatprep.subr.bf16.mxu0 0
    %698 = vmatpush1.bf16.xpose.msra.mxu0 0
    %699 = vmatprep.subr.bf16.mxu0 0
    %700 = vmatpush1.bf16.xpose.msra.mxu0 0
    %701 = vmatprep.subr.bf16.mxu0 0
    %702 = vmatpush1.bf16.xpose.msra.mxu0 0
    %703 = vmatprep.subr.bf16.mxu0 0
    %704 = vmatpush1.bf16.xpose.msra.mxu0 0
    %705 = vmatprep.subr.bf16.mxu0 0
    %706 = vmatpush1.bf16.xpose.msra.mxu0 0
    %707 = vmatprep.subr.bf16.mxu0 0
    %708 = vmatpush1.bf16.xpose.msra.mxu0 0
    %709 = vmatprep.subr.bf16.mxu0 0
    %710 = vmatpush1.bf16.xpose.msra.mxu0 0
    %711 = vmatprep.subr.bf16.mxu0 0
    %712 = vmatpush1.bf16.xpose.msra.mxu0 0
    %713 = vmatprep.subr.bf16.mxu0 0
    %714 = vmatpush1.bf16.xpose.msra.mxu0 0
    %715 = vmatprep.subr.bf16.mxu0 0
    %716 = vmatpush1.bf16.xpose.msra.mxu0 0
    %717 = vmatprep.subr.bf16.mxu0 0
    %718 = vmatpush1.bf16.xpose.msra.mxu0 0
    %719 = vmatprep.mubr.bf16.mxu0 0
    %720 = vmatmul.mubr.bf16.gmra.mrb[0].mxu0 %v682
    %v721 = vpop.f32.mrb[0].mxu0
    %v722 = vadd.f32 0.0, %v721
    %v723 = vpop.f32.mrb[0].mxu0
    %v724 = vpop.f32.mrb[0].mxu0
    %v725 = vpop.f32.mrb[0].mxu0
    %726 = vdwg.mxu0
    %728 = vrot.lane.b32.xlu0 %v455, 64
    %v729 = vpop.permute.xlu0 %728
    %731 = vrot.lane.b32.xlu0 %v457, 64
    %v732 = vpop.permute.xlu0 %731
    %v734 = vsel %vm458, %v729, 0
    %v737 = vsel %vm458, %v732, 0
    %739 = vmatprep.subr.bf16.mxu0 0
    %740 = vmatpush1.bf16.xpose.msra.mxu0 %v737
    %741 = vmatprep.subr.bf16.mxu0 0
    %742 = vmatpush1.bf16.xpose.msra.mxu0 0
    %743 = vmatprep.subr.bf16.mxu0 0
    %744 = vmatpush1.bf16.xpose.msra.mxu0 0
    %745 = vmatprep.subr.bf16.mxu0 0
    %746 = vmatpush1.bf16.xpose.msra.mxu0 0
    %747 = vmatprep.subr.bf16.mxu0 0
    %748 = vmatpush1.bf16.xpose.msra.mxu0 0
    %749 = vmatprep.subr.bf16.mxu0 0
    %750 = vmatpush1.bf16.xpose.msra.mxu0 0
    %751 = vmatprep.subr.bf16.mxu0 0
    %752 = vmatpush1.bf16.xpose.msra.mxu0 0
    %753 = vmatprep.subr.bf16.mxu0 0
    %754 = vmatpush1.bf16.xpose.msra.mxu0 0
    %755 = vmatprep.subr.bf16.mxu0 0
    %756 = vmatpush1.bf16.xpose.msra.mxu0 0
    %757 = vmatprep.subr.bf16.mxu0 0
    %758 = vmatpush1.bf16.xpose.msra.mxu0 0
    %759 = vmatprep.subr.bf16.mxu0 0
    %760 = vmatpush1.bf16.xpose.msra.mxu0 0
    %761 = vmatprep.subr.bf16.mxu0 0
    %762 = vmatpush1.bf16.xpose.msra.mxu0 0
    %763 = vmatprep.subr.bf16.mxu0 0
    %764 = vmatpush1.bf16.xpose.msra.mxu0 0
    %765 = vmatprep.subr.bf16.mxu0 0
    %766 = vmatpush1.bf16.xpose.msra.mxu0 0
    %767 = vmatprep.subr.bf16.mxu0 0
    %768 = vmatpush1.bf16.xpose.msra.mxu0 0
    %769 = vmatprep.subr.bf16.mxu0 0
    %770 = vmatpush1.bf16.xpose.msra.mxu0 0
    %771 = vmatprep.mubr.bf16.mxu0 0
    %772 = vmatmul.mubr.bf16.gmra.mrb[0].mxu0 %v734
    %v773 = vpop.f32.mrb[0].mxu0
    %v774 = vadd.f32 0.0, %v773
    %v775 = vpop.f32.mrb[0].mxu0
    %v776 = vpop.f32.mrb[0].mxu0
    %v777 = vpop.f32.mrb[0].mxu0
    %778 = vdwg.mxu0
    %v779 = vmul.f32 %v722, 0.125
    %v780 = vmul.f32 %v774, 0.125
    %v781 = vadd.f32 %v779, %v150
    %v782 = vadd.f32 %v780, %v150
    %v783 = vsel %vm555, %v781, -inf
    %784 = vmax.xlane.f32.xlu0 %v783
    %v785 = vpop.xlane.xlu0 %784
    %v786 = vsel %vm555, %v782, -inf
    %787 = vmax.xlane.f32.xlu0 %v786
    %v788 = vpop.xlane.xlu0 %787
    %v789 = vsub.f32 %v781, %v785
    %v790 = vsub.f32 %v782, %v788
    %v791 = vmul.f32 %v789, 1.442695
    %v792 = vpow.pop %v791
    %v793 = vmul.f32 %v790, 1.442695
    %v794 = vpow.pop %v793
    %v795 = vsel %vm555, %v792, 0.0
    %796 = vadd.xlane.f32.xlu0 %v795
    %v797 = vpop.xlane.xlu0 %796
    %v798 = vsel %vm555, %v794, 0.0
    %799 = vadd.xlane.f32.xlu0 %v798
    %v800 = vpop.xlane.xlu0 %799
    %v801 = vrcp.pop %v797
    %v802 = vrcp.pop %v800
    %v803 = vmul.f32 %v792, %v801
    %v804 = vmul.f32 %v794, %v802
    %v805 = vpack.c.bf16 %v803, %v803
    %v806 = vpack.c.bf16 %v804, %v804
    %808 = vrot.lane.b32.xlu0 %v580, 64
    %v809 = vpop.permute.xlu0 %808
    %v811 = vsel %vm555, %v805, 0
    %v814 = vsel %vm585, %v809, 0
    %816 = vmatprep.subr.bf16.mxu0 0
    %817 = vmatpush1.bf16.msra.mxu0 %v814
    %818 = vmatprep.subr.bf16.mxu0 0
    %819 = vmatpush1.bf16.msra.mxu0 0
    %820 = vmatprep.subr.bf16.mxu0 0
    %821 = vmatpush1.bf16.msra.mxu0 0
    %822 = vmatprep.subr.bf16.mxu0 0
    %823 = vmatpush1.bf16.msra.mxu0 0
    %824 = vmatprep.subr.bf16.mxu0 0
    %825 = vmatpush1.bf16.msra.mxu0 0
    %826 = vmatprep.subr.bf16.mxu0 0
    %827 = vmatpush1.bf16.msra.mxu0 0
    %828 = vmatprep.subr.bf16.mxu0 0
    %829 = vmatpush1.bf16.msra.mxu0 0
    %830 = vmatprep.subr.bf16.mxu0 0
    %831 = vmatpush1.bf16.msra.mxu0 0
    %832 = vmatprep.subr.bf16.mxu0 0
    %833 = vmatpush1.bf16.msra.mxu0 0
    %834 = vmatprep.subr.bf16.mxu0 0
    %835 = vmatpush1.bf16.msra.mxu0 0
    %836 = vmatprep.subr.bf16.mxu0 0
    %837 = vmatpush1.bf16.msra.mxu0 0
    %838 = vmatprep.subr.bf16.mxu0 0
    %839 = vmatpush1.bf16.msra.mxu0 0
    %840 = vmatprep.subr.bf16.mxu0 0
    %841 = vmatpush1.bf16.msra.mxu0 0
    %842 = vmatprep.subr.bf16.mxu0 0
    %843 = vmatpush1.bf16.msra.mxu0 0
    %844 = vmatprep.subr.bf16.mxu0 0
    %845 = vmatpush1.bf16.msra.mxu0 0
    %846 = vmatprep.subr.bf16.mxu0 0
    %847 = vmatpush1.bf16.msra.mxu0 0
    %848 = vmatprep.mubr.bf16.mxu0 0
    %849 = vmatmul.mubr.bf16.gmra.mrb[0].mxu0 %v811
    %v850 = vpop.f32.mrb[0].mxu0
    %v851 = vadd.f32 0.0, %v850
    %v852 = vpop.f32.mrb[0].mxu0
    %v853 = vpop.f32.mrb[0].mxu0
    %v854 = vpop.f32.mrb[0].mxu0
    %855 = vdwg.mxu0
    %857 = vrot.lane.b32.xlu0 %v581, 64
    %v858 = vpop.permute.xlu0 %857
    %v860 = vsel %vm555, %v806, 0
    %v863 = vsel %vm585, %v858, 0
    %865 = vmatprep.subr.bf16.mxu0 0
    %866 = vmatpush1.bf16.msra.mxu0 %v863
    %867 = vmatprep.subr.bf16.mxu0 0
    %868 = vmatpush1.bf16.msra.mxu0 0
    %869 = vmatprep.subr.bf16.mxu0 0
    %870 = vmatpush1.bf16.msra.mxu0 0
    %871 = vmatprep.subr.bf16.mxu0 0
    %872 = vmatpush1.bf16.msra.mxu0 0
    %873 = vmatprep.subr.bf16.mxu0 0
    %874 = vmatpush1.bf16.msra.mxu0 0
    %875 = vmatprep.subr.bf16.mxu0 0
    %876 = vmatpush1.bf16.msra.mxu0 0
    %877 = vmatprep.subr.bf16.mxu0 0
    %878 = vmatpush1.bf16.msra.mxu0 0
    %879 = vmatprep.subr.bf16.mxu0 0
    %880 = vmatpush1.bf16.msra.mxu0 0
    %881 = vmatprep.subr.bf16.mxu0 0
    %882 = vmatpush1.bf16.msra.mxu0 0
    %883 = vmatprep.subr.bf16.mxu0 0
    %884 = vmatpush1.bf16.msra.mxu0 0
    %885 = vmatprep.subr.bf16.mxu0 0
    %886 = vmatpush1.bf16.msra.mxu0 0
    %887 = vmatprep.subr.bf16.mxu0 0
    %888 = vmatpush1.bf16.msra.mxu0 0
    %889 = vmatprep.subr.bf16.mxu0 0
    %890 = vmatpush1.bf16.msra.mxu0 0
    %891 = vmatprep.subr.bf16.mxu0 0
    %892 = vmatpush1.bf16.msra.mxu0 0
    %893 = vmatprep.subr.bf16.mxu0 0
    %894 = vmatpush1.bf16.msra.mxu0 0
    %895 = vmatprep.subr.bf16.mxu0 0
    %896 = vmatpush1.bf16.msra.mxu0 0
    %897 = vmatprep.mubr.bf16.mxu0 0
    %898 = vmatmul.mubr.bf16.gmra.mrb[0].mxu0 %v860
    %v899 = vpop.f32.mrb[0].mxu0
    %v900 = vadd.f32 0.0, %v899
    %v901 = vpop.f32.mrb[0].mxu0
    %v902 = vpop.f32.mrb[0].mxu0
    %v903 = vpop.f32.mrb[0].mxu0
    %904 = vdwg.mxu0
    %907 = vrot.lane.b32.xlu0 %v851, 64
    %v908 = vpop.permute.xlu0 %907
    %909 = vrot.lane.b32.xlu0 %v900, 64
    %v910 = vpop.permute.xlu0 %909
    %v913 = vsel %vm458, %v624, %v908
    %v914 = vsel %vm458, %v670, %v910
    %v915 = vpack.c.bf16 %v914, %v913
    %v916 = vld [vmem:[#allocation7] sm:$0xf]
    %v917 = vld [vmem:[#allocation7 + $0x4] sm:$0xf]
    %v918 = vld [vmem:[#allocation7 + $0x8] sm:$0xf]
    %v919 = vld [vmem:[#allocation7 + $0xc] sm:$0xf]
    %v920 = vld [vmem:[#allocation7 + $0x10] sm:$0xf]
    %v921 = vld [vmem:[#allocation7 + $0x14] sm:$0xf]
    %v922 = vld [vmem:[#allocation7 + $0x18] sm:$0xf]
    %v923 = vld [vmem:[#allocation7 + $0x1c] sm:$0xf]
    %v924 = vld [vmem:[#allocation7 + $0x20] sm:$0xf]
    %v925 = vld [vmem:[#allocation7 + $0x24] sm:$0xf]
    %v926 = vld [vmem:[#allocation7 + $0x28] sm:$0xf]
    %v927 = vld [vmem:[#allocation7 + $0x2c] sm:$0xf]
    %v928 = vld [vmem:[#allocation7 + $0x30] sm:$0xf]
    %v929 = vld [vmem:[#allocation7 + $0x34] sm:$0xf]
    %v930 = vld [vmem:[#allocation7 + $0x38] sm:$0xf]
    %v931 = vld [vmem:[#allocation7 + $0x3c] sm:$0xf]
    %v948 = vunpack.c.l.b16 %v916
    %v949 = vunpack.c.l.b16 %v917
    %v950 = vunpack.c.l.b16 %v918
    %v951 = vunpack.c.l.b16 %v919
    %v952 = vunpack.c.l.b16 %v920
    %v953 = vunpack.c.l.b16 %v921
    %v954 = vunpack.c.l.b16 %v922
    %v955 = vunpack.c.l.b16 %v923
    %v956 = vunpack.c.l.b16 %v924
    %v957 = vunpack.c.l.b16 %v925
    %v958 = vunpack.c.l.b16 %v926
    %v959 = vunpack.c.l.b16 %v927
    %v960 = vunpack.c.l.b16 %v928
    %v961 = vunpack.c.l.b16 %v929
    %v962 = vunpack.c.l.b16 %v930
    %v963 = vunpack.c.l.b16 %v931
    %v964 = vpack.c.b16 %v949, %v948
    %v965 = vpack.c.b16 %v951, %v950
    %v966 = vpack.c.b16 %v953, %v952
    %v967 = vpack.c.b16 %v955, %v954
    %v968 = vpack.c.b16 %v957, %v956
    %v969 = vpack.c.b16 %v959, %v958
    %v970 = vpack.c.b16 %v961, %v960
    %v971 = vpack.c.b16 %v963, %v962
    %980 = vmatprep.subr.bf16.mxu0 0
    %981 = vmatpush1.bf16.msra.mxu0 %v964
    %982 = vmatprep.subr.bf16.mxu0 0
    %983 = vmatpush1.bf16.msra.mxu0 %v965
    %984 = vmatprep.subr.bf16.mxu0 0
    %985 = vmatpush1.bf16.msra.mxu0 %v966
    %986 = vmatprep.subr.bf16.mxu0 0
    %987 = vmatpush1.bf16.msra.mxu0 %v967
    %988 = vmatprep.subr.bf16.mxu0 0
    %989 = vmatpush1.bf16.msra.mxu0 %v968
    %990 = vmatprep.subr.bf16.mxu0 0
    %991 = vmatpush1.bf16.msra.mxu0 %v969
    %992 = vmatprep.subr.bf16.mxu0 0
    %993 = vmatpush1.bf16.msra.mxu0 %v970
    %994 = vmatprep.subr.bf16.mxu0 0
    %995 = vmatpush1.bf16.msra.mxu0 %v971
    %996 = vmatprep.subr.bf16.mxu0 0
    %997 = vmatpush1.bf16.msra.mxu0 0
    %998 = vmatprep.subr.bf16.mxu0 0
    %999 = vmatpush1.bf16.msra.mxu0 0
    %1000 = vmatprep.subr.bf16.mxu0 0
    %1001 = vmatpush1.bf16.msra.mxu0 0
    %1002 = vmatprep.subr.bf16.mxu0 0
    %1003 = vmatpush1.bf16.msra.mxu0 0
    %1004 = vmatprep.subr.bf16.mxu0 0
    %1005 = vmatpush1.bf16.msra.mxu0 0
    %1006 = vmatprep.subr.bf16.mxu0 0
    %1007 = vmatpush1.bf16.msra.mxu0 0
    %1008 = vmatprep.subr.bf16.mxu0 0
    %1009 = vmatpush1.bf16.msra.mxu0 0
    %1010 = vmatprep.subr.bf16.mxu0 0
    %1011 = vmatpush1.bf16.msra.mxu0 0
    %1012 = vmatprep.mubr.bf16.mxu0 0
    %1013 = vmatmul.mubr.bf16.gmra.mrb[0].mxu0 %v915
    %v1014 = vpop.f32.mrb[0].mxu0
    %v1015 = vadd.f32 0.0, %v1014
    %v1016 = vpop.f32.mrb[0].mxu0
    %v1017 = vpop.f32.mrb[0].mxu0
    %v1018 = vadd.f32 0.0, %v1017
    %v1019 = vpop.f32.mrb[0].mxu0
    %1020 = vdwg.mxu0
    %v1021 = vadd.f32 %v143, %v1015
    %v1022 = vadd.f32 %v144, %v1018
    %v1023 = vld [vmem:[%s7] sm:$0x1]
    %v1025 = vlaneseq
    %v1026 = vshrl.u32 %v1025, 7
    %v1027 = vsub.s32 0, %v1026
    %v1028 = vrot.slane %v1023, %v1027
    %v1030 = vadd.f32 %v1021, %v1028
    %v1031 = vadd.f32 %v1022, %v1028
    %v1032 = vld [vmem:[%s8] sm:$0x1]
    %v1033 = vld [vmem:[%s9] sm:$0x1]
    %1034 = vadd.xlane.f32.xlu0 %v1030
    %v1035 = vpop.xlane.xlu0 %1034
    %1036 = vadd.xlane.f32.xlu0 %v1031
    %v1037 = vpop.xlane.xlu0 %1036
    %v1038 = vmul.f32 %v1035, %v157
    %v1039 = vmul.f32 %v1037, %v157
    %v1040 = vsub.f32 %v1030, %v1038
    %v1041 = vsub.f32 %v1031, %v1039
    %v1042 = vmul.f32 %v1040, %v1040
    %v1043 = vmul.f32 %v1041, %v1041
    %1044 = vadd.xlane.f32.xlu0 %v1042
    %v1045 = vpop.xlane.xlu0 %1044
    %1046 = vadd.xlane.f32.xlu0 %v1043
    %v1047 = vpop.xlane.xlu0 %1046
    %v1048 = vmul.f32 %v1045, %v157
    %v1049 = vmul.f32 %v1047, %v157
    %v1050 = vadd.f32 %v1048, 1e-05
    %v1051 = vadd.f32 %v1049, 1e-05
    %v1052 = vrsqrt.pop %v1050
    %v1053 = vrsqrt.pop %v1051
    %v1054 = vmul.f32 %v1040, %v1052
    %v1055 = vmul.f32 %v1041, %v1053
    %v1057 = vlaneseq
    %v1058 = vshrl.u32 %v1057, 7
    %v1059 = vsub.s32 0, %v1058
    %v1060 = vrot.slane %v1032, %v1059
    %v1062 = vmul.f32 %v1054, %v1060
    %v1063 = vmul.f32 %v1055, %v1060
    %v1065 = vlaneseq
    %v1066 = vshrl.u32 %v1065, 7
    %v1067 = vsub.s32 0, %v1066
    %v1068 = vrot.slane %v1033, %v1067
    %v1070 = vadd.f32 %v1062, %v1068
    %v1071 = vadd.f32 %v1063, %v1068
    %v1072 = vpack.c.bf16 %v1071, %v1070
    %v1073 = vld [vmem:[#allocation8] sm:$0xff]
    %v1074 = vld [vmem:[#allocation8 + $0x8] sm:$0xff]
    %v1075 = vld [vmem:[#allocation8 + $0x10] sm:$0xff]
    %v1076 = vld [vmem:[#allocation8 + $0x18] sm:$0xff]
    %v1077 = vld [vmem:[#allocation8 + $0x20] sm:$0xff]
    %v1078 = vld [vmem:[#allocation8 + $0x28] sm:$0xff]
    %v1079 = vld [vmem:[#allocation8 + $0x30] sm:$0xff]
    %v1080 = vld [vmem:[#allocation8 + $0x38] sm:$0xff]
    %v1081 = vld [vmem:[#allocation8 + $0x40] sm:$0xff]
    %v1082 = vld [vmem:[#allocation8 + $0x48] sm:$0xff]
    %v1083 = vld [vmem:[#allocation8 + $0x50] sm:$0xff]
    %v1084 = vld [vmem:[#allocation8 + $0x58] sm:$0xff]
    %v1085 = vld [vmem:[#allocation8 + $0x60] sm:$0xff]
    %v1086 = vld [vmem:[#allocation8 + $0x68] sm:$0xff]
    %v1087 = vld [vmem:[#allocation8 + $0x70] sm:$0xff]
    %v1088 = vld [vmem:[#allocation8 + $0x78] sm:$0xff]
    %v1089 = vld [vmem:[#allocation8 + $0x80] sm:$0xff]
    %v1090 = vld [vmem:[#allocation8 + $0x88] sm:$0xff]
    %v1091 = vld [vmem:[#allocation8 + $0x90] sm:$0xff]
    %v1092 = vld [vmem:[#allocation8 + $0x98] sm:$0xff]
    %v1093 = vld [vmem:[#allocation8 + $0xa0] sm:$0xff]
    %v1094 = vld [vmem:[#allocation8 + $0xa8] sm:$0xff]
    %v1095 = vld [vmem:[#allocation8 + $0xb0] sm:$0xff]
    %v1096 = vld [vmem:[#allocation8 + $0xb8] sm:$0xff]
    %v1097 = vld [vmem:[#allocation8 + $0xc0] sm:$0xff]
    %v1098 = vld [vmem:[#allocation8 + $0xc8] sm:$0xff]
    %v1099 = vld [vmem:[#allocation8 + $0xd0] sm:$0xff]
    %v1100 = vld [vmem:[#allocation8 + $0xd8] sm:$0xff]
    %v1101 = vld [vmem:[#allocation8 + $0xe0] sm:$0xff]
    %v1102 = vld [vmem:[#allocation8 + $0xe8] sm:$0xff]
    %v1103 = vld [vmem:[#allocation8 + $0xf0] sm:$0xff]
    %v1104 = vld [vmem:[#allocation8 + $0xf8] sm:$0xff]
    %v1105 = vld [vmem:[%s11] sm:$0xf]
    %v1107 = vlaneseq
    %v1108 = vshrl.u32 %v1107, 7
    %v1109 = vsub.s32 0, %v1108
    %v1110 = vrot.slane %v1105, %v1109
    %v1111 = vlaneseq
    %v1112 = vshrl.u32 %v1111, 7
    %v1113 = vsub.s32 1, %v1112
    %v1114 = vrot.slane %v1105, %v1113
    %v1115 = vlaneseq
    %v1116 = vshrl.u32 %v1115, 7
    %v1117 = vsub.s32 2, %v1116
    %v1118 = vrot.slane %v1105, %v1117
    %v1119 = vlaneseq
    %v1120 = vshrl.u32 %v1119, 7
    %v1121 = vsub.s32 3, %v1120
    %v1122 = vrot.slane %v1105, %v1121
    %v1159 = vunpack.c.l.b16 %v1073
    %v1160 = vunpack.c.h.b16 %v1073
    %v1161 = vunpack.c.l.b16 %v1074
    %v1162 = vunpack.c.h.b16 %v1074
    %v1163 = vunpack.c.l.b16 %v1075
    %v1164 = vunpack.c.h.b16 %v1075
    %v1165 = vunpack.c.l.b16 %v1076
    %v1166 = vunpack.c.h.b16 %v1076
    %v1167 = vunpack.c.l.b16 %v1077
    %v1168 = vunpack.c.h.b16 %v1077
    %v1169 = vunpack.c.l.b16 %v1078
    %v1170 = vunpack.c.h.b16 %v1078
    %v1171 = vunpack.c.l.b16 %v1079
    %v1172 = vunpack.c.h.b16 %v1079
    %v1173 = vunpack.c.l.b16 %v1080
    %v1174 = vunpack.c.h.b16 %v1080
    %v1175 = vunpack.c.l.b16 %v1081
    %v1176 = vunpack.c.h.b16 %v1081
    %v1177 = vunpack.c.l.b16 %v1082
    %v1178 = vunpack.c.h.b16 %v1082
    %v1179 = vunpack.c.l.b16 %v1083
    %v1180 = vunpack.c.h.b16 %v1083
    %v1181 = vunpack.c.l.b16 %v1084
    %v1182 = vunpack.c.h.b16 %v1084
    %v1183 = vunpack.c.l.b16 %v1085
    %v1184 = vunpack.c.h.b16 %v1085
    %v1185 = vunpack.c.l.b16 %v1086
    %v1186 = vunpack.c.h.b16 %v1086
    %v1187 = vunpack.c.l.b16 %v1087
    %v1188 = vunpack.c.h.b16 %v1087
    %v1189 = vunpack.c.l.b16 %v1088
    %v1190 = vunpack.c.h.b16 %v1088
    %v1191 = vunpack.c.l.b16 %v1089
    %v1192 = vunpack.c.h.b16 %v1089
    %v1193 = vunpack.c.l.b16 %v1090
    %v1194 = vunpack.c.h.b16 %v1090
    %v1195 = vunpack.c.l.b16 %v1091
    %v1196 = vunpack.c.h.b16 %v1091
    %v1197 = vunpack.c.l.b16 %v1092
    %v1198 = vunpack.c.h.b16 %v1092
    %v1199 = vunpack.c.l.b16 %v1093
    %v1200 = vunpack.c.h.b16 %v1093
    %v1201 = vunpack.c.l.b16 %v1094
    %v1202 = vunpack.c.h.b16 %v1094
    %v1203 = vunpack.c.l.b16 %v1095
    %v1204 = vunpack.c.h.b16 %v1095
    %v1205 = vunpack.c.l.b16 %v1096
    %v1206 = vunpack.c.h.b16 %v1096
    %v1207 = vunpack.c.l.b16 %v1097
    %v1208 = vunpack.c.h.b16 %v1097
    %v1209 = vunpack.c.l.b16 %v1098
    %v1210 = vunpack.c.h.b16 %v1098
    %v1211 = vunpack.c.l.b16 %v1099
    %v1212 = vunpack.c.h.b16 %v1099
    %v1213 = vunpack.c.l.b16 %v1100
    %v1214 = vunpack.c.h.b16 %v1100
    %v1215 = vunpack.c.l.b16 %v1101
    %v1216 = vunpack.c.h.b16 %v1101
    %v1217 = vunpack.c.l.b16 %v1102
    %v1218 = vunpack.c.h.b16 %v1102
    %v1219 = vunpack.c.l.b16 %v1103
    %v1220 = vunpack.c.h.b16 %v1103
    %v1221 = vunpack.c.l.b16 %v1104
    %v1222 = vunpack.c.h.b16 %v1104
    %v1223 = vpack.c.b16 %v1163, %v1159
    %v1224 = vpack.c.b16 %v1164, %v1160
    %v1225 = vpack.c.b16 %v1165, %v1161
    %v1226 = vpack.c.b16 %v1166, %v1162
    %v1227 = vpack.c.b16 %v1171, %v1167
    %v1228 = vpack.c.b16 %v1172, %v1168
    %v1229 = vpack.c.b16 %v1173, %v1169
    %v1230 = vpack.c.b16 %v1174, %v1170
    %v1231 = vpack.c.b16 %v1179, %v1175
    %v1232 = vpack.c.b16 %v1180, %v1176
    %v1233 = vpack.c.b16 %v1181, %v1177
    %v1234 = vpack.c.b16 %v1182, %v1178
    %v1235 = vpack.c.b16 %v1187, %v1183
    %v1236 = vpack.c.b16 %v1188, %v1184
    %v1237 = vpack.c.b16 %v1189, %v1185
    %v1238 = vpack.c.b16 %v1190, %v1186
    %v1239 = vpack.c.b16 %v1195, %v1191
    %v1240 = vpack.c.b16 %v1196, %v1192
    %v1241 = vpack.c.b16 %v1197, %v1193
    %v1242 = vpack.c.b16 %v1198, %v1194
    %v1243 = vpack.c.b16 %v1203, %v1199
    %v1244 = vpack.c.b16 %v1204, %v1200
    %v1245 = vpack.c.b16 %v1205, %v1201
    %v1246 = vpack.c.b16 %v1206, %v1202
    %v1247 = vpack.c.b16 %v1211, %v1207
    %v1248 = vpack.c.b16 %v1212, %v1208
    %v1249 = vpack.c.b16 %v1213, %v1209
    %v1250 = vpack.c.b16 %v1214, %v1210
    %v1251 = vpack.c.b16 %v1219, %v1215
    %v1252 = vpack.c.b16 %v1220, %v1216
    %v1253 = vpack.c.b16 %v1221, %v1217
    %v1254 = vpack.c.b16 %v1222, %v1218
    %1287 = vmatprep.subr.bf16.mxu0 %v1224
    %1288 = vmatpush1.bf16.msra.mxu0 %v1223
    %1289 = vmatprep.subr.bf16.mxu0 %v1228
    %1290 = vmatpush1.bf16.msra.mxu0 %v1227
    %1291 = vmatprep.subr.bf16.mxu0 %v1232
    %1292 = vmatpush1.bf16.msra.mxu0 %v1231
    %1293 = vmatprep.subr.bf16.mxu0 %v1236
    %1294 = vmatpush1.bf16.msra.mxu0 %v1235
    %1295 = vmatprep.subr.bf16.mxu0 %v1240
    %1296 = vmatpush1.bf16.msra.mxu0 %v1239
    %1297 = vmatprep.subr.bf16.mxu0 %v1244
    %1298 = vmatpush1.bf16.msra.mxu0 %v1243
    %1299 = vmatprep.subr.bf16.mxu0 %v1248
    %1300 = vmatpush1.bf16.msra.mxu0 %v1247
    %1301 = vmatprep.subr.bf16.mxu0 %v1252
    %1302 = vmatpush1.bf16.msra.mxu0 %v1251
    %1303 = vmatprep.subr.bf16.mxu0 0
    %1304 = vmatpush1.bf16.msra.mxu0 0
    %1305 = vmatprep.subr.bf16.mxu0 0
    %1306 = vmatpush1.bf16.msra.mxu0 0
    %1307 = vmatprep.subr.bf16.mxu0 0
    %1308 = vmatpush1.bf16.msra.mxu0 0
    %1309 = vmatprep.subr.bf16.mxu0 0
    %1310 = vmatpush1.bf16.msra.mxu0 0
    %1311 = vmatprep.subr.bf16.mxu0 0
    %1312 = vmatpush1.bf16.msra.mxu0 0
    %1313 = vmatprep.subr.bf16.mxu0 0
    %1314 = vmatpush1.bf16.msra.mxu0 0
    %1315 = vmatprep.subr.bf16.mxu0 0
    %1316 = vmatpush1.bf16.msra.mxu0 0
    %1317 = vmatprep.subr.bf16.mxu0 0
    %1318 = vmatpush1.bf16.msra.mxu0 0
    %1319 = vmatprep.mubr.bf16.mxu0 0
    %1320 = vmatmul.mubr.bf16.gmra.mrb[0].mxu0 %v1072
    %v1321 = vpop.f32.mrb[0].mxu0
    %v1322 = vadd.f32 %v1110, %v1321
    %v1323 = vpop.f32.mrb[0].mxu0
    %v1324 = vadd.f32 %v1114, %v1323
    %v1325 = vpop.f32.mrb[0].mxu0
    %v1326 = vadd.f32 %v1110, %v1325
    %v1327 = vpop.f32.mrb[0].mxu0
    %v1328 = vadd.f32 %v1114, %v1327
    %1329 = vdwg.mxu0
    %1330 = vmatprep.subr.bf16.mxu0 %v1226
    %1331 = vmatpush1.bf16.msra.mxu0 %v1225
    %1332 = vmatprep.subr.bf16.mxu0 %v1230
    %1333 = vmatpush1.bf16.msra.mxu0 %v1229
    %1334 = vmatprep.subr.bf16.mxu0 %v1234
    %1335 = vmatpush1.bf16.msra.mxu0 %v1233
    %1336 = vmatprep.subr.bf16.mxu0 %v1238
    %1337 = vmatpush1.bf16.msra.mxu0 %v1237
    %1338 = vmatprep.subr.bf16.mxu0 %v1242
    %1339 = vmatpush1.bf16.msra.mxu0 %v1241
    %1340 = vmatprep.subr.bf16.mxu0 %v1246
    %1341 = vmatpush1.bf16.msra.mxu0 %v1245
    %1342 = vmatprep.subr.bf16.mxu0 %v1250
    %1343 = vmatpush1.bf16.msra.mxu0 %v1249
    %1344 = vmatprep.subr.bf16.mxu0 %v1254
    %1345 = vmatpush1.bf16.msra.mxu0 %v1253
    %1346 = vmatprep.subr.bf16.mxu0 0
    %1347 = vmatpush1.bf16.msra.mxu0 0
    %1348 = vmatprep.subr.bf16.mxu0 0
    %1349 = vmatpush1.bf16.msra.mxu0 0
    %1350 = vmatprep.subr.bf16.mxu0 0
    %1351 = vmatpush1.bf16.msra.mxu0 0
    %1352 = vmatprep.subr.bf16.mxu0 0
    %1353 = vmatpush1.bf16.msra.mxu0 0
    %1354 = vmatprep.subr.bf16.mxu0 0
    %1355 = vmatpush1.bf16.msra.mxu0 0
    %1356 = vmatprep.subr.bf16.mxu0 0
    %1357 = vmatpush1.bf16.msra.mxu0 0
    %1358 = vmatprep.subr.bf16.mxu0 0
    %1359 = vmatpush1.bf16.msra.mxu0 0
    %1360 = vmatprep.subr.bf16.mxu0 0
    %1361 = vmatpush1.bf16.msra.mxu0 0
    %1362 = vmatprep.mubr.bf16.mxu0 0
    %1363 = vmatmul.mubr.bf16.gmra.mrb[0].mxu0 %v1072
    %v1364 = vpop.f32.mrb[0].mxu0
    %v1365 = vadd.f32 %v1118, %v1364
    %v1366 = vpop.f32.mrb[0].mxu0
    %v1367 = vadd.f32 %v1122, %v1366
    %v1368 = vpop.f32.mrb[0].mxu0
    %v1369 = vadd.f32 %v1118, %v1368
    %v1370 = vpop.f32.mrb[0].mxu0
    %v1371 = vadd.f32 %v1122, %v1370
    %1372 = vdwg.mxu0
    %v1373 = vmul.f32 %v1322, 0.5
    %v1374 = vmul.f32 %v1324, 0.5
    %v1375 = vmul.f32 %v1365, 0.5
    %v1376 = vmul.f32 %v1367, 0.5
    %v1377 = vmul.f32 %v1326, 0.5
    %v1378 = vmul.f32 %v1328, 0.5
    %v1379 = vmul.f32 %v1369, 0.5
    %v1380 = vmul.f32 %v1371, 0.5
    %v1381 = vmul.f32 %v1322, 0.044715
    %v1382 = vmul.f32 %v1324, 0.044715
    %v1383 = vmul.f32 %v1365, 0.044715
    %v1384 = vmul.f32 %v1367, 0.044715
    %v1385 = vmul.f32 %v1326, 0.044715
    %v1386 = vmul.f32 %v1328, 0.044715
    %v1387 = vmul.f32 %v1369, 0.044715
    %v1388 = vmul.f32 %v1371, 0.044715
    %v1389 = vmul.f32 %v1381, %v1322
    %v1390 = vmul.f32 %v1382, %v1324
    %v1391 = vmul.f32 %v1383, %v1365
    %v1392 = vmul.f32 %v1384, %v1367
    %v1393 = vmul.f32 %v1385, %v1326
    %v1394 = vmul.f32 %v1386, %v1328
    %v1395 = vmul.f32 %v1387, %v1369
    %v1396 = vmul.f32 %v1388, %v1371
    %v1397 = vmul.f32 %v1389, %v1322
    %v1398 = vmul.f32 %v1390, %v1324
    %v1399 = vmul.f32 %v1391, %v1365
    %v1400 = vmul.f32 %v1392, %v1367
    %v1401 = vmul.f32 %v1393, %v1326
    %v1402 = vmul.f32 %v1394, %v1328
    %v1403 = vmul.f32 %v1395, %v1369
    %v1404 = vmul.f32 %v1396, %v1371
    %v1405 = vadd.f32 %v1322, %v1397
    %v1406 = vadd.f32 %v1324, %v1398
    %v1407 = vadd.f32 %v1365, %v1399
    %v1408 = vadd.f32 %v1367, %v1400
    %v1409 = vadd.f32 %v1326, %v1401
    %v1410 = vadd.f32 %v1328, %v1402
    %v1411 = vadd.f32 %v1369, %v1403
    %v1412 = vadd.f32 %v1371, %v1404
    %v1413 = vmul.f32 %v1405, 0.7978846
    %v1414 = vmul.f32 %v1406, 0.7978846
    %v1415 = vmul.f32 %v1407, 0.7978846
    %v1416 = vmul.f32 %v1408, 0.7978846
    %v1417 = vmul.f32 %v1409, 0.7978846
    %v1418 = vmul.f32 %v1410, 0.7978846
    %v1419 = vmul.f32 %v1411, 0.7978846
    %v1420 = vmul.f32 %v1412, 0.7978846
    %v1421 = vtanh.pop %v1413
    %v1422 = vtanh.pop %v1414
    %v1423 = vtanh.pop %v1415
    %v1424 = vtanh.pop %v1416
    %v1425 = vtanh.pop %v1417
    %v1426 = vtanh.pop %v1418
    %v1427 = vtanh.pop %v1419
    %v1428 = vtanh.pop %v1420
    %v1429 = vadd.f32 %v1421, 1.0
    %v1430 = vadd.f32 %v1422, 1.0
    %v1431 = vadd.f32 %v1423, 1.0
    %v1432 = vadd.f32 %v1424, 1.0
    %v1433 = vadd.f32 %v1425, 1.0
    %v1434 = vadd.f32 %v1426, 1.0
    %v1435 = vadd.f32 %v1427, 1.0
    %v1436 = vadd.f32 %v1428, 1.0
    %v1437 = vmul.f32 %v1373, %v1429
    %v1438 = vmul.f32 %v1374, %v1430
    %v1439 = vmul.f32 %v1375, %v1431
    %v1440 = vmul.f32 %v1376, %v1432
    %v1441 = vmul.f32 %v1377, %v1433
    %v1442 = vmul.f32 %v1378, %v1434
    %v1443 = vmul.f32 %v1379, %v1435
    %v1444 = vmul.f32 %v1380, %v1436
    %v1445 = vpack.c.bf16 %v1441, %v1437
    %v1446 = vpack.c.bf16 %v1442, %v1438
    %v1447 = vpack.c.bf16 %v1443, %v1439
    %v1448 = vpack.c.bf16 %v1444, %v1440
    %v1449 = vld [vmem:[#allocation10] sm:$0xf]
    %v1450 = vld [vmem:[#allocation10 + $0x4] sm:$0xf]
    %v1451 = vld [vmem:[#allocation10 + $0x8] sm:$0xf]
    %v1452 = vld [vmem:[#allocation10 + $0xc] sm:$0xf]
    %v1453 = vld [vmem:[#allocation10 + $0x10] sm:$0xf]
    %v1454 = vld [vmem:[#allocation10 + $0x14] sm:$0xf]
    %v1455 = vld [vmem:[#allocation10 + $0x18] sm:$0xf]
    %v1456 = vld [vmem:[#allocation10 + $0x1c] sm:$0xf]
    %v1457 = vld [vmem:[#allocation10 + $0x20] sm:$0xf]
    %v1458 = vld [vmem:[#allocation10 + $0x24] sm:$0xf]
    %v1459 = vld [vmem:[#allocation10 + $0x28] sm:$0xf]
    %v1460 = vld [vmem:[#allocation10 + $0x2c] sm:$0xf]
    %v1461 = vld [vmem:[#allocation10 + $0x30] sm:$0xf]
    %v1462 = vld [vmem:[#allocation10 + $0x34] sm:$0xf]
    %v1463 = vld [vmem:[#allocation10 + $0x38] sm:$0xf]
    %v1464 = vld [vmem:[#allocation10 + $0x3c] sm:$0xf]
    %v1465 = vld [vmem:[#allocation10 + $0x40] sm:$0xf]
    %v1466 = vld [vmem:[#allocation10 + $0x44] sm:$0xf]
    %v1467 = vld [vmem:[#allocation10 + $0x48] sm:$0xf]
    %v1468 = vld [vmem:[#allocation10 + $0x4c] sm:$0xf]
    %v1469 = vld [vmem:[#allocation10 + $0x50] sm:$0xf]
    %v1470 = vld [vmem:[#allocation10 + $0x54] sm:$0xf]
    %v1471 = vld [vmem:[#allocation10 + $0x58] sm:$0xf]
    %v1472 = vld [vmem:[#allocation10 + $0x5c] sm:$0xf]
    %v1473 = vld [vmem:[#allocation10 + $0x60] sm:$0xf]
    %v1474 = vld [vmem:[#allocation10 + $0x64] sm:$0xf]
    %v1475 = vld [vmem:[#allocation10 + $0x68] sm:$0xf]
    %v1476 = vld [vmem:[#allocation10 + $0x6c] sm:$0xf]
    %v1477 = vld [vmem:[#allocation10 + $0x70] sm:$0xf]
    %v1478 = vld [vmem:[#allocation10 + $0x74] sm:$0xf]
    %v1479 = vld [vmem:[#allocation10 + $0x78] sm:$0xf]
    %v1480 = vld [vmem:[#allocation10 + $0x7c] sm:$0xf]
    %v1481 = vld [vmem:[#allocation10 + $0x80] sm:$0xf]
    %v1482 = vld [vmem:[#allocation10 + $0x84] sm:$0xf]
    %v1483 = vld [vmem:[#allocation10 + $0x88] sm:$0xf]
    %v1484 = vld [vmem:[#allocation10 + $0x8c] sm:$0xf]
    %v1485 = vld [vmem:[#allocation10 + $0x90] sm:$0xf]
    %v1486 = vld [vmem:[#allocation10 + $0x94] sm:$0xf]
    %v1487 = vld [vmem:[#allocation10 + $0x98] sm:$0xf]
    %v1488 = vld [vmem:[#allocation10 + $0x9c] sm:$0xf]
    %v1489 = vld [vmem:[#allocation10 + $0xa0] sm:$0xf]
    %v1490 = vld [vmem:[#allocation10 + $0xa4] sm:$0xf]
    %v1491 = vld [vmem:[#allocation10 + $0xa8] sm:$0xf]
    %v1492 = vld [vmem:[#allocation10 + $0xac] sm:$0xf]
    %v1493 = vld [vmem:[#allocation10 + $0xb0] sm:$0xf]
    %v1494 = vld [vmem:[#allocation10 + $0xb4] sm:$0xf]
    %v1495 = vld [vmem:[#allocation10 + $0xb8] sm:$0xf]
    %v1496 = vld [vmem:[#allocation10 + $0xbc] sm:$0xf]
    %v1497 = vld [vmem:[#allocation10 + $0xc0] sm:$0xf]
    %v1498 = vld [vmem:[#allocation10 + $0xc4] sm:$0xf]
    %v1499 = vld [vmem:[#allocation10 + $0xc8] sm:$0xf]
    %v1500 = vld [vmem:[#allocation10 + $0xcc] sm:$0xf]
    %v1501 = vld [vmem:[#allocation10 + $0xd0] sm:$0xf]
    %v1502 = vld [vmem:[#allocation10 + $0xd4] sm:$0xf]
    %v1503 = vld [vmem:[#allocation10 + $0xd8] sm:$0xf]
    %v1504 = vld [vmem:[#allocation10 + $0xdc] sm:$0xf]
    %v1505 = vld [vmem:[#allocation10 + $0xe0] sm:$0xf]
    %v1506 = vld [vmem:[#allocation10 + $0xe4] sm:$0xf]
    %v1507 = vld [vmem:[#allocation10 + $0xe8] sm:$0xf]
    %v1508 = vld [vmem:[#allocation10 + $0xec] sm:$0xf]
    %v1509 = vld [vmem:[#allocation10 + $0xf0] sm:$0xf]
    %v1510 = vld [vmem:[#allocation10 + $0xf4] sm:$0xf]
    %v1511 = vld [vmem:[#allocation10 + $0xf8] sm:$0xf]
    %v1512 = vld [vmem:[#allocation10 + $0xfc] sm:$0xf]
    %v1577 = vunpack.c.l.b16 %v1449
    %v1578 = vunpack.c.l.b16 %v1450
    %v1579 = vunpack.c.l.b16 %v1451
    %v1580 = vunpack.c.l.b16 %v1452
    %v1581 = vunpack.c.l.b16 %v1453
    %v1582 = vunpack.c.l.b16 %v1454
    %v1583 = vunpack.c.l.b16 %v1455
    %v1584 = vunpack.c.l.b16 %v1456
    %v1585 = vunpack.c.l.b16 %v1457
    %v1586 = vunpack.c.l.b16 %v1458
    %v1587 = vunpack.c.l.b16 %v1459
    %v1588 = vunpack.c.l.b16 %v1460
    %v1589 = vunpack.c.l.b16 %v1461
    %v1590 = vunpack.c.l.b16 %v1462
    %v1591 = vunpack.c.l.b16 %v1463
    %v1592 = vunpack.c.l.b16 %v1464
    %v1593 = vunpack.c.l.b16 %v1465
    %v1594 = vunpack.c.l.b16 %v1466
    %v1595 = vunpack.c.l.b16 %v1467
    %v1596 = vunpack.c.l.b16 %v1468
    %v1597 = vunpack.c.l.b16 %v1469
    %v1598 = vunpack.c.l.b16 %v1470
    %v1599 = vunpack.c.l.b16 %v1471
    %v1600 = vunpack.c.l.b16 %v1472
    %v1601 = vunpack.c.l.b16 %v1473
    %v1602 = vunpack.c.l.b16 %v1474
    %v1603 = vunpack.c.l.b16 %v1475
    %v1604 = vunpack.c.l.b16 %v1476
    %v1605 = vunpack.c.l.b16 %v1477
    %v1606 = vunpack.c.l.b16 %v1478
    %v1607 = vunpack.c.l.b16 %v1479
    %v1608 = vunpack.c.l.b16 %v1480
    %v1609 = vunpack.c.l.b16 %v1481
    %v1610 = vunpack.c.l.b16 %v1482
    %v1611 = vunpack.c.l.b16 %v1483
    %v1612 = vunpack.c.l.b16 %v1484
    %v1613 = vunpack.c.l.b16 %v1485
    %v1614 = vunpack.c.l.b16 %v1486
    %v1615 = vunpack.c.l.b16 %v1487
    %v1616 = vunpack.c.l.b16 %v1488
    %v1617 = vunpack.c.l.b16 %v1489
    %v1618 = vunpack.c.l.b16 %v1490
    %v1619 = vunpack.c.l.b16 %v1491
    %v1620 = vunpack.c.l.b16 %v1492
    %v1621 = vunpack.c.l.b16 %v1493
    %v1622 = vunpack.c.l.b16 %v1494
    %v1623 = vunpack.c.l.b16 %v1495
    %v1624 = vunpack.c.l.b16 %v1496
    %v1625 = vunpack.c.l.b16 %v1497
    %v1626 = vunpack.c.l.b16 %v1498
    %v1627 = vunpack.c.l.b16 %v1499
    %v1628 = vunpack.c.l.b16 %v1500
    %v1629 = vunpack.c.l.b16 %v1501
    %v1630 = vunpack.c.l.b16 %v1502
    %v1631 = vunpack.c.l.b16 %v1503
    %v1632 = vunpack.c.l.b16 %v1504
    %v1633 = vunpack.c.l.b16 %v1505
    %v1634 = vunpack.c.l.b16 %v1506
    %v1635 = vunpack.c.l.b16 %v1507
    %v1636 = vunpack.c.l.b16 %v1508
    %v1637 = vunpack.c.l.b16 %v1509
    %v1638 = vunpack.c.l.b16 %v1510
    %v1639 = vunpack.c.l.b16 %v1511
    %v1640 = vunpack.c.l.b16 %v1512
    %v1641 = vpack.c.b16 %v1578, %v1577
    %v1642 = vpack.c.b16 %v1580, %v1579
    %v1643 = vpack.c.b16 %v1582, %v1581
    %v1644 = vpack.c.b16 %v1584, %v1583
    %v1645 = vpack.c.b16 %v1586, %v1585
    %v1646 = vpack.c.b16 %v1588, %v1587
    %v1647 = vpack.c.b16 %v1590, %v1589
    %v1648 = vpack.c.b16 %v1592, %v1591
    %v1649 = vpack.c.b16 %v1594, %v1593
    %v1650 = vpack.c.b16 %v1596, %v1595
    %v1651 = vpack.c.b16 %v1598, %v1597
    %v1652 = vpack.c.b16 %v1600, %v1599
    %v1653 = vpack.c.b16 %v1602, %v1601
    %v1654 = vpack.c.b16 %v1604, %v1603
    %v1655 = vpack.c.b16 %v1606, %v1605
    %v1656 = vpack.c.b16 %v1608, %v1607
    %v1657 = vpack.c.b16 %v1610, %v1609
    %v1658 = vpack.c.b16 %v1612, %v1611
    %v1659 = vpack.c.b16 %v1614, %v1613
    %v1660 = vpack.c.b16 %v1616, %v1615
    %v1661 = vpack.c.b16 %v1618, %v1617
    %v1662 = vpack.c.b16 %v1620, %v1619
    %v1663 = vpack.c.b16 %v1622, %v1621
    %v1664 = vpack.c.b16 %v1624, %v1623
    %v1665 = vpack.c.b16 %v1626, %v1625
    %v1666 = vpack.c.b16 %v1628, %v1627
    %v1667 = vpack.c.b16 %v1630, %v1629
    %v1668 = vpack.c.b16 %v1632, %v1631
    %v1669 = vpack.c.b16 %v1634, %v1633
    %v1670 = vpack.c.b16 %v1636, %v1635
    %v1671 = vpack.c.b16 %v1638, %v1637
    %v1672 = vpack.c.b16 %v1640, %v1639
    %1705 = vmatprep.subr.bf16.mxu0 0
    %1706 = vmatpush1.bf16.msra.mxu0 %v1641
    %1707 = vmatprep.subr.bf16.mxu0 0
    %1708 = vmatpush1.bf16.msra.mxu0 %v1642
    %1709 = vmatprep.subr.bf16.mxu0 0
    %1710 = vmatpush1.bf16.msra.mxu0 %v1643
    %1711 = vmatprep.subr.bf16.mxu0 0
    %1712 = vmatpush1.bf16.msra.mxu0 %v1644
    %1713 = vmatprep.subr.bf16.mxu0 0
    %1714 = vmatpush1.bf16.msra.mxu0 %v1645
    %1715 = vmatprep.subr.bf16.mxu0 0
    %1716 = vmatpush1.bf16.msra.mxu0 %v1646
    %1717 = vmatprep.subr.bf16.mxu0 0
    %1718 = vmatpush1.bf16.msra.mxu0 %v1647
    %1719 = vmatprep.subr.bf16.mxu0 0
    %1720 = vmatpush1.bf16.msra.mxu0 %v1648
    %1721 = vmatprep.subr.bf16.mxu0 0
    %1722 = vmatpush1.bf16.msra.mxu0 %v1649
    %1723 = vmatprep.subr.bf16.mxu0 0
    %1724 = vmatpush1.bf16.msra.mxu0 %v1650
    %1725 = vmatprep.subr.bf16.mxu0 0
    %1726 = vmatpush1.bf16.msra.mxu0 %v1651
    %1727 = vmatprep.subr.bf16.mxu0 0
    %1728 = vmatpush1.bf16.msra.mxu0 %v1652
    %1729 = vmatprep.subr.bf16.mxu0 0
    %1730 = vmatpush1.bf16.msra.mxu0 %v1653
    %1731 = vmatprep.subr.bf16.mxu0 0
    %1732 = vmatpush1.bf16.msra.mxu0 %v1654
    %1733 = vmatprep.subr.bf16.mxu0 0
    %1734 = vmatpush1.bf16.msra.mxu0 %v1655
    %1735 = vmatprep.subr.bf16.mxu0 0
    %1736 = vmatpush1.bf16.msra.mxu0 %v1656
    %1737 = vmatprep.mubr.bf16.mxu0 %v1446
    %1738 = vmatmul.mubr.bf16.gmra.mrb[0].mxu0 %v1445
    %v1739 = vpop.f32.mrb[0].mxu0
    %v1740 = vadd.f32 0.0, %v1739
    %v1741 = vpop.f32.mrb[0].mxu0
    %v1742 = vpop.f32.mrb[0].mxu0
    %v1743 = vadd.f32 0.0, %v1742
    %v1744 = vpop.f32.mrb[0].mxu0
    %1745 = vdwg.mxu0
    %1746 = vmatprep.subr.bf16.mxu0 0
    %1747 = vmatpush1.bf16.msra.mxu0 %v1657
    %1748 = vmatprep.subr.bf16.mxu0 0
    %1749 = vmatpush1.bf16.msra.mxu0 %v1658
    %1750 = vmatprep.subr.bf16.mxu0 0
    %1751 = vmatpush1.bf16.msra.mxu0 %v1659
    %1752 = vmatprep.subr.bf16.mxu0 0
    %1753 = vmatpush1.bf16.msra.mxu0 %v1660
    %1754 = vmatprep.subr.bf16.mxu0 0
    %1755 = vmatpush1.bf16.msra.mxu0 %v1661
    %1756 = vmatprep.subr.bf16.mxu0 0
    %1757 = vmatpush1.bf16.msra.mxu0 %v1662
    %1758 = vmatprep.subr.bf16.mxu0 0
    %1759 = vmatpush1.bf16.msra.mxu0 %v1663
    %1760 = vmatprep.subr.bf16.mxu0 0
    %1761 = vmatpush1.bf16.msra.mxu0 %v1664
    %1762 = vmatprep.subr.bf16.mxu0 0
    %1763 = vmatpush1.bf16.msra.mxu0 %v1665
    %1764 = vmatprep.subr.bf16.mxu0 0
    %1765 = vmatpush1.bf16.msra.mxu0 %v1666
    %1766 = vmatprep.subr.bf16.mxu0 0
    %1767 = vmatpush1.bf16.msra.mxu0 %v1667
    %1768 = vmatprep.subr.bf16.mxu0 0
    %1769 = vmatpush1.bf16.msra.mxu0 %v1668
    %1770 = vmatprep.subr.bf16.mxu0 0
    %1771 = vmatpush1.bf16.msra.mxu0 %v1669
    %1772 = vmatprep.subr.bf16.mxu0 0
    %1773 = vmatpush1.bf16.msra.mxu0 %v1670
    %1774 = vmatprep.subr.bf16.mxu0 0
    %1775 = vmatpush1.bf16.msra.mxu0 %v1671
    %1776 = vmatprep.subr.bf16.mxu0 0
    %1777 = vmatpush1.bf16.msra.mxu0 %v1672
    %1778 = vmatprep.mubr.bf16.mxu0 %v1448
    %1779 = vmatmul.mubr.bf16.gmra.mrb[0].mxu0 %v1447
    %v1780 = vpop.f32.mrb[0].mxu0
    %v1781 = vadd.f32 %v1740, %v1780
    %v1782 = vpop.f32.mrb[0].mxu0
    %v1783 = vpop.f32.mrb[0].mxu0
    %v1784 = vadd.f32 %v1743, %v1783
    %v1785 = vpop.f32.mrb[0].mxu0
    %1786 = vdwg.mxu0
    %v1787 = vadd.f32 %v1030, %v1781
    %v1788 = vadd.f32 %v1031, %v1784
    %v1789 = vld [vmem:[%s13] sm:$0x1]
    %v1791 = vlaneseq
    %v1792 = vshrl.u32 %v1791, 7
    %v1793 = vsub.s32 0, %v1792
    %v1794 = vrot.slane %v1789, %v1793
    %v1796 = vadd.f32 %v1787, %v1794
    %v1797 = vadd.f32 %v1788, %v1794
    %s1798 = scalar_lea.vmem [#allocation2], 1
    %v1799 = vld [vmem:[%s1798] sm:$0x1]
    %s1800 = scalar_lea.vmem %s3, 1
    %v1801 = vld [vmem:[%s1800] sm:$0x1]
    %1802 = vadd.xlane.f32.xlu0 %v1796
    %v1803 = vpop.xlane.xlu0 %1802
    %1804 = vadd.xlane.f32.xlu0 %v1797
    %v1805 = vpop.xlane.xlu0 %1804
    %v1806 = vmul.f32 %v1803, %v157
    %v1807 = vmul.f32 %v1805, %v157
    %v1808 = vsub.f32 %v1796, %v1806
    %v1809 = vsub.f32 %v1797, %v1807
    %v1810 = vmul.f32 %v1808, %v1808
    %v1811 = vmul.f32 %v1809, %v1809
    %1812 = vadd.xlane.f32.xlu0 %v1810
    %v1813 = vpop.xlane.xlu0 %1812
    %1814 = vadd.xlane.f32.xlu0 %v1811
    %v1815 = vpop.xlane.xlu0 %1814
    %v1816 = vmul.f32 %v1813, %v157
    %v1817 = vmul.f32 %v1815, %v157
    %v1818 = vadd.f32 %v1816, 1e-05
    %v1819 = vadd.f32 %v1817, 1e-05
    %v1820 = vrsqrt.pop %v1818
    %v1821 = vrsqrt.pop %v1819
    %v1822 = vmul.f32 %v1808, %v1820
    %v1823 = vmul.f32 %v1809, %v1821
    %v1825 = vlaneseq
    %v1826 = vshrl.u32 %v1825, 7
    %v1827 = vsub.s32 0, %v1826
    %v1828 = vrot.slane %v1799, %v1827
    %v1830 = vmul.f32 %v1822, %v1828
    %v1831 = vmul.f32 %v1823, %v1828
    %v1833 = vlaneseq
    %v1834 = vshrl.u32 %v1833, 7
    %v1835 = vsub.s32 0, %v1834
    %v1836 = vrot.slane %v1801, %v1835
    %v1838 = vadd.f32 %v1830, %v1836
    %v1839 = vadd.f32 %v1831, %v1836
    %v1840 = vpack.c.bf16 %v1839, %v1838
    %s1841 = scalar_lea.vmem [#allocation5], 192
    %v1842 = vld [vmem:[%s1841] sm:$0xff]
    %v1843 = vld [vmem:[%s1841 + $0x8] sm:$0xf]
    %v1844 = vld [vmem:[%s1841 + $0xc] sm:$0xff]
    %v1845 = vld [vmem:[%s1841 + $0x14] sm:$0xf]
    %v1846 = vld [vmem:[%s1841 + $0x18] sm:$0xff]
    %v1847 = vld [vmem:[%s1841 + $0x20] sm:$0xf]
    %v1848 = vld [vmem:[%s1841 + $0x24] sm:$0xff]
    %v1849 = vld [vmem:[%s1841 + $0x2c] sm:$0xf]
    %v1850 = vld [vmem:[%s1841 + $0x30] sm:$0xff]
    %v1851 = vld [vmem:[%s1841 + $0x38] sm:$0xf]
    %v1852 = vld [vmem:[%s1841 + $0x3c] sm:$0xff]
    %v1853 = vld [vmem:[%s1841 + $0x44] sm:$0xf]
    %v1854 = vld [vmem:[%s1841 + $0x48] sm:$0xff]
    %v1855 = vld [vmem:[%s1841 + $0x50] sm:$0xf]
    %v1856 = vld [vmem:[%s1841 + $0x54] sm:$0xff]
    %v1857 = vld [vmem:[%s1841 + $0x5c] sm:$0xf]
    %v1858 = vld [vmem:[%s1841 + $0x60] sm:$0xff]
    %v1859 = vld [vmem:[%s1841 + $0x68] sm:$0xf]
    %v1860 = vld [vmem:[%s1841 + $0x6c] sm:$0xff]
    %v1861 = vld [vmem:[%s1841 + $0x74] sm:$0xf]
    %v1862 = vld [vmem:[%s1841 + $0x78] sm:$0xff]
    %v1863 = vld [vmem:[%s1841 + $0x80] sm:$0xf]
    %v1864 = vld [vmem:[%s1841 + $0x84] sm:$0xff]
    %v1865 = vld [vmem:[%s1841 + $0x8c] sm:$0xf]
    %v1866 = vld [vmem:[%s1841 + $0x90] sm:$0xff]
    %v1867 = vld [vmem:[%s1841 + $0x98] sm:$0xf]
    %v1868 = vld [vmem:[%s1841 + $0x9c] sm:$0xff]
    %v1869 = vld [vmem:[%s1841 + $0xa4] sm:$0xf]
    %v1870 = vld [vmem:[%s1841 + $0xa8] sm:$0xff]
    %v1871 = vld [vmem:[%s1841 + $0xb0] sm:$0xf]
    %v1872 = vld [vmem:[%s1841 + $0xb4] sm:$0xff]
    %v1873 = vld [vmem:[%s1841 + $0xbc] sm:$0xf]
    %s1874 = scalar_lea.vmem %s5, 3
    %v1875 = vld [vmem:[%s1874] sm:$0x7]
    %v1877 = vlaneseq
    %v1878 = vshrl.u32 %v1877, 7
    %v1879 = vsub.s32 0, %v1878
    %v1880 = vrot.slane %v1875, %v1879
    %v1881 = vlaneseq
    %v1882 = vshrl.u32 %v1881, 7
    %v1883 = vsub.s32 1, %v1882
    %v1884 = vrot.slane %v1875, %v1883
    %v1885 = vlaneseq
    %v1886 = vshrl.u32 %v1885, 7
    %v1887 = vsub.s32 2, %v1886
    %v1888 = vrot.slane %v1875, %v1887
    %v1924 = vunpack.c.l.b16 %v1842
    %v1925 = vunpack.c.h.b16 %v1842
    %v1926 = vunpack.c.l.b16 %v1843
    %v1927 = vunpack.c.l.b16 %v1844
    %v1928 = vunpack.c.h.b16 %v1844
    %v1929 = vunpack.c.l.b16 %v1845
    %v1930 = vunpack.c.l.b16 %v1846
    %v1931 = vunpack.c.h.b16 %v1846
    %v1932 = vunpack.c.l.b16 %v1847
    %v1933 = vunpack.c.l.b16 %v1848
    %v1934 = vunpack.c.h.b16 %v1848
    %v1935 = vunpack.c.l.b16 %v1849
    %v1936 = vunpack.c.l.b16 %v1850
    %v1937 = vunpack.c.h.b16 %v1850
    %v1938 = vunpack.c.l.b16 %v1851
    %v1939 = vunpack.c.l.b16 %v1852
    %v1940 = vunpack.c.h.b16 %v1852
    %v1941 = vunpack.c.l.b16 %v1853
    %v1942 = vunpack.c.l.b16 %v1854
    %v1943 = vunpack.c.h.b16 %v1854
    %v1944 = vunpack.c.l.b16 %v1855
    %v1945 = vunpack.c.l.b16 %v1856
    %v1946 = vunpack.c.h.b16 %v1856
    %v1947 = vunpack.c.l.b16 %v1857
    %v1948 = vunpack.c.l.b16 %v1858
    %v1949 = vunpack.c.h.b16 %v1858
    %v1950 = vunpack.c.l.b16 %v1859
    %v1951 = vunpack.c.l.b16 %v1860
    %v1952 = vunpack.c.h.b16 %v1860
    %v1953 = vunpack.c.l.b16 %v1861
    %v1954 = vunpack.c.l.b16 %v1862
    %v1955 = vunpack.c.h.b16 %v1862
    %v1956 = vunpack.c.l.b16 %v1863
    %v1957 = vunpack.c.l.b16 %v1864
    %v1958 = vunpack.c.h.b16 %v1864
    %v1959 = vunpack.c.l.b16 %v1865
    %v1960 = vunpack.c.l.b16 %v1866
    %v1961 = vunpack.c.h.b16 %v1866
    %v1962 = vunpack.c.l.b16 %v1867
    %v1963 = vunpack.c.l.b16 %v1868
    %v1964 = vunpack.c.h.b16 %v1868
    %v1965 = vunpack.c.l.b16 %v1869
    %v1966 = vunpack.c.l.b16 %v1870
    %v1967 = vunpack.c.h.b16 %v1870
    %v1968 = vunpack.c.l.b16 %v1871
    %v1969 = vunpack.c.l.b16 %v1872
    %v1970 = vunpack.c.h.b16 %v1872
    %v1971 = vunpack.c.l.b16 %v1873
    %v1972 = vpack.c.b16 %v1927, %v1924
    %v1973 = vpack.c.b16 %v1928, %v1925
    %v1974 = vpack.c.b16 %v1929, %v1926
    %v1975 = vpack.c.b16 %v1933, %v1930
    %v1976 = vpack.c.b16 %v1934, %v1931
    %v1977 = vpack.c.b16 %v1935, %v1932
    %v1978 = vpack.c.b16 %v1939, %v1936
    %v1979 = vpack.c.b16 %v1940, %v1937
    %v1980 = vpack.c.b16 %v1941, %v1938
    %v1981 = vpack.c.b16 %v1945, %v1942
    %v1982 = vpack.c.b16 %v1946, %v1943
    %v1983 = vpack.c.b16 %v1947, %v1944
    %v1984 = vpack.c.b16 %v1951, %v1948
    %v1985 = vpack.c.b16 %v1952, %v1949
    %v1986 = vpack.c.b16 %v1953, %v1950
    %v1987 = vpack.c.b16 %v1957, %v1954
    %v1988 = vpack.c.b16 %v1958, %v1955
    %v1989 = vpack.c.b16 %v1959, %v1956
    %v1990 = vpack.c.b16 %v1963, %v1960
    %v1991 = vpack.c.b16 %v1964, %v1961
    %v1992 = vpack.c.b16 %v1965, %v1962
    %v1993 = vpack.c.b16 %v1969, %v1966
    %v1994 = vpack.c.b16 %v1970, %v1967
    %v1995 = vpack.c.b16 %v1971, %v1968
    %2020 = vmatprep.subr.bf16.mxu0 %v1973
    %2021 = vmatpush1.bf16.msra.mxu0 %v1972
    %2022 = vmatprep.subr.bf16.mxu0 %v1976
    %2023 = vmatpush1.bf16.msra.mxu0 %v1975
    %2024 = vmatprep.subr.bf16.mxu0 %v1979
    %2025 = vmatpush1.bf16.msra.mxu0 %v1978
    %2026 = vmatprep.subr.bf16.mxu0 %v1982
    %2027 = vmatpush1.bf16.msra.mxu0 %v1981
    %2028 = vmatprep.subr.bf16.mxu0 %v1985
    %2029 = vmatpush1.bf16.msra.mxu0 %v1984
    %2030 = vmatprep.subr.bf16.mxu0 %v1988
    %2031 = vmatpush1.bf16.msra.mxu0 %v1987
    %2032 = vmatprep.subr.bf16.mxu0 %v1991
    %2033 = vmatpush1.bf16.msra.mxu0 %v1990
    %2034 = vmatprep.subr.bf16.mxu0 %v1994
    %2035 = vmatpush1.bf16.msra.mxu0 %v1993
    %2036 = vmatprep.subr.bf16.mxu0 0
    %2037 = vmatpush1.bf16.msra.mxu0 0
    %2038 = vmatprep.subr.bf16.mxu0 0
    %2039 = vmatpush1.bf16.msra.mxu0 0
    %2040 = vmatprep.subr.bf16.mxu0 0
    %2041 = vmatpush1.bf16.msra.mxu0 0
    %2042 = vmatprep.subr.bf16.mxu0 0
    %2043 = vmatpush1.bf16.msra.mxu0 0
    %2044 = vmatprep.subr.bf16.mxu0 0
    %2045 = vmatpush1.bf16.msra.mxu0 0
    %2046 = vmatprep.subr.bf16.mxu0 0
    %2047 = vmatpush1.bf16.msra.mxu0 0
    %2048 = vmatprep.subr.bf16.mxu0 0
    %2049 = vmatpush1.bf16.msra.mxu0 0
    %2050 = vmatprep.subr.bf16.mxu0 0
    %2051 = vmatpush1.bf16.msra.mxu0 0
    %2052 = vmatprep.mubr.bf16.mxu0 0
    %2053 = vmatmul.mubr.bf16.gmra.mrb[0].mxu0 %v1840
    %v2054 = vpop.f32.mrb[0].mxu0
    %v2055 = vadd.f32 %v1880, %v2054
    %v2056 = vpop.f32.mrb[0].mxu0
    %v2057 = vadd.f32 %v1884, %v2056
    %v2058 = vpop.f32.mrb[0].mxu0
    %v2059 = vadd.f32 %v1880, %v2058
    %v2060 = vpop.f32.mrb[0].mxu0
    %v2061 = vadd.f32 %v1884, %v2060
    %2062 = vdwg.mxu0
    %2063 = vmatprep.subr.bf16.mxu0 0
    %2064 = vmatpush1.bf16.msra.mxu0 %v1974
    %2065 = vmatprep.subr.bf16.mxu0 0
    %2066 = vmatpush1.bf16.msra.mxu0 %v1977
    %2067 = vmatprep.subr.bf16.mxu0 0
    %2068 = vmatpush1.bf16.msra.mxu0 %v1980
    %2069 = vmatprep.subr.bf16.mxu0 0
    %2070 = vmatpush1.bf16.msra.mxu0 %v1983
    %2071 = vmatprep.subr.bf16.mxu0 0
    %2072 = vmatpush1.bf16.msra.mxu0 %v1986
    %2073 = vmatprep.subr.bf16.mxu0 0
    %2074 = vmatpush1.bf16.msra.mxu0 %v1989
    %2075 = vmatprep.subr.bf16.mxu0 0
    %2076 = vmatpush1.bf16.msra.mxu0 %v1992
    %2077 = vmatprep.subr.bf16.mxu0 0
    %2078 = vmatpush1.bf16.msra.mxu0 %v1995
    %2079 = vmatprep.subr.bf16.mxu0 0
    %2080 = vmatpush1.bf16.msra.mxu0 0
    %2081 = vmatprep.subr.bf16.mxu0 0
    %2082 = vmatpush1.bf16.msra.mxu0 0
    %2083 = vmatprep.subr.bf16.mxu0 0
    %2084 = vmatpush1.bf16.msra.mxu0 0
    %2085 = vmatprep.subr.bf16.mxu0 0
    %2086 = vmatpush1.bf16.msra.mxu0 0
    %2087 = vmatprep.subr.bf16.mxu0 0
    %2088 = vmatpush1.bf16.msra.mxu0 0
    %2089 = vmatprep.subr.bf16.mxu0 0
    %2090 = vmatpush1.bf16.msra.mxu0 0
    %2091 = vmatprep.subr.bf16.mxu0 0
    %2092 = vmatpush1.bf16.msra.mxu0 0
    %2093 = vmatprep.subr.bf16.mxu0 0
    %2094 = vmatpush1.bf16.msra.mxu0 0
    %2095 = vmatprep.mubr.bf16.mxu0 0
    %2096 = vmatmul.mubr.bf16.gmra.mrb[0].mxu0 %v1840
    %v2097 = vpop.f32.mrb[0].mxu0
    %v2098 = vadd.f32 %v1888, %v2097
    %v2099 = vpop.f32.mrb[0].mxu0
    %v2100 = vpop.f32.mrb[0].mxu0
    %v2101 = vadd.f32 %v1888, %v2100
    %v2102 = vpop.f32.mrb[0].mxu0
    %2103 = vdwg.mxu0
    %v2104 = vpack.c.bf16 %v2055, %v2055
    %v2105 = vpack.c.bf16 %v2059, %v2059
    %v2106 = vpack.c.bf16 %v2057, %v2057
    %v2107 = vpack.c.bf16 %v2061, %v2061
    %v2109 = vsel %vm458, %v2104, 0
    %v2112 = vsel %vm458, %v2106, 0
    %2114 = vmatprep.subr.bf16.mxu0 0
    %2115 = vmatpush1.bf16.xpose.msra.mxu0 %v2112
    %2116 = vmatprep.subr.bf16.mxu0 0
    %2117 = vmatpush1.bf16.xpose.msra.mxu0 0
    %2118 = vmatprep.subr.bf16.mxu0 0
    %2119 = vmatpush1.bf16.xpose.msra.mxu0 0
    %2120 = vmatprep.subr.bf16.mxu0 0
    %2121 = vmatpush1.bf16.xpose.msra.mxu0 0
    %2122 = vmatprep.subr.bf16.mxu0 0
    %2123 = vmatpush1.bf16.xpose.msra.mxu0 0
    %2124 = vmatprep.subr.bf16.mxu0 0
    %2125 = vmatpush1.bf16.xpose.msra.mxu0 0
    %2126 = vmatprep.subr.bf16.mxu0 0
    %2127 = vmatpush1.bf16.xpose.msra.mxu0 0
    %2128 = vmatprep.subr.bf16.mxu0 0
    %2129 = vmatpush1.bf16.xpose.msra.mxu0 0
    %2130 = vmatprep.subr.bf16.mxu0 0
    %2131 = vmatpush1.bf16.xpose.msra.mxu0 0
    %2132 = vmatprep.subr.bf16.mxu0 0
    %2133 = vmatpush1.bf16.xpose.msra.mxu0 0
    %2134 = vmatprep.subr.bf16.mxu0 0
    %2135 = vmatpush1.bf16.xpose.msra.mxu0 0
    %2136 = vmatprep.subr.bf16.mxu0 0
    %2137 = vmatpush1.bf16.xpose.msra.mxu0 0
    %2138 = vmatprep.subr.bf16.mxu0 0
    %2139 = vmatpush1.bf16.xpose.msra.mxu0 0
    %2140 = vmatprep.subr.bf16.mxu0 0
    %2141 = vmatpush1.bf16.xpose.msra.mxu0 0
    %2142 = vmatprep.subr.bf16.mxu0 0
    %2143 = vmatpush1.bf16.xpose.msra.mxu0 0
    %2144 = vmatprep.subr.bf16.mxu0 0
    %2145 = vmatpush1.bf16.xpose.msra.mxu0 0
    %2146 = vmatprep.mubr.bf16.mxu0 0
    %2147 = vmatmul.mubr.bf16.gmra.mrb[0].mxu0 %v2109
    %v2148 = vpop.f32.mrb[0].mxu0
    %v2149 = vadd.f32 0.0, %v2148
    %v2150 = vpop.f32.mrb[0].mxu0
    %v2151 = vpop.f32.mrb[0].mxu0
    %v2152 = vpop.f32.mrb[0].mxu0
    %2153 = vdwg.mxu0
    %v2155 = vsel %vm458, %v2105, 0
    %v2158 = vsel %vm458, %v2107, 0
    %2160 = vmatprep.subr.bf16.mxu0 0
    %2161 = vmatpush1.bf16.xpose.msra.mxu0 %v2158
    %2162 = vmatprep.subr.bf16.mxu0 0
    %2163 = vmatpush1.bf16.xpose.msra.mxu0 0
    %2164 = vmatprep.subr.bf16.mxu0 0
    %2165 = vmatpush1.bf16.xpose.msra.mxu0 0
    %2166 = vmatprep.subr.bf16.mxu0 0
    %2167 = vmatpush1.bf16.xpose.msra.mxu0 0
    %2168 = vmatprep.subr.bf16.mxu0 0
    %2169 = vmatpush1.bf16.xpose.msra.mxu0 0
    %2170 = vmatprep.subr.bf16.mxu0 0
    %2171 = vmatpush1.bf16.xpose.msra.mxu0 0
    %2172 = vmatprep.subr.bf16.mxu0 0
    %2173 = vmatpush1.bf16.xpose.msra.mxu0 0
    %2174 = vmatprep.subr.bf16.mxu0 0
    %2175 = vmatpush1.bf16.xpose.msra.mxu0 0
    %2176 = vmatprep.subr.bf16.mxu0 0
    %2177 = vmatpush1.bf16.xpose.msra.mxu0 0
    %2178 = vmatprep.subr.bf16.mxu0 0
    %2179 = vmatpush1.bf16.xpose.msra.mxu0 0
    %2180 = vmatprep.subr.bf16.mxu0 0
    %2181 = vmatpush1.bf16.xpose.msra.mxu0 0
    %2182 = vmatprep.subr.bf16.mxu0 0
    %2183 = vmatpush1.bf16.xpose.msra.mxu0 0
    %2184 = vmatprep.subr.bf16.mxu0 0
    %2185 = vmatpush1.bf16.xpose.msra.mxu0 0
    %2186 = vmatprep.subr.bf16.mxu0 0
    %2187 = vmatpush1.bf16.xpose.msra.mxu0 0
    %2188 = vmatprep.subr.bf16.mxu0 0
    %2189 = vmatpush1.bf16.xpose.msra.mxu0 0
    %2190 = vmatprep.subr.bf16.mxu0 0
    %2191 = vmatpush1.bf16.xpose.msra.mxu0 0
    %2192 = vmatprep.mubr.bf16.mxu0 0
    %2193 = vmatmul.mubr.bf16.gmra.mrb[0].mxu0 %v2155
    %v2194 = vpop.f32.mrb[0].mxu0
    %v2195 = vadd.f32 0.0, %v2194
    %v2196 = vpop.f32.mrb[0].mxu0
    %v2197 = vpop.f32.mrb[0].mxu0
    %v2198 = vpop.f32.mrb[0].mxu0
    %2199 = vdwg.mxu0
    %v2200 = vmul.f32 %v2149, 0.125
    %v2201 = vmul.f32 %v2195, 0.125
    %v2202 = vadd.f32 %v2200, %v150
    %v2203 = vadd.f32 %v2201, %v150
    %v2204 = vsel %vm555, %v2202, -inf
    %2205 = vmax.xlane.f32.xlu0 %v2204
    %v2206 = vpop.xlane.xlu0 %2205
    %v2207 = vsel %vm555, %v2203, -inf
    %2208 = vmax.xlane.f32.xlu0 %v2207
    %v2209 = vpop.xlane.xlu0 %2208
    %v2210 = vsub.f32 %v2202, %v2206
    %v2211 = vsub.f32 %v2203, %v2209
    %v2212 = vmul.f32 %v2210, 1.442695
    %v2213 = vpow.pop %v2212
    %v2214 = vmul.f32 %v2211, 1.442695
    %v2215 = vpow.pop %v2214
    %v2216 = vsel %vm555, %v2213, 0.0
    %2217 = vadd.xlane.f32.xlu0 %v2216
    %v2218 = vpop.xlane.xlu0 %2217
    %v2219 = vsel %vm555, %v2215, 0.0
    %2220 = vadd.xlane.f32.xlu0 %v2219
    %v2221 = vpop.xlane.xlu0 %2220
    %v2222 = vrcp.pop %v2218
    %v2223 = vrcp.pop %v2221
    %v2224 = vmul.f32 %v2213, %v2222
    %v2225 = vmul.f32 %v2215, %v2223
    %v2226 = vpack.c.bf16 %v2224, %v2224
    %v2227 = vpack.c.bf16 %v2225, %v2225
    %v2228 = vpack.c.bf16 %v2098, %v2098
    %v2229 = vpack.c.bf16 %v2101, %v2101
    %v2231 = vsel %vm555, %v2226, 0
    %v2234 = vsel %vm585, %v2228, 0
    %2236 = vmatprep.subr.bf16.mxu0 0
    %2237 = vmatpush1.bf16.msra.mxu0 %v2234
    %2238 = vmatprep.subr.bf16.mxu0 0
    %2239 = vmatpush1.bf16.msra.mxu0 0
    %2240 = vmatprep.subr.bf16.mxu0 0
    %2241 = vmatpush1.bf16.msra.mxu0 0
    %2242 = vmatprep.subr.bf16.mxu0 0
    %2243 = vmatpush1.bf16.msra.mxu0 0
    %2244 = vmatprep.subr.bf16.mxu0 0
    %2245 = vmatpush1.bf16.msra.mxu0 0
    %2246 = vmatprep.subr.bf16.mxu0 0
    %2247 = vmatpush1.bf16.msra.mxu0 0
    %2248 = vmatprep.subr.bf16.mxu0 0
    %2249 = vmatpush1.bf16.msra.mxu0 0
    %2250 = vmatprep.subr.bf16.mxu0 0
    %2251 = vmatpush1.bf16.msra.mxu0 0
    %2252 = vmatprep.subr.bf16.mxu0 0
    %2253 = vmatpush1.bf16.msra.mxu0 0
    %2254 = vmatprep.subr.bf16.mxu0 0
    %2255 = vmatpush1.bf16.msra.mxu0 0
    %2256 = vmatprep.subr.bf16.mxu0 0
    %2257 = vmatpush1.bf16.msra.mxu0 0
    %2258 = vmatprep.subr.bf16.mxu0 0
    %2259 = vmatpush1.bf16.msra.mxu0 0
    %2260 = vmatprep.subr.bf16.mxu0 0
    %2261 = vmatpush1.bf16.msra.mxu0 0
    %2262 = vmatprep.subr.bf16.mxu0 0
    %2263 = vmatpush1.bf16.msra.mxu0 0
    %2264 = vmatprep.subr.bf16.mxu0 0
    %2265 = vmatpush1.bf16.msra.mxu0 0
    %2266 = vmatprep.subr.bf16.mxu0 0
    %2267 = vmatpush1.bf16.msra.mxu0 0
    %2268 = vmatprep.mubr.bf16.mxu0 0
    %2269 = vmatmul.mubr.bf16.gmra.mrb[0].mxu0 %v2231
    %v2270 = vpop.f32.mrb[0].mxu0
    %v2271 = vadd.f32 0.0, %v2270
    %v2272 = vpop.f32.mrb[0].mxu0
    %v2273 = vpop.f32.mrb[0].mxu0
    %v2274 = vpop.f32.mrb[0].mxu0
    %2275 = vdwg.mxu0
    %v2277 = vsel %vm555, %v2227, 0
    %v2280 = vsel %vm585, %v2229, 0
    %2282 = vmatprep.subr.bf16.mxu0 0
    %2283 = vmatpush1.bf16.msra.mxu0 %v2280
    %2284 = vmatprep.subr.bf16.mxu0 0
    %2285 = vmatpush1.bf16.msra.mxu0 0
    %2286 = vmatprep.subr.bf16.mxu0 0
    %2287 = vmatpush1.bf16.msra.mxu0 0
    %2288 = vmatprep.subr.bf16.mxu0 0
    %2289 = vmatpush1.bf16.msra.mxu0 0
    %2290 = vmatprep.subr.bf16.mxu0 0
    %2291 = vmatpush1.bf16.msra.mxu0 0
    %2292 = vmatprep.subr.bf16.mxu0 0
    %2293 = vmatpush1.bf16.msra.mxu0 0
    %2294 = vmatprep.subr.bf16.mxu0 0
    %2295 = vmatpush1.bf16.msra.mxu0 0
    %2296 = vmatprep.subr.bf16.mxu0 0
    %2297 = vmatpush1.bf16.msra.mxu0 0
    %2298 = vmatprep.subr.bf16.mxu0 0
    %2299 = vmatpush1.bf16.msra.mxu0 0
    %2300 = vmatprep.subr.bf16.mxu0 0
    %2301 = vmatpush1.bf16.msra.mxu0 0
    %2302 = vmatprep.subr.bf16.mxu0 0
    %2303 = vmatpush1.bf16.msra.mxu0 0
    %2304 = vmatprep.subr.bf16.mxu0 0
    %2305 = vmatpush1.bf16.msra.mxu0 0
    %2306 = vmatprep.subr.bf16.mxu0 0
    %2307 = vmatpush1.bf16.msra.mxu0 0
    %2308 = vmatprep.subr.bf16.mxu0 0
    %2309 = vmatpush1.bf16.msra.mxu0 0
    %2310 = vmatprep.subr.bf16.mxu0 0
    %2311 = vmatpush1.bf16.msra.mxu0 0
    %2312 = vmatprep.subr.bf16.mxu0 0
    %2313 = vmatpush1.bf16.msra.mxu0 0
    %2314 = vmatprep.mubr.bf16.mxu0 0
    %2315 = vmatmul.mubr.bf16.gmra.mrb[0].mxu0 %v2277
    %v2316 = vpop.f32.mrb[0].mxu0
    %v2317 = vadd.f32 0.0, %v2316
    %v2318 = vpop.f32.mrb[0].mxu0
    %v2319 = vpop.f32.mrb[0].mxu0
    %v2320 = vpop.f32.mrb[0].mxu0
    %2321 = vdwg.mxu0
    %2323 = vrot.lane.b32.xlu0 %v2104, 64
    %v2324 = vpop.permute.xlu0 %2323
    %2326 = vrot.lane.b32.xlu0 %v2106, 64
    %v2327 = vpop.permute.xlu0 %2326
    %v2329 = vsel %vm458, %v2324, 0
    %v2332 = vsel %vm458, %v2327, 0
    %2334 = vmatprep.subr.bf16.mxu0 0
    %2335 = vmatpush1.bf16.xpose.msra.mxu0 %v2332
    %2336 = vmatprep.subr.bf16.mxu0 0
    %2337 = vmatpush1.bf16.xpose.msra.mxu0 0
    %2338 = vmatprep.subr.bf16.mxu0 0
    %2339 = vmatpush1.bf16.xpose.msra.mxu0 0
    %2340 = vmatprep.subr.bf16.mxu0 0
    %2341 = vmatpush1.bf16.xpose.msra.mxu0 0
    %2342 = vmatprep.subr.bf16.mxu0 0
    %2343 = vmatpush1.bf16.xpose.msra.mxu0 0
    %2344 = vmatprep.subr.bf16.mxu0 0
    %2345 = vmatpush1.bf16.xpose.msra.mxu0 0
    %2346 = vmatprep.subr.bf16.mxu0 0
    %2347 = vmatpush1.bf16.xpose.msra.mxu0 0
    %2348 = vmatprep.subr.bf16.mxu0 0
    %2349 = vmatpush1.bf16.xpose.msra.mxu0 0
    %2350 = vmatprep.subr.bf16.mxu0 0
    %2351 = vmatpush1.bf16.xpose.msra.mxu0 0
    %2352 = vmatprep.subr.bf16.mxu0 0
    %2353 = vmatpush1.bf16.xpose.msra.mxu0 0
    %2354 = vmatprep.subr.bf16.mxu0 0
    %2355 = vmatpush1.bf16.xpose.msra.mxu0 0
    %2356 = vmatprep.subr.bf16.mxu0 0
    %2357 = vmatpush1.bf16.xpose.msra.mxu0 0
    %2358 = vmatprep.subr.bf16.mxu0 0
    %2359 = vmatpush1.bf16.xpose.msra.mxu0 0
    %2360 = vmatprep.subr.bf16.mxu0 0
    %2361 = vmatpush1.bf16.xpose.msra.mxu0 0
    %2362 = vmatprep.subr.bf16.mxu0 0
    %2363 = vmatpush1.bf16.xpose.msra.mxu0 0
    %2364 = vmatprep.subr.bf16.mxu0 0
    %2365 = vmatpush1.bf16.xpose.msra.mxu0 0
    %2366 = vmatprep.mubr.bf16.mxu0 0
    %2367 = vmatmul.mubr.bf16.gmra.mrb[0].mxu0 %v2329
    %v2368 = vpop.f32.mrb[0].mxu0
    %v2369 = vadd.f32 0.0, %v2368
    %v2370 = vpop.f32.mrb[0].mxu0
    %v2371 = vpop.f32.mrb[0].mxu0
    %v2372 = vpop.f32.mrb[0].mxu0
    %2373 = vdwg.mxu0
    %2375 = vrot.lane.b32.xlu0 %v2105, 64
    %v2376 = vpop.permute.xlu0 %2375
    %2378 = vrot.lane.b32.xlu0 %v2107, 64
    %v2379 = vpop.permute.xlu0 %2378
    %v2381 = vsel %vm458, %v2376, 0
    %v2384 = vsel %vm458, %v2379, 0
    %2386 = vmatprep.subr.bf16.mxu0 0
    %2387 = vmatpush1.bf16.xpose.msra.mxu0 %v2384
    %2388 = vmatprep.subr.bf16.mxu0 0
    %2389 = vmatpush1.bf16.xpose.msra.mxu0 0
    %2390 = vmatprep.subr.bf16.mxu0 0
    %2391 = vmatpush1.bf16.xpose.msra.mxu0 0
    %2392 = vmatprep.subr.bf16.mxu0 0
    %2393 = vmatpush1.bf16.xpose.msra.mxu0 0
    %2394 = vmatprep.subr.bf16.mxu0 0
    %2395 = vmatpush1.bf16.xpose.msra.mxu0 0
    %2396 = vmatprep.subr.bf16.mxu0 0
    %2397 = vmatpush1.bf16.xpose.msra.mxu0 0
    %2398 = vmatprep.subr.bf16.mxu0 0
    %2399 = vmatpush1.bf16.xpose.msra.mxu0 0
    %2400 = vmatprep.subr.bf16.mxu0 0
    %2401 = vmatpush1.bf16.xpose.msra.mxu0 0
    %2402 = vmatprep.subr.bf16.mxu0 0
    %2403 = vmatpush1.bf16.xpose.msra.mxu0 0
    %2404 = vmatprep.subr.bf16.mxu0 0
    %2405 = vmatpush1.bf16.xpose.msra.mxu0 0
    %2406 = vmatprep.subr.bf16.mxu0 0
    %2407 = vmatpush1.bf16.xpose.msra.mxu0 0
    %2408 = vmatprep.subr.bf16.mxu0 0
    %2409 = vmatpush1.bf16.xpose.msra.mxu0 0
    %2410 = vmatprep.subr.bf16.mxu0 0
    %2411 = vmatpush1.bf16.xpose.msra.mxu0 0
    %2412 = vmatprep.subr.bf16.mxu0 0
    %2413 = vmatpush1.bf16.xpose.msra.mxu0 0
    %2414 = vmatprep.subr.bf16.mxu0 0
    %2415 = vmatpush1.bf16.xpose.msra.mxu0 0
    %2416 = vmatprep.subr.bf16.mxu0 0
    %2417 = vmatpush1.bf16.xpose.msra.mxu0 0
    %2418 = vmatprep.mubr.bf16.mxu0 0
    %2419 = vmatmul.mubr.bf16.gmra.mrb[0].mxu0 %v2381
    %v2420 = vpop.f32.mrb[0].mxu0
    %v2421 = vadd.f32 0.0, %v2420
    %v2422 = vpop.f32.mrb[0].mxu0
    %v2423 = vpop.f32.mrb[0].mxu0
    %v2424 = vpop.f32.mrb[0].mxu0
    %2425 = vdwg.mxu0
    %v2426 = vmul.f32 %v2369, 0.125
    %v2427 = vmul.f32 %v2421, 0.125
    %v2428 = vadd.f32 %v2426, %v150
    %v2429 = vadd.f32 %v2427, %v150
    %v2430 = vsel %vm555, %v2428, -inf
    %2431 = vmax.xlane.f32.xlu0 %v2430
    %v2432 = vpop.xlane.xlu0 %2431
    %v2433 = vsel %vm555, %v2429, -inf
    %2434 = vmax.xlane.f32.xlu0 %v2433
    %v2435 = vpop.xlane.xlu0 %2434
    %v2436 = vsub.f32 %v2428, %v2432
    %v2437 = vsub.f32 %v2429, %v2435
    %v2438 = vmul.f32 %v2436, 1.442695
    %v2439 = vpow.pop %v2438
    %v2440 = vmul.f32 %v2437, 1.442695
    %v2441 = vpow.pop %v2440
    %v2442 = vsel %vm555, %v2439, 0.0
    %2443 = vadd.xlane.f32.xlu0 %v2442
    %v2444 = vpop.xlane.xlu0 %2443
    %v2445 = vsel %vm555, %v2441, 0.0
    %2446 = vadd.xlane.f32.xlu0 %v2445
    %v2447 = vpop.xlane.xlu0 %2446
    %v2448 = vrcp.pop %v2444
    %v2449 = vrcp.pop %v2447
    %v2450 = vmul.f32 %v2439, %v2448
    %v2451 = vmul.f32 %v2441, %v2449
    %v2452 = vpack.c.bf16 %v2450, %v2450
    %v2453 = vpack.c.bf16 %v2451, %v2451
    %2455 = vrot.lane.b32.xlu0 %v2228, 64
    %v2456 = vpop.permute.xlu0 %2455
    %v2458 = vsel %vm555, %v2452, 0
    %v2461 = vsel %vm585, %v2456, 0
    %2463 = vmatprep.subr.bf16.mxu0 0
    %2464 = vmatpush1.bf16.msra.mxu0 %v2461
    %2465 = vmatprep.subr.bf16.mxu0 0
    %2466 = vmatpush1.bf16.msra.mxu0 0
    %2467 = vmatprep.subr.bf16.mxu0 0
    %2468 = vmatpush1.bf16.msra.mxu0 0
    %2469 = vmatprep.subr.bf16.mxu0 0
    %2470 = vmatpush1.bf16.msra.mxu0 0
    %2471 = vmatprep.subr.bf16.mxu0 0
    %2472 = vmatpush1.bf16.msra.mxu0 0
    %2473 = vmatprep.subr.bf16.mxu0 0
    %2474 = vmatpush1.bf16.msra.mxu0 0
    %2475 = vmatprep.subr.bf16.mxu0 0
    %2476 = vmatpush1.bf16.msra.mxu0 0
    %2477 = vmatprep.subr.bf16.mxu0 0
    %2478 = vmatpush1.bf16.msra.mxu0 0
    %2479 = vmatprep.subr.bf16.mxu0 0
    %2480 = vmatpush1.bf16.msra.mxu0 0
    %2481 = vmatprep.subr.bf16.mxu0 0
    %2482 = vmatpush1.bf16.msra.mxu0 0
    %2483 = vmatprep.subr.bf16.mxu0 0
    %2484 = vmatpush1.bf16.msra.mxu0 0
    %2485 = vmatprep.subr.bf16.mxu0 0
    %2486 = vmatpush1.bf16.msra.mxu0 0
    %2487 = vmatprep.subr.bf16.mxu0 0
    %2488 = vmatpush1.bf16.msra.mxu0 0
    %2489 = vmatprep.subr.bf16.mxu0 0
    %2490 = vmatpush1.bf16.msra.mxu0 0
    %2491 = vmatprep.subr.bf16.mxu0 0
    %2492 = vmatpush1.bf16.msra.mxu0 0
    %2493 = vmatprep.subr.bf16.mxu0 0
    %2494 = vmatpush1.bf16.msra.mxu0 0
    %2495 = vmatprep.mubr.bf16.mxu0 0
    %2496 = vmatmul.mubr.bf16.gmra.mrb[0].mxu0 %v2458
    %v2497 = vpop.f32.mrb[0].mxu0
    %v2498 = vadd.f32 0.0, %v2497
    %v2499 = vpop.f32.mrb[0].mxu0
    %v2500 = vpop.f32.mrb[0].mxu0
    %v2501 = vpop.f32.mrb[0].mxu0
    %2502 = vdwg.mxu0
    %2504 = vrot.lane.b32.xlu0 %v2229, 64
    %v2505 = vpop.permute.xlu0 %2504
    %v2507 = vsel %vm555, %v2453, 0
    %v2510 = vsel %vm585, %v2505, 0
    %2512 = vmatprep.subr.bf16.mxu0 0
    %2513 = vmatpush1.bf16.msra.mxu0 %v2510
    %2514 = vmatprep.subr.bf16.mxu0 0
    %2515 = vmatpush1.bf16.msra.mxu0 0
    %2516 = vmatprep.subr.bf16.mxu0 0
    %2517 = vmatpush1.bf16.msra.mxu0 0
    %2518 = vmatprep.subr.bf16.mxu0 0
    %2519 = vmatpush1.bf16.msra.mxu0 0
    %2520 = vmatprep.subr.bf16.mxu0 0
    %2521 = vmatpush1.bf16.msra.mxu0 0
    %2522 = vmatprep.subr.bf16.mxu0 0
    %2523 = vmatpush1.bf16.msra.mxu0 0
    %2524 = vmatprep.subr.bf16.mxu0 0
    %2525 = vmatpush1.bf16.msra.mxu0 0
    %2526 = vmatprep.subr.bf16.mxu0 0
    %2527 = vmatpush1.bf16.msra.mxu0 0
    %2528 = vmatprep.subr.bf16.mxu0 0
    %2529 = vmatpush1.bf16.msra.mxu0 0
    %2530 = vmatprep.subr.bf16.mxu0 0
    %2531 = vmatpush1.bf16.msra.mxu0 0
    %2532 = vmatprep.subr.bf16.mxu0 0
    %2533 = vmatpush1.bf16.msra.mxu0 0
    %2534 = vmatprep.subr.bf16.mxu0 0
    %2535 = vmatpush1.bf16.msra.mxu0 0
    %2536 = vmatprep.subr.bf16.mxu0 0
    %2537 = vmatpush1.bf16.msra.mxu0 0
    %2538 = vmatprep.subr.bf16.mxu0 0
    %2539 = vmatpush1.bf16.msra.mxu0 0
    %2540 = vmatprep.subr.bf16.mxu0 0
    %2541 = vmatpush1.bf16.msra.mxu0 0
    %2542 = vmatprep.subr.bf16.mxu0 0
    %2543 = vmatpush1.bf16.msra.mxu0 0
    %2544 = vmatprep.mubr.bf16.mxu0 0
    %2545 = vmatmul.mubr.bf16.gmra.mrb[0].mxu0 %v2507
    %v2546 = vpop.f32.mrb[0].mxu0
    %v2547 = vadd.f32 0.0, %v2546
    %v2548 = vpop.f32.mrb[0].mxu0
    %v2549 = vpop.f32.mrb[0].mxu0
    %v2550 = vpop.f32.mrb[0].mxu0
    %2551 = vdwg.mxu0
    %2554 = vrot.lane.b32.xlu0 %v2498, 64
    %v2555 = vpop.permute.xlu0 %2554
    %2556 = vrot.lane.b32.xlu0 %v2547, 64
    %v2557 = vpop.permute.xlu0 %2556
    %v2560 = vsel %vm458, %v2271, %v2555
    %v2561 = vsel %vm458, %v2317, %v2557
    %v2562 = vpack.c.bf16 %v2561, %v2560
    %s2563 = scalar_lea.vmem [#allocation7], 64
    %v2564 = vld [vmem:[%s2563] sm:$0xf]
    %v2565 = vld [vmem:[%s2563 + $0x4] sm:$0xf]
    %v2566 = vld [vmem:[%s2563 + $0x8] sm:$0xf]
    %v2567 = vld [vmem:[%s2563 + $0xc] sm:$0xf]
    %v2568 = vld [vmem:[%s2563 + $0x10] sm:$0xf]
    %v2569 = vld [vmem:[%s2563 + $0x14] sm:$0xf]
    %v2570 = vld [vmem:[%s2563 + $0x18] sm:$0xf]
    %v2571 = vld [vmem:[%s2563 + $0x1c] sm:$0xf]
    %v2572 = vld [vmem:[%s2563 + $0x20] sm:$0xf]
    %v2573 = vld [vmem:[%s2563 + $0x24] sm:$0xf]
    %v2574 = vld [vmem:[%s2563 + $0x28] sm:$0xf]
    %v2575 = vld [vmem:[%s2563 + $0x2c] sm:$0xf]
    %v2576 = vld [vmem:[%s2563 + $0x30] sm:$0xf]
    %v2577 = vld [vmem:[%s2563 + $0x34] sm:$0xf]
    %v2578 = vld [vmem:[%s2563 + $0x38] sm:$0xf]
    %v2579 = vld [vmem:[%s2563 + $0x3c] sm:$0xf]
    %v2596 = vunpack.c.l.b16 %v2564
    %v2597 = vunpack.c.l.b16 %v2565
    %v2598 = vunpack.c.l.b16 %v2566
    %v2599 = vunpack.c.l.b16 %v2567
    %v2600 = vunpack.c.l.b16 %v2568
    %v2601 = vunpack.c.l.b16 %v2569
    %v2602 = vunpack.c.l.b16 %v2570
    %v2603 = vunpack.c.l.b16 %v2571
    %v2604 = vunpack.c.l.b16 %v2572
    %v2605 = vunpack.c.l.b16 %v2573
    %v2606 = vunpack.c.l.b16 %v2574
    %v2607 = vunpack.c.l.b16 %v2575
    %v2608 = vunpack.c.l.b16 %v2576
    %v2609 = vunpack.c.l.b16 %v2577
    %v2610 = vunpack.c.l.b16 %v2578
    %v2611 = vunpack.c.l.b16 %v2579
    %v2612 = vpack.c.b16 %v2597, %v2596
    %v2613 = vpack.c.b16 %v2599, %v2598
    %v2614 = vpack.c.b16 %v2601, %v2600
    %v2615 = vpack.c.b16 %v2603, %v2602
    %v2616 = vpack.c.b16 %v2605, %v2604
    %v2617 = vpack.c.b16 %v2607, %v2606
    %v2618 = vpack.c.b16 %v2609, %v2608
    %v2619 = vpack.c.b16 %v2611, %v2610
    %2628 = vmatprep.subr.bf16.mxu0 0
    %2629 = vmatpush1.bf16.msra.mxu0 %v2612
    %2630 = vmatprep.subr.bf16.mxu0 0
    %2631 = vmatpush1.bf16.msra.mxu0 %v2613
    %2632 = vmatprep.subr.bf16.mxu0 0
    %2633 = vmatpush1.bf16.msra.mxu0 %v2614
    %2634 = vmatprep.subr.bf16.mxu0 0
    %2635 = vmatpush1.bf16.msra.mxu0 %v2615
    %2636 = vmatprep.subr.bf16.mxu0 0
    %2637 = vmatpush1.bf16.msra.mxu0 %v2616
    %2638 = vmatprep.subr.bf16.mxu0 0
    %2639 = vmatpush1.bf16.msra.mxu0 %v2617
    %2640 = vmatprep.subr.bf16.mxu0 0
    %2641 = vmatpush1.bf16.msra.mxu0 %v2618
    %2642 = vmatprep.subr.bf16.mxu0 0
    %2643 = vmatpush1.bf16.msra.mxu0 %v2619
    %2644 = vmatprep.subr.bf16.mxu0 0
    %2645 = vmatpush1.bf16.msra.mxu0 0
    %2646 = vmatprep.subr.bf16.mxu0 0
    %2647 = vmatpush1.bf16.msra.mxu0 0
    %2648 = vmatprep.subr.bf16.mxu0 0
    %2649 = vmatpush1.bf16.msra.mxu0 0
    %2650 = vmatprep.subr.bf16.mxu0 0
    %2651 = vmatpush1.bf16.msra.mxu0 0
    %2652 = vmatprep.subr.bf16.mxu0 0
    %2653 = vmatpush1.bf16.msra.mxu0 0
    %2654 = vmatprep.subr.bf16.mxu0 0
    %2655 = vmatpush1.bf16.msra.mxu0 0
    %2656 = vmatprep.subr.bf16.mxu0 0
    %2657 = vmatpush1.bf16.msra.mxu0 0
    %2658 = vmatprep.subr.bf16.mxu0 0
    %2659 = vmatpush1.bf16.msra.mxu0 0
    %2660 = vmatprep.mubr.bf16.mxu0 0
    %2661 = vmatmul.mubr.bf16.gmra.mrb[0].mxu0 %v2562
    %v2662 = vpop.f32.mrb[0].mxu0
    %v2663 = vadd.f32 0.0, %v2662
    %v2664 = vpop.f32.mrb[0].mxu0
    %v2665 = vpop.f32.mrb[0].mxu0
    %v2666 = vadd.f32 0.0, %v2665
    %v2667 = vpop.f32.mrb[0].mxu0
    %2668 = vdwg.mxu0
    %v2669 = vadd.f32 %v1796, %v2663
    %v2670 = vadd.f32 %v1797, %v2666
    %s2671 = scalar_lea.vmem %s7, 1
    %v2672 = vld [vmem:[%s2671] sm:$0x1]
    %v2674 = vlaneseq
    %v2675 = vshrl.u32 %v2674, 7
    %v2676 = vsub.s32 0, %v2675
    %v2677 = vrot.slane %v2672, %v2676
    %v2679 = vadd.f32 %v2669, %v2677
    %v2680 = vadd.f32 %v2670, %v2677
    %s2681 = scalar_lea.vmem %s8, 1
    %v2682 = vld [vmem:[%s2681] sm:$0x1]
    %s2683 = scalar_lea.vmem %s9, 1
    %v2684 = vld [vmem:[%s2683] sm:$0x1]
    %2685 = vadd.xlane.f32.xlu0 %v2679
    %v2686 = vpop.xlane.xlu0 %2685
    %2687 = vadd.xlane.f32.xlu0 %v2680
    %v2688 = vpop.xlane.xlu0 %2687
    %v2689 = vmul.f32 %v2686, %v157
    %v2690 = vmul.f32 %v2688, %v157
    %v2691 = vsub.f32 %v2679, %v2689
    %v2692 = vsub.f32 %v2680, %v2690
    %v2693 = vmul.f32 %v2691, %v2691
    %v2694 = vmul.f32 %v2692, %v2692
    %2695 = vadd.xlane.f32.xlu0 %v2693
    %v2696 = vpop.xlane.xlu0 %2695
    %2697 = vadd.xlane.f32.xlu0 %v2694
    %v2698 = vpop.xlane.xlu0 %2697
    %v2699 = vmul.f32 %v2696, %v157
    %v2700 = vmul.f32 %v2698, %v157
    %v2701 = vadd.f32 %v2699, 1e-05
    %v2702 = vadd.f32 %v2700, 1e-05
    %v2703 = vrsqrt.pop %v2701
    %v2704 = vrsqrt.pop %v2702
    %v2705 = vmul.f32 %v2691, %v2703
    %v2706 = vmul.f32 %v2692, %v2704
    %v2708 = vlaneseq
    %v2709 = vshrl.u32 %v2708, 7
    %v2710 = vsub.s32 0, %v2709
    %v2711 = vrot.slane %v2682, %v2710
    %v2713 = vmul.f32 %v2705, %v2711
    %v2714 = vmul.f32 %v2706, %v2711
    %v2716 = vlaneseq
    %v2717 = vshrl.u32 %v2716, 7
    %v2718 = vsub.s32 0, %v2717
    %v2719 = vrot.slane %v2684, %v2718
    %v2721 = vadd.f32 %v2713, %v2719
    %v2722 = vadd.f32 %v2714, %v2719
    %v2723 = vpack.c.bf16 %v2722, %v2721
    %s2724 = scalar_lea.vmem [#allocation8], 256
    %v2725 = vld [vmem:[%s2724] sm:$0xff]
    %v2726 = vld [vmem:[%s2724 + $0x8] sm:$0xff]
    %v2727 = vld [vmem:[%s2724 + $0x10] sm:$0xff]
    %v2728 = vld [vmem:[%s2724 + $0x18] sm:$0xff]
    %v2729 = vld [vmem:[%s2724 + $0x20] sm:$0xff]
    %v2730 = vld [vmem:[%s2724 + $0x28] sm:$0xff]
    %v2731 = vld [vmem:[%s2724 + $0x30] sm:$0xff]
    %v2732 = vld [vmem:[%s2724 + $0x38] sm:$0xff]
    %v2733 = vld [vmem:[%s2724 + $0x40] sm:$0xff]
    %v2734 = vld [vmem:[%s2724 + $0x48] sm:$0xff]
    %v2735 = vld [vmem:[%s2724 + $0x50] sm:$0xff]
    %v2736 = vld [vmem:[%s2724 + $0x58] sm:$0xff]
    %v2737 = vld [vmem:[%s2724 + $0x60] sm:$0xff]
    %v2738 = vld [vmem:[%s2724 + $0x68] sm:$0xff]
    %v2739 = vld [vmem:[%s2724 + $0x70] sm:$0xff]
    %v2740 = vld [vmem:[%s2724 + $0x78] sm:$0xff]
    %v2741 = vld [vmem:[%s2724 + $0x80] sm:$0xff]
    %v2742 = vld [vmem:[%s2724 + $0x88] sm:$0xff]
    %v2743 = vld [vmem:[%s2724 + $0x90] sm:$0xff]
    %v2744 = vld [vmem:[%s2724 + $0x98] sm:$0xff]
    %v2745 = vld [vmem:[%s2724 + $0xa0] sm:$0xff]
    %v2746 = vld [vmem:[%s2724 + $0xa8] sm:$0xff]
    %v2747 = vld [vmem:[%s2724 + $0xb0] sm:$0xff]
    %v2748 = vld [vmem:[%s2724 + $0xb8] sm:$0xff]
    %v2749 = vld [vmem:[%s2724 + $0xc0] sm:$0xff]
    %v2750 = vld [vmem:[%s2724 + $0xc8] sm:$0xff]
    %v2751 = vld [vmem:[%s2724 + $0xd0] sm:$0xff]
    %v2752 = vld [vmem:[%s2724 + $0xd8] sm:$0xff]
    %v2753 = vld [vmem:[%s2724 + $0xe0] sm:$0xff]
    %v2754 = vld [vmem:[%s2724 + $0xe8] sm:$0xff]
    %v2755 = vld [vmem:[%s2724 + $0xf0] sm:$0xff]
    %v2756 = vld [vmem:[%s2724 + $0xf8] sm:$0xff]
    %s2757 = scalar_lea.vmem %s11, 4
    %v2758 = vld [vmem:[%s2757] sm:$0xf]
    %v2760 = vlaneseq
    %v2761 = vshrl.u32 %v2760, 7
    %v2762 = vsub.s32 0, %v2761
    %v2763 = vrot.slane %v2758, %v2762
    %v2764 = vlaneseq
    %v2765 = vshrl.u32 %v2764, 7
    %v2766 = vsub.s32 1, %v2765
    %v2767 = vrot.slane %v2758, %v2766
    %v2768 = vlaneseq
    %v2769 = vshrl.u32 %v2768, 7
    %v2770 = vsub.s32 2, %v2769
    %v2771 = vrot.slane %v2758, %v2770
    %v2772 = vlaneseq
    %v2773 = vshrl.u32 %v2772, 7
    %v2774 = vsub.s32 3, %v2773
    %v2775 = vrot.slane %v2758, %v2774
    %v2812 = vunpack.c.l.b16 %v2725
    %v2813 = vunpack.c.h.b16 %v2725
    %v2814 = vunpack.c.l.b16 %v2726
    %v2815 = vunpack.c.h.b16 %v2726
    %v2816 = vunpack.c.l.b16 %v2727
    %v2817 = vunpack.c.h.b16 %v2727
    %v2818 = vunpack.c.l.b16 %v2728
    %v2819 = vunpack.c.h.b16 %v2728
    %v2820 = vunpack.c.l.b16 %v2729
    %v2821 = vunpack.c.h.b16 %v2729
    %v2822 = vunpack.c.l.b16 %v2730
    %v2823 = vunpack.c.h.b16 %v2730
    %v2824 = vunpack.c.l.b16 %v2731
    %v2825 = vunpack.c.h.b16 %v2731
    %v2826 = vunpack.c.l.b16 %v2732
    %v2827 = vunpack.c.h.b16 %v2732
    %v2828 = vunpack.c.l.b16 %v2733
    %v2829 = vunpack.c.h.b16 %v2733
    %v2830 = vunpack.c.l.b16 %v2734
    %v2831 = vunpack.c.h.b16 %v2734
    %v2832 = vunpack.c.l.b16 %v2735
    %v2833 = vunpack.c.h.b16 %v2735
    %v2834 = vunpack.c.l.b16 %v2736
    %v2835 = vunpack.c.h.b16 %v2736
    %v2836 = vunpack.c.l.b16 %v2737
    %v2837 = vunpack.c.h.b16 %v2737
    %v2838 = vunpack.c.l.b16 %v2738
    %v2839 = vunpack.c.h.b16 %v2738
    %v2840 = vunpack.c.l.b16 %v2739
    %v2841 = vunpack.c.h.b16 %v2739
    %v2842 = vunpack.c.l.b16 %v2740
    %v2843 = vunpack.c.h.b16 %v2740
    %v2844 = vunpack.c.l.b16 %v2741
    %v2845 = vunpack.c.h.b16 %v2741
    %v2846 = vunpack.c.l.b16 %v2742
    %v2847 = vunpack.c.h.b16 %v2742
    %v2848 = vunpack.c.l.b16 %v2743
    %v2849 = vunpack.c.h.b16 %v2743
    %v2850 = vunpack.c.l.b16 %v2744
    %v2851 = vunpack.c.h.b16 %v2744
    %v2852 = vunpack.c.l.b16 %v2745
    %v2853 = vunpack.c.h.b16 %v2745
    %v2854 = vunpack.c.l.b16 %v2746
    %v2855 = vunpack.c.h.b16 %v2746
    %v2856 = vunpack.c.l.b16 %v2747
    %v2857 = vunpack.c.h.b16 %v2747
    %v2858 = vunpack.c.l.b16 %v2748
    %v2859 = vunpack.c.h.b16 %v2748
    %v2860 = vunpack.c.l.b16 %v2749
    %v2861 = vunpack.c.h.b16 %v2749
    %v2862 = vunpack.c.l.b16 %v2750
    %v2863 = vunpack.c.h.b16 %v2750
    %v2864 = vunpack.c.l.b16 %v2751
    %v2865 = vunpack.c.h.b16 %v2751
    %v2866 = vunpack.c.l.b16 %v2752
    %v2867 = vunpack.c.h.b16 %v2752
    %v2868 = vunpack.c.l.b16 %v2753
    %v2869 = vunpack.c.h.b16 %v2753
    %v2870 = vunpack.c.l.b16 %v2754
    %v2871 = vunpack.c.h.b16 %v2754
    %v2872 = vunpack.c.l.b16 %v2755
    %v2873 = vunpack.c.h.b16 %v2755
    %v2874 = vunpack.c.l.b16 %v2756
    %v2875 = vunpack.c.h.b16 %v2756
    %v2876 = vpack.c.b16 %v2816, %v2812
    %v2877 = vpack.c.b16 %v2817, %v2813
    %v2878 = vpack.c.b16 %v2818, %v2814
    %v2879 = vpack.c.b16 %v2819, %v2815
    %v2880 = vpack.c.b16 %v2824, %v2820
    %v2881 = vpack.c.b16 %v2825, %v2821
    %v2882 = vpack.c.b16 %v2826, %v2822
    %v2883 = vpack.c.b16 %v2827, %v2823
    %v2884 = vpack.c.b16 %v2832, %v2828
    %v2885 = vpack.c.b16 %v2833, %v2829
    %v2886 = vpack.c.b16 %v2834, %v2830
    %v2887 = vpack.c.b16 %v2835, %v2831
    %v2888 = vpack.c.b16 %v2840, %v2836
    %v2889 = vpack.c.b16 %v2841, %v2837
    %v2890 = vpack.c.b16 %v2842, %v2838
    %v2891 = vpack.c.b16 %v2843, %v2839
    %v2892 = vpack.c.b16 %v2848, %v2844
    %v2893 = vpack.c.b16 %v2849, %v2845
    %v2894 = vpack.c.b16 %v2850, %v2846
    %v2895 = vpack.c.b16 %v2851, %v2847
    %v2896 = vpack.c.b16 %v2856, %v2852
    %v2897 = vpack.c.b16 %v2857, %v2853
    %v2898 = vpack.c.b16 %v2858, %v2854
    %v2899 = vpack.c.b16 %v2859, %v2855
    %v2900 = vpack.c.b16 %v2864, %v2860
    %v2901 = vpack.c.b16 %v2865, %v2861
    %v2902 = vpack.c.b16 %v2866, %v2862
    %v2903 = vpack.c.b16 %v2867, %v2863
    %v2904 = vpack.c.b16 %v2872, %v2868
    %v2905 = vpack.c.b16 %v2873, %v2869
    %v2906 = vpack.c.b16 %v2874, %v2870
    %v2907 = vpack.c.b16 %v2875, %v2871
    %2940 = vmatprep.subr.bf16.mxu0 %v2877
    %2941 = vmatpush1.bf16.msra.mxu0 %v2876
    %2942 = vmatprep.subr.bf16.mxu0 %v2881
    %2943 = vmatpush1.bf16.msra.mxu0 %v2880
    %2944 = vmatprep.subr.bf16.mxu0 %v2885
    %2945 = vmatpush1.bf16.msra.mxu0 %v2884
    %2946 = vmatprep.subr.bf16.mxu0 %v2889
    %2947 = vmatpush1.bf16.msra.mxu0 %v2888
    %2948 = vmatprep.subr.bf16.mxu0 %v2893
    %2949 = vmatpush1.bf16.msra.mxu0 %v2892
    %2950 = vmatprep.subr.bf16.mxu0 %v2897
    %2951 = vmatpush1.bf16.msra.mxu0 %v2896
    %2952 = vmatprep.subr.bf16.mxu0 %v2901
    %2953 = vmatpush1.bf16.msra.mxu0 %v2900
    %2954 = vmatprep.subr.bf16.mxu0 %v2905
    %2955 = vmatpush1.bf16.msra.mxu0 %v2904
    %2956 = vmatprep.subr.bf16.mxu0 0
    %2957 = vmatpush1.bf16.msra.mxu0 0
    %2958 = vmatprep.subr.bf16.mxu0 0
    %2959 = vmatpush1.bf16.msra.mxu0 0
    %2960 = vmatprep.subr.bf16.mxu0 0
    %2961 = vmatpush1.bf16.msra.mxu0 0
    %2962 = vmatprep.subr.bf16.mxu0 0
    %2963 = vmatpush1.bf16.msra.mxu0 0
    %2964 = vmatprep.subr.bf16.mxu0 0
    %2965 = vmatpush1.bf16.msra.mxu0 0
    %2966 = vmatprep.subr.bf16.mxu0 0
    %2967 = vmatpush1.bf16.msra.mxu0 0
    %2968 = vmatprep.subr.bf16.mxu0 0
    %2969 = vmatpush1.bf16.msra.mxu0 0
    %2970 = vmatprep.subr.bf16.mxu0 0
    %2971 = vmatpush1.bf16.msra.mxu0 0
    %2972 = vmatprep.mubr.bf16.mxu0 0
    %2973 = vmatmul.mubr.bf16.gmra.mrb[0].mxu0 %v2723
    %v2974 = vpop.f32.mrb[0].mxu0
    %v2975 = vadd.f32 %v2763, %v2974
    %v2976 = vpop.f32.mrb[0].mxu0
    %v2977 = vadd.f32 %v2767, %v2976
    %v2978 = vpop.f32.mrb[0].mxu0
    %v2979 = vadd.f32 %v2763, %v2978
    %v2980 = vpop.f32.mrb[0].mxu0
    %v2981 = vadd.f32 %v2767, %v2980
    %2982 = vdwg.mxu0
    %2983 = vmatprep.subr.bf16.mxu0 %v2879
    %2984 = vmatpush1.bf16.msra.mxu0 %v2878
    %2985 = vmatprep.subr.bf16.mxu0 %v2883
    %2986 = vmatpush1.bf16.msra.mxu0 %v2882
    %2987 = vmatprep.subr.bf16.mxu0 %v2887
    %2988 = vmatpush1.bf16.msra.mxu0 %v2886
    %2989 = vmatprep.subr.bf16.mxu0 %v2891
    %2990 = vmatpush1.bf16.msra.mxu0 %v2890
    %2991 = vmatprep.subr.bf16.mxu0 %v2895
    %2992 = vmatpush1.bf16.msra.mxu0 %v2894
    %2993 = vmatprep.subr.bf16.mxu0 %v2899
    %2994 = vmatpush1.bf16.msra.mxu0 %v2898
    %2995 = vmatprep.subr.bf16.mxu0 %v2903
    %2996 = vmatpush1.bf16.msra.mxu0 %v2902
    %2997 = vmatprep.subr.bf16.mxu0 %v2907
    %2998 = vmatpush1.bf16.msra.mxu0 %v2906
    %2999 = vmatprep.subr.bf16.mxu0 0
    %3000 = vmatpush1.bf16.msra.mxu0 0
    %3001 = vmatprep.subr.bf16.mxu0 0
    %3002 = vmatpush1.bf16.msra.mxu0 0
    %3003 = vmatprep.subr.bf16.mxu0 0
    %3004 = vmatpush1.bf16.msra.mxu0 0
    %3005 = vmatprep.subr.bf16.mxu0 0
    %3006 = vmatpush1.bf16.msra.mxu0 0
    %3007 = vmatprep.subr.bf16.mxu0 0
    %3008 = vmatpush1.bf16.msra.mxu0 0
    %3009 = vmatprep.subr.bf16.mxu0 0
    %3010 = vmatpush1.bf16.msra.mxu0 0
    %3011 = vmatprep.subr.bf16.mxu0 0
    %3012 = vmatpush1.bf16.msra.mxu0 0
    %3013 = vmatprep.subr.bf16.mxu0 0
    %3014 = vmatpush1.bf16.msra.mxu0 0
    %3015 = vmatprep.mubr.bf16.mxu0 0
    %3016 = vmatmul.mubr.bf16.gmra.mrb[0].mxu0 %v2723
    %v3017 = vpop.f32.mrb[0].mxu0
    %v3018 = vadd.f32 %v2771, %v3017
    %v3019 = vpop.f32.mrb[0].mxu0
    %v3020 = vadd.f32 %v2775, %v3019
    %v3021 = vpop.f32.mrb[0].mxu0
    %v3022 = vadd.f32 %v2771, %v3021
    %v3023 = vpop.f32.mrb[0].mxu0
    %v3024 = vadd.f32 %v2775, %v3023
    %3025 = vdwg.mxu0
    %v3026 = vmul.f32 %v2975, 0.5
    %v3027 = vmul.f32 %v2977, 0.5
    %v3028 = vmul.f32 %v3018, 0.5
    %v3029 = vmul.f32 %v3020, 0.5
    %v3030 = vmul.f32 %v2979, 0.5
    %v3031 = vmul.f32 %v2981, 0.5
    %v3032 = vmul.f32 %v3022, 0.5
    %v3033 = vmul.f32 %v3024, 0.5
    %v3034 = vmul.f32 %v2975, 0.044715
    %v3035 = vmul.f32 %v2977, 0.044715
    %v3036 = vmul.f32 %v3018, 0.044715
    %v3037 = vmul.f32 %v3020, 0.044715
    %v3038 = vmul.f32 %v2979, 0.044715
    %v3039 = vmul.f32 %v2981, 0.044715
    %v3040 = vmul.f32 %v3022, 0.044715
    %v3041 = vmul.f32 %v3024, 0.044715
    %v3042 = vmul.f32 %v3034, %v2975
    %v3043 = vmul.f32 %v3035, %v2977
    %v3044 = vmul.f32 %v3036, %v3018
    %v3045 = vmul.f32 %v3037, %v3020
    %v3046 = vmul.f32 %v3038, %v2979
    %v3047 = vmul.f32 %v3039, %v2981
    %v3048 = vmul.f32 %v3040, %v3022
    %v3049 = vmul.f32 %v3041, %v3024
    %v3050 = vmul.f32 %v3042, %v2975
    %v3051 = vmul.f32 %v3043, %v2977
    %v3052 = vmul.f32 %v3044, %v3018
    %v3053 = vmul.f32 %v3045, %v3020
    %v3054 = vmul.f32 %v3046, %v2979
    %v3055 = vmul.f32 %v3047, %v2981
    %v3056 = vmul.f32 %v3048, %v3022
    %v3057 = vmul.f32 %v3049, %v3024
    %v3058 = vadd.f32 %v2975, %v3050
    %v3059 = vadd.f32 %v2977, %v3051
    %v3060 = vadd.f32 %v3018, %v3052
    %v3061 = vadd.f32 %v3020, %v3053
    %v3062 = vadd.f32 %v2979, %v3054
    %v3063 = vadd.f32 %v2981, %v3055
    %v3064 = vadd.f32 %v3022, %v3056
    %v3065 = vadd.f32 %v3024, %v3057
    %v3066 = vmul.f32 %v3058, 0.7978846
    %v3067 = vmul.f32 %v3059, 0.7978846
    %v3068 = vmul.f32 %v3060, 0.7978846
    %v3069 = vmul.f32 %v3061, 0.7978846
    %v3070 = vmul.f32 %v3062, 0.7978846
    %v3071 = vmul.f32 %v3063, 0.7978846
    %v3072 = vmul.f32 %v3064, 0.7978846
    %v3073 = vmul.f32 %v3065, 0.7978846
    %v3074 = vtanh.pop %v3066
    %v3075 = vtanh.pop %v3067
    %v3076 = vtanh.pop %v3068
    %v3077 = vtanh.pop %v3069
    %v3078 = vtanh.pop %v3070
    %v3079 = vtanh.pop %v3071
    %v3080 = vtanh.pop %v3072
    %v3081 = vtanh.pop %v3073
    %v3082 = vadd.f32 %v3074, 1.0
    %v3083 = vadd.f32 %v3075, 1.0
    %v3084 = vadd.f32 %v3076, 1.0
    %v3085 = vadd.f32 %v3077, 1.0
    %v3086 = vadd.f32 %v3078, 1.0
    %v3087 = vadd.f32 %v3079, 1.0
    %v3088 = vadd.f32 %v3080, 1.0
    %v3089 = vadd.f32 %v3081, 1.0
    %v3090 = vmul.f32 %v3026, %v3082
    %v3091 = vmul.f32 %v3027, %v3083
    %v3092 = vmul.f32 %v3028, %v3084
    %v3093 = vmul.f32 %v3029, %v3085
    %v3094 = vmul.f32 %v3030, %v3086
    %v3095 = vmul.f32 %v3031, %v3087
    %v3096 = vmul.f32 %v3032, %v3088
    %v3097 = vmul.f32 %v3033, %v3089
    %v3098 = vpack.c.bf16 %v3094, %v3090
    %v3099 = vpack.c.bf16 %v3095, %v3091
    %v3100 = vpack.c.bf16 %v3096, %v3092
    %v3101 = vpack.c.bf16 %v3097, %v3093
    %s3102 = scalar_lea.vmem [#allocation10], 256
    %v3103 = vld [vmem:[%s3102] sm:$0xf]
    %v3104 = vld [vmem:[%s3102 + $0x4] sm:$0xf]
    %v3105 = vld [vmem:[%s3102 + $0x8] sm:$0xf]
    %v3106 = vld [vmem:[%s3102 + $0xc] sm:$0xf]
    %v3107 = vld [vmem:[%s3102 + $0x10] sm:$0xf]
    %v3108 = vld [vmem:[%s3102 + $0x14] sm:$0xf]
    %v3109 = vld [vmem:[%s3102 + $0x18] sm:$0xf]
    %v3110 = vld [vmem:[%s3102 + $0x1c] sm:$0xf]
    %v3111 = vld [vmem:[%s3102 + $0x20] sm:$0xf]
    %v3112 = vld [vmem:[%s3102 + $0x24] sm:$0xf]
    %v3113 = vld [vmem:[%s3102 + $0x28] sm:$0xf]
    %v3114 = vld [vmem:[%s3102 + $0x2c] sm:$0xf]
    %v3115 = vld [vmem:[%s3102 + $0x30] sm:$0xf]
    %v3116 = vld [vmem:[%s3102 + $0x34] sm:$0xf]
    %v3117 = vld [vmem:[%s3102 + $0x38] sm:$0xf]
    %v3118 = vld [vmem:[%s3102 + $0x3c] sm:$0xf]
    %v3119 = vld [vmem:[%s3102 + $0x40] sm:$0xf]
    %v3120 = vld [vmem:[%s3102 + $0x44] sm:$0xf]
    %v3121 = vld [vmem:[%s3102 + $0x48] sm:$0xf]
    %v3122 = vld [vmem:[%s3102 + $0x4c] sm:$0xf]
    %v3123 = vld [vmem:[%s3102 + $0x50] sm:$0xf]
    %v3124 = vld [vmem:[%s3102 + $0x54] sm:$0xf]
    %v3125 = vld [vmem:[%s3102 + $0x58] sm:$0xf]
    %v3126 = vld [vmem:[%s3102 + $0x5c] sm:$0xf]
    %v3127 = vld [vmem:[%s3102 + $0x60] sm:$0xf]
    %v3128 = vld [vmem:[%s3102 + $0x64] sm:$0xf]
    %v3129 = vld [vmem:[%s3102 + $0x68] sm:$0xf]
    %v3130 = vld [vmem:[%s3102 + $0x6c] sm:$0xf]
    %v3131 = vld [vmem:[%s3102 + $0x70] sm:$0xf]
    %v3132 = vld [vmem:[%s3102 + $0x74] sm:$0xf]
    %v3133 = vld [vmem:[%s3102 + $0x78] sm:$0xf]
    %v3134 = vld [vmem:[%s3102 + $0x7c] sm:$0xf]
    %v3135 = vld [vmem:[%s3102 + $0x80] sm:$0xf]
    %v3136 = vld [vmem:[%s3102 + $0x84] sm:$0xf]
    %v3137 = vld [vmem:[%s3102 + $0x88] sm:$0xf]
    %v3138 = vld [vmem:[%s3102 + $0x8c] sm:$0xf]
    %v3139 = vld [vmem:[%s3102 + $0x90] sm:$0xf]
    %v3140 = vld [vmem:[%s3102 + $0x94] sm:$0xf]
    %v3141 = vld [vmem:[%s3102 + $0x98] sm:$0xf]
    %v3142 = vld [vmem:[%s3102 + $0x9c] sm:$0xf]
    %v3143 = vld [vmem:[%s3102 + $0xa0] sm:$0xf]
    %v3144 = vld [vmem:[%s3102 + $0xa4] sm:$0xf]
    %v3145 = vld [vmem:[%s3102 + $0xa8] sm:$0xf]
    %v3146 = vld [vmem:[%s3102 + $0xac] sm:$0xf]
    %v3147 = vld [vmem:[%s3102 + $0xb0] sm:$0xf]
    %v3148 = vld [vmem:[%s3102 + $0xb4] sm:$0xf]
    %v3149 = vld [vmem:[%s3102 + $0xb8] sm:$0xf]
    %v3150 = vld [vmem:[%s3102 + $0xbc] sm:$0xf]
    %v3151 = vld [vmem:[%s3102 + $0xc0] sm:$0xf]
    %v3152 = vld [vmem:[%s3102 + $0xc4] sm:$0xf]
    %v3153 = vld [vmem:[%s3102 + $0xc8] sm:$0xf]
    %v3154 = vld [vmem:[%s3102 + $0xcc] sm:$0xf]
    %v3155 = vld [vmem:[%s3102 + $0xd0] sm:$0xf]
    %v3156 = vld [vmem:[%s3102 + $0xd4] sm:$0xf]
    %v3157 = vld [vmem:[%s3102 + $0xd8] sm:$0xf]
    %v3158 = vld [vmem:[%s3102 + $0xdc] sm:$0xf]
    %v3159 = vld [vmem:[%s3102 + $0xe0] sm:$0xf]
    %v3160 = vld [vmem:[%s3102 + $0xe4] sm:$0xf]
    %v3161 = vld [vmem:[%s3102 + $0xe8] sm:$0xf]
    %v3162 = vld [vmem:[%s3102 + $0xec] sm:$0xf]
    %v3163 = vld [vmem:[%s3102 + $0xf0] sm:$0xf]
    %v3164 = vld [vmem:[%s3102 + $0xf4] sm:$0xf]
    %v3165 = vld [vmem:[%s3102 + $0xf8] sm:$0xf]
    %v3166 = vld [vmem:[%s3102 + $0xfc] sm:$0xf]
    %v3231 = vunpack.c.l.b16 %v3103
    %v3232 = vunpack.c.l.b16 %v3104
    %v3233 = vunpack.c.l.b16 %v3105
    %v3234 = vunpack.c.l.b16 %v3106
    %v3235 = vunpack.c.l.b16 %v3107
    %v3236 = vunpack.c.l.b16 %v3108
    %v3237 = vunpack.c.l.b16 %v3109
    %v3238 = vunpack.c.l.b16 %v3110
    %v3239 = vunpack.c.l.b16 %v3111
    %v3240 = vunpack.c.l.b16 %v3112
    %v3241 = vunpack.c.l.b16 %v3113
    %v3242 = vunpack.c.l.b16 %v3114
    %v3243 = vunpack.c.l.b16 %v3115
    %v3244 = vunpack.c.l.b16 %v3116
    %v3245 = vunpack.c.l.b16 %v3117
    %v3246 = vunpack.c.l.b16 %v3118
    %v3247 = vunpack.c.l.b16 %v3119
    %v3248 = vunpack.c.l.b16 %v3120
    %v3249 = vunpack.c.l.b16 %v3121
    %v3250 = vunpack.c.l.b16 %v3122
    %v3251 = vunpack.c.l.b16 %v3123
    %v3252 = vunpack.c.l.b16 %v3124
    %v3253 = vunpack.c.l.b16 %v3125
    %v3254 = vunpack.c.l.b16 %v3126
    %v3255 = vunpack.c.l.b16 %v3127
    %v3256 = vunpack.c.l.b16 %v3128
    %v3257 = vunpack.c.l.b16 %v3129
    %v3258 = vunpack.c.l.b16 %v3130
    %v3259 = vunpack.c.l.b16 %v3131
    %v3260 = vunpack.c.l.b16 %v3132
    %v3261 = vunpack.c.l.b16 %v3133
    %v3262 = vunpack.c.l.b16 %v3134
    %v3263 = vunpack.c.l.b16 %v3135
    %v3264 = vunpack.c.l.b16 %v3136
    %v3265 = vunpack.c.l.b16 %v3137
    %v3266 = vunpack.c.l.b16 %v3138
    %v3267 = vunpack.c.l.b16 %v3139
    %v3268 = vunpack.c.l.b16 %v3140
    %v3269 = vunpack.c.l.b16 %v3141
    %v3270 = vunpack.c.l.b16 %v3142
    %v3271 = vunpack.c.l.b16 %v3143
    %v3272 = vunpack.c.l.b16 %v3144
    %v3273 = vunpack.c.l.b16 %v3145
    %v3274 = vunpack.c.l.b16 %v3146
    %v3275 = vunpack.c.l.b16 %v3147
    %v3276 = vunpack.c.l.b16 %v3148
    %v3277 = vunpack.c.l.b16 %v3149
    %v3278 = vunpack.c.l.b16 %v3150
    %v3279 = vunpack.c.l.b16 %v3151
    %v3280 = vunpack.c.l.b16 %v3152
    %v3281 = vunpack.c.l.b16 %v3153
    %v3282 = vunpack.c.l.b16 %v3154
    %v3283 = vunpack.c.l.b16 %v3155
    %v3284 = vunpack.c.l.b16 %v3156
    %v3285 = vunpack.c.l.b16 %v3157
    %v3286 = vunpack.c.l.b16 %v3158
    %v3287 = vunpack.c.l.b16 %v3159
    %v3288 = vunpack.c.l.b16 %v3160
    %v3289 = vunpack.c.l.b16 %v3161
    %v3290 = vunpack.c.l.b16 %v3162
    %v3291 = vunpack.c.l.b16 %v3163
    %v3292 = vunpack.c.l.b16 %v3164
    %v3293 = vunpack.c.l.b16 %v3165
    %v3294 = vunpack.c.l.b16 %v3166
    %v3295 = vpack.c.b16 %v3232, %v3231
    %v3296 = vpack.c.b16 %v3234, %v3233
    %v3297 = vpack.c.b16 %v3236, %v3235
    %v3298 = vpack.c.b16 %v3238, %v3237
    %v3299 = vpack.c.b16 %v3240, %v3239
    %v3300 = vpack.c.b16 %v3242, %v3241
    %v3301 = vpack.c.b16 %v3244, %v3243
    %v3302 = vpack.c.b16 %v3246, %v3245
    %v3303 = vpack.c.b16 %v3248, %v3247
    %v3304 = vpack.c.b16 %v3250, %v3249
    %v3305 = vpack.c.b16 %v3252, %v3251
    %v3306 = vpack.c.b16 %v3254, %v3253
    %v3307 = vpack.c.b16 %v3256, %v3255
    %v3308 = vpack.c.b16 %v3258, %v3257
    %v3309 = vpack.c.b16 %v3260, %v3259
    %v3310 = vpack.c.b16 %v3262, %v3261
    %v3311 = vpack.c.b16 %v3264, %v3263
    %v3312 = vpack.c.b16 %v3266, %v3265
    %v3313 = vpack.c.b16 %v3268, %v3267
    %v3314 = vpack.c.b16 %v3270, %v3269
    %v3315 = vpack.c.b16 %v3272, %v3271
    %v3316 = vpack.c.b16 %v3274, %v3273
    %v3317 = vpack.c.b16 %v3276, %v3275
    %v3318 = vpack.c.b16 %v3278, %v3277
    %v3319 = vpack.c.b16 %v3280, %v3279
    %v3320 = vpack.c.b16 %v3282, %v3281
    %v3321 = vpack.c.b16 %v3284, %v3283
    %v3322 = vpack.c.b16 %v3286, %v3285
    %v3323 = vpack.c.b16 %v3288, %v3287
    %v3324 = vpack.c.b16 %v3290, %v3289
    %v3325 = vpack.c.b16 %v3292, %v3291
    %v3326 = vpack.c.b16 %v3294, %v3293
    %3359 = vmatprep.subr.bf16.mxu0 0
    %3360 = vmatpush1.bf16.msra.mxu0 %v3295
    %3361 = vmatprep.subr.bf16.mxu0 0
    %3362 = vmatpush1.bf16.msra.mxu0 %v3296
    %3363 = vmatprep.subr.bf16.mxu0 0
    %3364 = vmatpush1.bf16.msra.mxu0 %v3297
    %3365 = vmatprep.subr.bf16.mxu0 0
    %3366 = vmatpush1.bf16.msra.mxu0 %v3298
    %3367 = vmatprep.subr.bf16.mxu0 0
    %3368 = vmatpush1.bf16.msra.mxu0 %v3299
    %3369 = vmatprep.subr.bf16.mxu0 0
    %3370 = vmatpush1.bf16.msra.mxu0 %v3300
    %3371 = vmatprep.subr.bf16.mxu0 0
    %3372 = vmatpush1.bf16.msra.mxu0 %v3301
    %3373 = vmatprep.subr.bf16.mxu0 0
    %3374 = vmatpush1.bf16.msra.mxu0 %v3302
    %3375 = vmatprep.subr.bf16.mxu0 0
    %3376 = vmatpush1.bf16.msra.mxu0 %v3303
    %3377 = vmatprep.subr.bf16.mxu0 0
    %3378 = vmatpush1.bf16.msra.mxu0 %v3304
    %3379 = vmatprep.subr.bf16.mxu0 0
    %3380 = vmatpush1.bf16.msra.mxu0 %v3305
    %3381 = vmatprep.subr.bf16.mxu0 0
    %3382 = vmatpush1.bf16.msra.mxu0 %v3306
    %3383 = vmatprep.subr.bf16.mxu0 0
    %3384 = vmatpush1.bf16.msra.mxu0 %v3307
    %3385 = vmatprep.subr.bf16.mxu0 0
    %3386 = vmatpush1.bf16.msra.mxu0 %v3308
    %3387 = vmatprep.subr.bf16.mxu0 0
    %3388 = vmatpush1.bf16.msra.mxu0 %v3309
    %3389 = vmatprep.subr.bf16.mxu0 0
    %3390 = vmatpush1.bf16.msra.mxu0 %v3310
    %3391 = vmatprep.mubr.bf16.mxu0 %v3099
    %3392 = vmatmul.mubr.bf16.gmra.mrb[0].mxu0 %v3098
    %v3393 = vpop.f32.mrb[0].mxu0
    %v3394 = vadd.f32 0.0, %v3393
    %v3395 = vpop.f32.mrb[0].mxu0
    %v3396 = vpop.f32.mrb[0].mxu0
    %v3397 = vadd.f32 0.0, %v3396
    %v3398 = vpop.f32.mrb[0].mxu0
    %3399 = vdwg.mxu0
    %3400 = vmatprep.subr.bf16.mxu0 0
    %3401 = vmatpush1.bf16.msra.mxu0 %v3311
    %3402 = vmatprep.subr.bf16.mxu0 0
    %3403 = vmatpush1.bf16.msra.mxu0 %v3312
    %3404 = vmatprep.subr.bf16.mxu0 0
    %3405 = vmatpush1.bf16.msra.mxu0 %v3313
    %3406 = vmatprep.subr.bf16.mxu0 0
    %3407 = vmatpush1.bf16.msra.mxu0 %v3314
    %3408 = vmatprep.subr.bf16.mxu0 0
    %3409 = vmatpush1.bf16.msra.mxu0 %v3315
    %3410 = vmatprep.subr.bf16.mxu0 0
    %3411 = vmatpush1.bf16.msra.mxu0 %v3316
    %3412 = vmatprep.subr.bf16.mxu0 0
    %3413 = vmatpush1.bf16.msra.mxu0 %v3317
    %3414 = vmatprep.subr.bf16.mxu0 0
    %3415 = vmatpush1.bf16.msra.mxu0 %v3318
    %3416 = vmatprep.subr.bf16.mxu0 0
    %3417 = vmatpush1.bf16.msra.mxu0 %v3319
    %3418 = vmatprep.subr.bf16.mxu0 0
    %3419 = vmatpush1.bf16.msra.mxu0 %v3320
    %3420 = vmatprep.subr.bf16.mxu0 0
    %3421 = vmatpush1.bf16.msra.mxu0 %v3321
    %3422 = vmatprep.subr.bf16.mxu0 0
    %3423 = vmatpush1.bf16.msra.mxu0 %v3322
    %3424 = vmatprep.subr.bf16.mxu0 0
    %3425 = vmatpush1.bf16.msra.mxu0 %v3323
    %3426 = vmatprep.subr.bf16.mxu0 0
    %3427 = vmatpush1.bf16.msra.mxu0 %v3324
    %3428 = vmatprep.subr.bf16.mxu0 0
    %3429 = vmatpush1.bf16.msra.mxu0 %v3325
    %3430 = vmatprep.subr.bf16.mxu0 0
    %3431 = vmatpush1.bf16.msra.mxu0 %v3326
    %3432 = vmatprep.mubr.bf16.mxu0 %v3101
    %3433 = vmatmul.mubr.bf16.gmra.mrb[0].mxu0 %v3100
    %v3434 = vpop.f32.mrb[0].mxu0
    %v3435 = vadd.f32 %v3394, %v3434
    %v3436 = vpop.f32.mrb[0].mxu0
    %v3437 = vpop.f32.mrb[0].mxu0
    %v3438 = vadd.f32 %v3397, %v3437
    %v3439 = vpop.f32.mrb[0].mxu0
    %3440 = vdwg.mxu0
    %v3441 = vadd.f32 %v2679, %v3435
    %v3442 = vadd.f32 %v2680, %v3438
    %s3443 = scalar_lea.vmem %s13, 1
    %v3444 = vld [vmem:[%s3443] sm:$0x1]
    %v3446 = vlaneseq
    %v3447 = vshrl.u32 %v3446, 7
    %v3448 = vsub.s32 0, %v3447
    %v3449 = vrot.slane %v3444, %v3448
    %v3451 = vadd.f32 %v3441, %v3449
    %v3452 = vadd.f32 %v3442, %v3449
    %v3453 = vld [vmem:[%s14] sm:$0x1]
    %v3454 = vld [vmem:[%s15] sm:$0x1]
    %3455 = vadd.xlane.f32.xlu0 %v3451
    %v3456 = vpop.xlane.xlu0 %3455
    %3457 = vadd.xlane.f32.xlu0 %v3452
    %v3458 = vpop.xlane.xlu0 %3457
    %v3459 = vmul.f32 %v3456, %v157
    %v3460 = vmul.f32 %v3458, %v157
    %v3461 = vsub.f32 %v3451, %v3459
    %v3462 = vsub.f32 %v3452, %v3460
    %v3463 = vmul.f32 %v3461, %v3461
    %v3464 = vmul.f32 %v3462, %v3462
    %3465 = vadd.xlane.f32.xlu0 %v3463
    %v3466 = vpop.xlane.xlu0 %3465
    %3467 = vadd.xlane.f32.xlu0 %v3464
    %v3468 = vpop.xlane.xlu0 %3467
    %v3469 = vmul.f32 %v3466, %v157
    %v3470 = vmul.f32 %v3468, %v157
    %v3471 = vadd.f32 %v3469, 1e-05
    %v3472 = vadd.f32 %v3470, 1e-05
    %v3473 = vrsqrt.pop %v3471
    %v3474 = vrsqrt.pop %v3472
    %v3475 = vmul.f32 %v3461, %v3473
    %v3476 = vmul.f32 %v3462, %v3474
    %v3478 = vlaneseq
    %v3479 = vshrl.u32 %v3478, 7
    %v3480 = vsub.s32 0, %v3479
    %v3481 = vrot.slane %v3453, %v3480
    %v3483 = vmul.f32 %v3475, %v3481
    %v3484 = vmul.f32 %v3476, %v3481
    %v3486 = vlaneseq
    %v3487 = vshrl.u32 %v3486, 7
    %v3488 = vsub.s32 0, %v3487
    %v3489 = vrot.slane %v3454, %v3488
    %v3491 = vadd.f32 %v3483, %v3489
    %v3492 = vadd.f32 %v3484, %v3489
    %v3493 = vpack.c.bf16 %v3492, %v3491
    %v3494 = vld [vmem:[#allocation11] sm:$0xff]
    %v3495 = vld [vmem:[#allocation11 + $0x8] sm:$0xff]
    %v3496 = vld [vmem:[#allocation11 + $0x10] sm:$0xff]
    %v3497 = vld [vmem:[#allocation11 + $0x18] sm:$0xff]
    %v3498 = vld [vmem:[#allocation11 + $0x20] sm:$0xff]
    %v3499 = vld [vmem:[#allocation11 + $0x28] sm:$0xff]
    %v3500 = vld [vmem:[#allocation11 + $0x30] sm:$0xff]
    %v3501 = vld [vmem:[#allocation11 + $0x38] sm:$0xff]
    %v3502 = vld [vmem:[#allocation11 + $0x40] sm:$0xff]
    %v3503 = vld [vmem:[#allocation11 + $0x48] sm:$0xff]
    %v3504 = vld [vmem:[#allocation11 + $0x50] sm:$0xff]
    %v3505 = vld [vmem:[#allocation11 + $0x58] sm:$0xff]
    %v3506 = vld [vmem:[#allocation11 + $0x60] sm:$0xff]
    %v3507 = vld [vmem:[#allocation11 + $0x68] sm:$0xff]
    %v3508 = vld [vmem:[#allocation11 + $0x70] sm:$0xff]
    %v3509 = vld [vmem:[#allocation11 + $0x78] sm:$0xff]
    %v3510 = vpack.c.bf16 %v3495, %v3494
    %v3511 = vpack.c.bf16 %v3497, %v3496
    %v3512 = vpack.c.bf16 %v3499, %v3498
    %v3513 = vpack.c.bf16 %v3501, %v3500
    %v3514 = vpack.c.bf16 %v3503, %v3502
    %v3515 = vpack.c.bf16 %v3505, %v3504
    %v3516 = vpack.c.bf16 %v3507, %v3506
    %v3517 = vpack.c.bf16 %v3509, %v3508
    %3518 = vmatprep.subr.bf16.mxu0 0
    %3519 = vmatpush1.bf16.xpose.msra.mxu0 %v3510
    %3520 = vmatprep.subr.bf16.mxu0 0
    %3521 = vmatpush1.bf16.xpose.msra.mxu0 %v3511
    %3522 = vmatprep.subr.bf16.mxu0 0
    %3523 = vmatpush1.bf16.xpose.msra.mxu0 %v3512
    %3524 = vmatprep.subr.bf16.mxu0 0
    %3525 = vmatpush1.bf16.xpose.msra.mxu0 %v3513
    %3526 = vmatprep.subr.bf16.mxu0 0
    %3527 = vmatpush1.bf16.xpose.msra.mxu0 %v3514
    %3528 = vmatprep.subr.bf16.mxu0 0
    %3529 = vmatpush1.bf16.xpose.msra.mxu0 %v3515
    %3530 = vmatprep.subr.bf16.mxu0 0
    %3531 = vmatpush1.bf16.xpose.msra.mxu0 %v3516
    %3532 = vmatprep.subr.bf16.mxu0 0
    %3533 = vmatpush1.bf16.xpose.msra.mxu0 %v3517
    %3534 = vmatprep.subr.bf16.mxu0 0
    %3535 = vmatpush1.bf16.xpose.msra.mxu0 0
    %3536 = vmatprep.subr.bf16.mxu0 0
    %3537 = vmatpush1.bf16.xpose.msra.mxu0 0
    %3538 = vmatprep.subr.bf16.mxu0 0
    %3539 = vmatpush1.bf16.xpose.msra.mxu0 0
    %3540 = vmatprep.subr.bf16.mxu0 0
    %3541 = vmatpush1.bf16.xpose.msra.mxu0 0
    %3542 = vmatprep.subr.bf16.mxu0 0
    %3543 = vmatpush1.bf16.xpose.msra.mxu0 0
    %3544 = vmatprep.subr.bf16.mxu0 0
    %3545 = vmatpush1.bf16.xpose.msra.mxu0 0
    %3546 = vmatprep.subr.bf16.mxu0 0
    %3547 = vmatpush1.bf16.xpose.msra.mxu0 0
    %3548 = vmatprep.subr.bf16.mxu0 0
    %3549 = vmatpush1.bf16.xpose.msra.mxu0 0
    %3550 = vmatprep.mubr.bf16.mxu0 0
    %3551 = vmatmul.mubr.bf16.gmra.mrb[0].mxu0 %v3493
    %v3552 = vpop.f32.mrb[0].mxu0
    %v3553 = vadd.f32 0.0, %v3552
    %v3554 = vpop.f32.mrb[0].mxu0
    %v3555 = vpop.f32.mrb[0].mxu0
    %v3556 = vadd.f32 0.0, %v3555
    %v3557 = vpop.f32.mrb[0].mxu0
    %3558 = vdwg.mxu0
    %3559 = vmax.xlane.f32.xlu0 %v3553
    %v3560 = vpop.xlane.xlu0 %3559
    %3561 = vmax.xlane.f32.xlu0 %v3556
    %v3562 = vpop.xlane.xlu0 %3561
    %v3563 = vsub.f32 %v3553, %v3560
    %v3564 = vsub.f32 %v3556, %v3562
    %v3565 = vmul.f32 %v3563, 1.442695
    %v3566 = vpow.pop %v3565
    %v3567 = vmul.f32 %v3564, 1.442695
    %v3568 = vpow.pop %v3567
    %3569 = vadd.xlane.f32.xlu0 %v3566
    %v3570 = vpop.xlane.xlu0 %3569
    %3571 = vadd.xlane.f32.xlu0 %v3568
    %v3572 = vpop.xlane.xlu0 %3571
    %v3573 = vrcp.pop %v3570
    %v3574 = vmul.f32 %v3566, %v3573
    %v3575 = vrcp.pop %v3572
    %v3576 = vmul.f32 %v3568, %v3575
    %3577 = vst [vmem:[#allocation13] sm:$0xff] %v3574
    %3578 = vst [vmem:[#allocation13 + $0x8] sm:$0xff] %v3576
    %v3579 = vlog2.pop %v3570
    %v3580 = vmul.f32 %v3579, 0.6931472
    %v3581 = vlog2.pop %v3572
    %v3582 = vmul.f32 %v3581, 0.6931472
    %v3583 = vadd.f32 %v3580, %v3560
    %v3584 = vadd.f32 %v3582, %v3562
    %v3585 = vld [vmem:[%s1] sm:$0xff]
    %v3586 = vld [vmem:[%s1 + $0x8] sm:$0xff]
    %3587 = vset.pattern.permute.xlu0 0
    %3588 = vperm.xlu0 %3587, %v3585
    %v3589 = vpop.permute.xlu0 %3588
    %3590 = vset.pattern.permute.xlu0 0
    %3591 = vperm.xlu0 %3590, %v3586
    %v3592 = vpop.permute.xlu0 %3591
    %vm3593 = vcmp.eq.s32.totalorder %v148, %v3589
    %vm3594 = vcmp.eq.s32.totalorder %v148, %v3592
    %v3595 = vsel %vm3593, 1, 0
    %v3596 = vsel %vm3594, 1, 0
    %v3597 = vcvt.s32.f32 %v3595
    %v3598 = vcvt.s32.f32 %v3596
    %v3599 = vmul.f32 %v3553, %v3597
    %v3600 = vmul.f32 %v3556, %v3598
    %3601 = vadd.xlane.f32.xlu0 %v3599
    %v3602 = vpop.xlane.xlu0 %3601
    %3603 = vadd.xlane.f32.xlu0 %v3600
    %v3604 = vpop.xlane.xlu0 %3603
    %vm3605 = vcmp.ne.s32.totalorder %v3585, 4294967196
    %vm3606 = vcmp.ne.s32.totalorder %v3586, 4294967196
    %v3607 = vsel %vm3605, 1, 0
    %v3608 = vsel %vm3606, 1, 0
    %v3609 = vcvt.s32.f32 %v3607
    %v3610 = vcvt.s32.f32 %v3608
    %v3611 = vsub.f32 %v3583, %v3602
    %v3612 = vsub.f32 %v3584, %v3604
    %v3613 = vmul.f32 %v3611, %v3609
    %v3614 = vmul.f32 %v3612, %v3610
    %vm3615 = vcmask 7168
    %3616 = vst.msk [vmem:[%s18] sm:$0xff] %vm3615, %v3613
    %3617 = vst.msk [vmem:[%s18 + $0x8] sm:$0xff] %vm3615, %v3614
    %3618 = vst.msk [vmem:[%s19] sm:$0xff] %vm3615, %v3609
    %3619 = vst.msk [vmem:[%s19 + $0x8] sm:$0xff] %vm3615, %v3610
    // Predicated region
    $region94: #{tpu_custom_call.1} parent=1 // pred_check
      _
    $region95: #{tpu_custom_call.1} parent=1 // pred_check_branch
      %3621 = sbr.rel (0) target = $region97
    $region96: #{tpu_custom_call.1} parent=1 // pred_region
      %s3623 = ssub.s32 256, 256
      %3624 = vsyncadd [#allocation4], %s3623
      %s3625 = sshll.u32 [#allocation13], 4
      %s3626 = int_to_ptr.vmem [resolvable:$true] %s3625
      %3631 = dma.vmem_to_hbm [thread:$0]  %s3626, 256, %s17, [#allocation4], 128, 128, 8
    $region97: #{tpu_custom_call.1} parent=1 // pred_fallthru
      _
    // Predicated region
    $region98: #{tpu_custom_call.1} parent=1 // pred_check
      _
    $region99: #{tpu_custom_call.1} parent=1 // pred_check_branch
      %3633 = sbr.rel (0) target = $region101
    $region100: #{tpu_custom_call.1} parent=1 // pred_region
      _
    $region101: #{tpu_custom_call.1} parent=1 // pred_fallthru
      _
    // Predicated region
    $region102: #{tpu_custom_call.1} parent=1 // pred_check
      _
    $region103: #{tpu_custom_call.1} parent=1 // pred_check_branch
      %3635 = sbr.rel (0) target = $region105
    $region104: #{tpu_custom_call.1} parent=1 // pred_region
      _
    $region105: #{tpu_custom_call.1} parent=1 // pred_fallthru
      _
    // Predicated region
    $region106: #{tpu_custom_call.1} parent=1 // pred_check
      _
    $region107: #{tpu_custom_call.1} parent=1 // pred_check_branch
      %3637 = sbr.rel (0) target = $region109
    $region108: #{tpu_custom_call.1} parent=1 // pred_region
      %3638 = dma.done [#allocation4], 256
    $region109: #{tpu_custom_call.1} parent=1 // pred_fallthru
      _
    // Predicated region
    $region110: #{tpu_custom_call.1} parent=1 // pred_check
      _
    $region111: #{tpu_custom_call.1} parent=1 // pred_check_branch
      %3640 = sbr.rel (0) target = $region113
    $region112: #{tpu_custom_call.1} parent=1 // pred_region
      _
    $region113: #{tpu_custom_call.1} parent=1 // pred_fallthru
      _
    // Predicated region
    $region114: #{tpu_custom_call.1} parent=1 // pred_check
      _
    $region115: #{tpu_custom_call.1} parent=1 // pred_check_branch
      %3642 = sbr.rel (0) target = $region117
    $region116: #{tpu_custom_call.1} parent=1 // pred_region
      _
    $region117: #{tpu_custom_call.1} parent=1 // pred_fallthru
      _
    %3643 = vsyncpa [#allocation3], 1
    %3644 = vsyncpa [#allocation6], 1
    %3645 = vsyncpa [#allocation9], 1
    %3646 = vsyncpa [#allocation12], 1
    %3647 = vsyncpa [#allocation4], 1

</llo_original>
